<compile_context>
chip_gen: v7x
topology: tpu7x:2x2x1
jax: 0.10.0
libtpu: 0.0.40
codegen_flags: <defaults>
</compile_context>

<pallas_src>
import functools
import math

import numpy as np
import jax
import jax.numpy as jnp
from jax.experimental import pallas as pl
from jax.experimental.pallas import tpu as pltpu


# ---------------------------------------------------------------------------
# Fused Pallas kernel (one image per grid step)
# ---------------------------------------------------------------------------
def _fused_attention_kernel(x_ref, wqkv_ref, bqkv_ref, wproj_ref, bproj_ref,
                            bias_ref, *rest, H, W, C, num_heads, window_size,
                            has_mask):
    if has_mask:
        mask_ref, o_ref = rest
    else:
        (o_ref,) = rest

    ws = window_size
    nwh, nww = H // ws, W // ws
    nwin = nwh * nww
    N = ws * ws
    hd = C // num_heads
    scale = hd ** (-0.5)

    # ---- QKV 1x1 conv == (H*W, C) @ (C, 3C) on the MXU (bf16 in, f32 acc) ----
    x_tok = x_ref[0].T.astype(jnp.bfloat16)                           # (HW, C)
    qkv = jnp.dot(x_tok, wqkv_ref[...],
                  preferred_element_type=jnp.float32) + bqkv_ref[...]  # (HW, 3C) f32

    # ---- window partition (input was pre-shifted by the wrapper) ----
    win = qkv.reshape(nwh, ws, nww, ws, 3 * C)
    win = win.transpose(0, 2, 1, 3, 4).reshape(nwin * N, 3 * C)
    win = win.astype(jnp.bfloat16)                                    # (nW*N, 3C)

    bias = bias_ref[...]                                              # (nh, N, N) f32
    mask = mask_ref[...] if has_mask else None                        # (nW, N, N) f32

    # ---- multi-head attention, batched over windows per head (static unroll) ----
    head_outs = []
    for h in range(num_heads):
        q = win[:, h * hd:(h + 1) * hd].reshape(nwin, N, hd)
        k = win[:, C + h * hd:C + (h + 1) * hd].reshape(nwin, N, hd)
        v = win[:, 2 * C + h * hd:2 * C + (h + 1) * hd].reshape(nwin, N, hd)
        s = jnp.einsum("wnd,wmd->wnm", q, k,
                       preferred_element_type=jnp.float32) * scale     # (nW, N, N) f32
        s = s + bias[h][None]
        if has_mask:
            s = s + mask
        s = s - jnp.max(s, axis=-1, keepdims=True)
        p = jnp.exp(s)
        p = p * pl.reciprocal(jnp.sum(p, axis=-1, keepdims=True), approx=True)
        head_outs.append(
            jnp.einsum("wnm,wmd->wnd", p.astype(jnp.bfloat16), v,
                       preferred_element_type=jnp.float32))            # (nW, N, hd) f32
    attn = jnp.concatenate(head_outs, axis=-1)                         # (nW, N, C) f32

    # ---- window reverse back to (still shifted) raster order ----
    attn = attn.reshape(nwh, nww, ws, ws, C)
    attn = attn.transpose(0, 2, 1, 3, 4).reshape(H * W, C)

    # ---- proj 1x1 conv, computed transposed so the HBM store is lane-dense (C, HW) ----
    y_t = jnp.dot(wproj_ref[...], attn.T.astype(jnp.bfloat16),
                  preferred_element_type=jnp.float32) + bproj_ref[...]  # (C, HW) f32
    o_ref[0] = y_t.astype(o_ref.dtype)


# ---------------------------------------------------------------------------
# Glue (plain JAX): window partition/reverse (reference + mask build),
# relative-position bias MLP, shift-mask construction
# ---------------------------------------------------------------------------
def window_partition(x, window_size):
    B, H, W, C = x.shape
    x = x.reshape(B, H // window_size, window_size, W // window_size, window_size, C)
    return x.transpose(0, 1, 3, 2, 4, 5).reshape(-1, window_size * window_size, C)


def window_reverse(windows, window_size, H, W):
    B = windows.shape[0] // ((H // window_size) * (W // window_size))
    x = windows.reshape(B, H // window_size, W // window_size, window_size,
                        window_size, -1)
    return x.transpose(0, 1, 3, 2, 4, 5).reshape(B, H, W, -1)


def get_relative_positions(window_size):
    coords = jnp.stack(jnp.meshgrid(jnp.arange(window_size),
                                    jnp.arange(window_size), indexing="ij"))
    coords_flat = coords.reshape(2, -1)
    rel = coords_flat[:, :, None] - coords_flat[:, None, :]
    rel = rel.transpose(1, 2, 0).astype(jnp.float32)          # (N, N, 2)
    return jnp.sign(rel) * jnp.log1p(jnp.abs(rel))


def rel_pos_bias(params, window_size):
    # meta MLP: Linear(2,256) -> ReLU -> Linear(256, num_heads); tiny setup work.
    rel = get_relative_positions(window_size)                  # (N, N, 2)
    h = jnp.maximum(rel @ params["meta_w1"] + params["meta_b1"], 0.0)
    bias = h @ params["meta_w2"] + params["meta_b2"]           # (N, N, nh)
    return bias.transpose(2, 0, 1)                             # (nh, N, N)


def build_attn_mask(H, W, window_size, shift_size):
    img_mask = np.zeros((1, H, W, 1), np.float32)
    h_slices = (slice(0, -window_size), slice(-window_size, -shift_size),
                slice(-shift_size, None))
    w_slices = (slice(0, -window_size), slice(-window_size, -shift_size),
                slice(-shift_size, None))
    cnt = 0
    for hs in h_slices:
        for ws_ in w_slices:
            img_mask[:, hs, ws_, :] = cnt
            cnt += 1
    mw = np.asarray(window_partition(jnp.asarray(img_mask), window_size))
    mw = mw.reshape(-1, window_size * window_size)
    diff = mw[:, None, :] - mw[:, :, None]
    attn_mask = np.where(diff != 0, -100.0, 0.0).astype(np.float32)
    return jnp.asarray(attn_mask)                              # (nW, N, N)


# ---------------------------------------------------------------------------
# Full forward (Attention.forward with use_attn=True, conv_type=None)
# ---------------------------------------------------------------------------
def attention_forward(x, params, *, dim, num_heads, window_size, shift_size):
    B, C, H, W = x.shape
    assert C == dim and H % window_size == 0 and W % window_size == 0
    N = window_size * window_size
    nW = (H // window_size) * (W // window_size)
    HW = H * W

    # relative-position bias via the meta MLP (tiny, parameter-derived)
    bias = rel_pos_bias(params, window_size)                               # (nh, N, N)

    # fused [Q|K|V] 1x1-conv weight / bias; bf16 operands for the MXU
    w_qkv = jnp.concatenate([params["qk_w"], params["v_w"]],
                            axis=1).astype(jnp.bfloat16)                   # (C, 3C)
    b_qkv = jnp.concatenate([params["qk_b"], params["v_b"]]).reshape(1, 3 * C)
    w_proj_t = params["proj_w"].T.astype(jnp.bfloat16)                     # (Cout, Cin)
    b_proj = params["proj_b"].reshape(C, 1)

    # Cyclic shift commutes with the 1x1 convs -> apply to input/output in XLA
    # (2 tiny ops) instead of unaligned sublane rolls inside the kernel.
    if shift_size > 0:
        x = jnp.roll(x, shift=(-shift_size, -shift_size), axis=(2, 3))
    x_flat = x.reshape(B, C, HW)                                           # lane-dense load

    kernel = functools.partial(
        _fused_attention_kernel, H=H, W=W, C=C, num_heads=num_heads,
        window_size=window_size, has_mask=shift_size > 0)

    in_specs = [
        pl.BlockSpec((1, C, HW), lambda b: (b, 0, 0)),          # x (NCHW slab)
        pl.BlockSpec((C, 3 * C), lambda b: (0, 0)),             # fused qkv weight
        pl.BlockSpec((1, 3 * C), lambda b: (0, 0)),             # fused qkv bias
        pl.BlockSpec((C, C), lambda b: (0, 0)),                 # proj weight^T
        pl.BlockSpec((C, 1), lambda b: (0, 0)),                 # proj bias
        pl.BlockSpec((num_heads, N, N), lambda b: (0, 0, 0)),   # rel-pos bias
    ]
    args = [x_flat, w_qkv, b_qkv, w_proj_t, b_proj, bias]
    if shift_size > 0:
        in_specs.append(pl.BlockSpec((nW, N, N), lambda b: (0, 0, 0)))
        args.append(params["attn_mask"])

    out = pl.pallas_call(
        kernel,
        out_shape=jax.ShapeDtypeStruct((B, C, HW), x.dtype),
        grid=(B,),
        in_specs=in_specs,
        out_specs=pl.BlockSpec((1, C, HW), lambda b: (b, 0, 0)),
        compiler_params=pltpu.CompilerParams(dimension_semantics=("parallel",)),
    )(*args)

    out = out.reshape(B, C, H, W)
    if shift_size > 0:
        out = jnp.roll(out, shift=(shift_size, shift_size), axis=(2, 3))
    return out


# ---------------------------------------------------------------------------
# Pure-JAX reference (mirrors the PyTorch math) for a sanity check
# ---------------------------------------------------------------------------
def reference_forward(x, params, *, dim, num_heads, window_size, shift_size):
    B, C, H, W = x.shape
    N = window_size * window_size
    nW = (H // window_size) * (W // window_size)
    hd = dim // num_heads

    xf = x.transpose(0, 2, 3, 1).reshape(-1, C)
    V = xf @ params["v_w"] + params["v_b"]
    QK = xf @ params["qk_w"] + params["qk_b"]
    qkv = jnp.concatenate([QK, V], -1).reshape(B, H, W, 3 * C)
    if shift_size > 0:
        qkv = jnp.roll(qkv, (-shift_size, -shift_size), (1, 2))
    win = window_partition(qkv, window_size)
    B_ = win.shape[0]
    qkv5 = win.reshape(B_, N, 3, num_heads, hd).transpose(2, 0, 3, 1, 4)
    q, k, v = qkv5[0] * hd ** (-0.5), qkv5[1], qkv5[2]
    attn = jnp.einsum("bhnd,bhmd->bhnm", q, k)
    attn = attn + rel_pos_bias(params, window_size)[None]
    if shift_size > 0:
        attn = attn.reshape(B_ // nW, nW, num_heads, N, N)
        attn = attn + params["attn_mask"][None, :, None]
        attn = attn.reshape(B_, num_heads, N, N)
    attn = jax.nn.softmax(attn, axis=-1)
    out = jnp.einsum("bhnm,bhmd->bhnd", attn, v).transpose(0, 2, 1, 3)
    out = out.reshape(-1, window_size, window_size, C)
    sx = window_reverse(out, window_size, H, W)
    if shift_size > 0:
        sx = jnp.roll(sx, (shift_size, shift_size), (1, 2))
    of = sx.reshape(-1, C) @ params["proj_w"] + params["proj_b"]
    return of.reshape(B, H, W, C).transpose(0, 3, 1, 2)


# ---------------------------------------------------------------------------
# Deterministic parameter init (shapes from Attention.__init__)
# ---------------------------------------------------------------------------
def init_params(key, *, dim, num_heads, network_depth, H, W, window_size,
                shift_size):
    ks = jax.random.split(key, 8)
    gain = (8 * network_depth) ** (-0.25)

    def conv_std(cin, cout):
        return gain * math.sqrt(2.0 / float(cin + cout))

    # 1x1 conv weights stored transposed: (Cin, Cout) for x @ W
    v_w = jax.random.normal(ks[0], (dim, dim), jnp.float32) * conv_std(dim, dim)
    qk_std = math.sqrt(2.0 / float(dim + 2 * dim))   # QK conv uses no gain
    qk_w = jax.random.normal(ks[1], (dim, 2 * dim), jnp.float32) * qk_std
    proj_w = jax.random.normal(ks[2], (dim, dim), jnp.float32) * conv_std(dim, dim)

    params = {
        "v_w": v_w, "v_b": jnp.zeros((dim,), jnp.float32),
        "qk_w": qk_w, "qk_b": jnp.zeros((2 * dim,), jnp.float32),
        "proj_w": proj_w, "proj_b": jnp.zeros((dim,), jnp.float32),
        # meta MLP (nn.Linear default-ish init, deterministic)
        "meta_w1": jax.random.normal(ks[3], (2, 256), jnp.float32) * (1.0 / math.sqrt(2.0)),
        "meta_b1": jax.random.normal(ks[4], (256,), jnp.float32) * 0.01,
        "meta_w2": jax.random.normal(ks[5], (256, num_heads), jnp.float32) * (1.0 / math.sqrt(256.0)),
        "meta_b2": jax.random.normal(ks[6], (num_heads,), jnp.float32) * 0.01,
    }
    if shift_size > 0:
        params["attn_mask"] = build_attn_mask(H, W, window_size, shift_size)
    return params


if __name__ == "__main__":
    # Module config: input_resolution=(16,16), network_depth=8, dim=32,
    # num_heads=4, window_size=8, shift_size=4, use_attn=True, conv_type=None
    B, dim, H, W = 2, 32, 16, 16
    num_heads, window_size, shift_size, network_depth = 4, 8, 4, 8

    key = jax.random.PRNGKey(0)
    kx, kp = jax.random.split(key)
    x = jax.random.normal(kx, (B, dim, H, W), jnp.float32)
    params = init_params(kp, dim=dim, num_heads=num_heads,
                         network_depth=network_depth, H=H, W=W,
                         window_size=window_size, shift_size=shift_size)

    fwd = jax.jit(functools.partial(attention_forward, dim=dim,
                                    num_heads=num_heads,
                                    window_size=window_size,
                                    shift_size=shift_size))
    out = fwd(x, params)
    out = jax.block_until_ready(out)

    ref = reference_forward(x, params, dim=dim, num_heads=num_heads,
                            window_size=window_size, shift_size=shift_size)
    assert out.shape == (B, dim, H, W)
    np.testing.assert_allclose(np.asarray(out), np.asarray(ref),
                               atol=5e-2, rtol=5e-2)
    print("KERNEL_OK")
</pallas_src>

<mosaic_0001>
module attributes {stable_mosaic.version = 11 : i64} {
  func.func @_fused_attention_kernel(%arg0: i32, %arg1: memref<1x32x256xf32, #tpu.memory_space<vmem>>, %arg2: memref<32x96xbf16, #tpu.memory_space<vmem>>, %arg3: memref<1x96xf32, #tpu.memory_space<vmem>>, %arg4: memref<32x32xbf16, #tpu.memory_space<vmem>>, %arg5: memref<32x1xf32, #tpu.memory_space<vmem>>, %arg6: memref<4x64x64xf32, #tpu.memory_space<vmem>>, %arg7: memref<4x64x64xf32, #tpu.memory_space<vmem>>, %arg8: memref<1x32x256xf32, #tpu.memory_space<vmem>>) attributes {dimension_semantics = [#tpu.dimension_semantics<parallel>], iteration_bounds = array<i64: 2>, scalar_prefetch = 0 : i64, scratch_operands = 0 : i64, tpu.core_type = #tpu.core_type<tc>, window_params = [{transform_indices = @transform_0, window_bounds = array<i64: 1, 32, 256>}, {pipeline_mode = #tpu.pipeline_mode<synchronous>, transform_indices = @transform_1, window_bounds = array<i64: 32, 96>}, {pipeline_mode = #tpu.pipeline_mode<synchronous>, transform_indices = @transform_2, window_bounds = array<i64: 1, 96>}, {pipeline_mode = #tpu.pipeline_mode<synchronous>, transform_indices = @transform_3, window_bounds = array<i64: 32, 32>}, {pipeline_mode = #tpu.pipeline_mode<synchronous>, transform_indices = @transform_4, window_bounds = array<i64: 32, 1>}, {pipeline_mode = #tpu.pipeline_mode<synchronous>, transform_indices = @transform_5, window_bounds = array<i64: 4, 64, 64>}, {pipeline_mode = #tpu.pipeline_mode<synchronous>, transform_indices = @transform_6, window_bounds = array<i64: 4, 64, 64>}, {transform_indices = @transform_7, window_bounds = array<i64: 1, 32, 256>}]} {
    %c0 = arith.constant 0 : index
    %c0_0 = arith.constant 0 : index
    %c0_1 = arith.constant 0 : index
    %0 = vector.load %arg1[%c0, %c0_0, %c0_1] : memref<1x32x256xf32, #tpu.memory_space<vmem>>, vector<1x32x256xf32>
    %1 = vector.shape_cast %0 : vector<1x32x256xf32> to vector<32x256xf32>
    %2 = tpu.transpose %1, [1, 0] : vector<32x256xf32> -> vector<256x32xf32>
    %3 = arith.truncf %2 : vector<256x32xf32> to vector<256x32xbf16>
    %c0_2 = arith.constant 0 : index
    %c0_3 = arith.constant 0 : index
    %4 = vector.load %arg2[%c0_2, %c0_3] : memref<32x96xbf16, #tpu.memory_space<vmem>>, vector<32x96xbf16>
    %cst = arith.constant dense<0.000000e+00> : vector<256x96xf32>
    %5 = tpu.matmul %3, %4, %cst {dimension_numbers = #tpu.dot_dimension_numbers<[1], [0], [0], [1], [0, 0, 1, 1], [], []>} : vector<256x32xbf16>, vector<32x96xbf16>, vector<256x96xf32> -> vector<256x96xf32>
    %c0_4 = arith.constant 0 : index
    %c0_5 = arith.constant 0 : index
    %6 = vector.load %arg3[%c0_4, %c0_5] : memref<1x96xf32, #tpu.memory_space<vmem>>, vector<1x96xf32>
    %7 = vector.broadcast %6 : vector<1x96xf32> to vector<256x96xf32>
    %8 = arith.addf %5, %7 : vector<256x96xf32>
    %9 = vector.shape_cast %8 : vector<256x96xf32> to vector<2x8x2x8x96xf32>
    %10 = tpu.transpose %9, [0, 2, 1, 3, 4] : vector<2x8x2x8x96xf32> -> vector<2x2x8x8x96xf32>
    %11 = vector.shape_cast %10 : vector<2x2x8x8x96xf32> to vector<256x96xf32>
    %12 = arith.truncf %11 : vector<256x96xf32> to vector<256x96xbf16>
    %c0_6 = arith.constant 0 : index
    %c0_7 = arith.constant 0 : index
    %c0_8 = arith.constant 0 : index
    %13 = vector.load %arg6[%c0_6, %c0_7, %c0_8] : memref<4x64x64xf32, #tpu.memory_space<vmem>>, vector<4x64x64xf32>
    %c0_9 = arith.constant 0 : index
    %c0_10 = arith.constant 0 : index
    %c0_11 = arith.constant 0 : index
    %14 = vector.load %arg7[%c0_9, %c0_10, %c0_11] : memref<4x64x64xf32, #tpu.memory_space<vmem>>, vector<4x64x64xf32>
    %15 = vector.extract_strided_slice %12 {offsets = [0, 0], sizes = [256, 8], strides = [1, 1]} : vector<256x96xbf16> to vector<256x8xbf16>
    %16 = vector.shape_cast %15 : vector<256x8xbf16> to vector<4x64x8xbf16>
    %17 = vector.extract_strided_slice %12 {offsets = [0, 32], sizes = [256, 8], strides = [1, 1]} : vector<256x96xbf16> to vector<256x8xbf16>
    %18 = vector.shape_cast %17 : vector<256x8xbf16> to vector<4x64x8xbf16>
    %19 = vector.extract_strided_slice %12 {offsets = [0, 64], sizes = [256, 8], strides = [1, 1]} : vector<256x96xbf16> to vector<256x8xbf16>
    %20 = vector.shape_cast %19 : vector<256x8xbf16> to vector<4x64x8xbf16>
    "tpu.trace_start"() <{level = 10 : i32, message = "wnd,wmd->wnm"}> : () -> ()
    %cst_12 = arith.constant dense<0.000000e+00> : vector<4x64x64xf32>
    %21 = tpu.matmul %16, %18, %cst_12 {dimension_numbers = #tpu.dot_dimension_numbers<[2], [2], [1], [1], [0, 0, 0, 1, 1, 1], [0], [0]>} : vector<4x64x8xbf16>, vector<4x64x8xbf16>, vector<4x64x64xf32> -> vector<4x64x64xf32>
    "tpu.trace_stop"() : () -> ()
    %cst_13 = arith.constant 0.353553385 : f32
    %22 = vector.broadcast %cst_13 : f32 to vector<4x64x64xf32>
    %23 = arith.mulf %21, %22 : vector<4x64x64xf32>
    %24 = vector.extract_strided_slice %13 {offsets = [0, 0, 0], sizes = [1, 64, 64], strides = [1, 1, 1]} : vector<4x64x64xf32> to vector<1x64x64xf32>
    %25 = vector.shape_cast %24 : vector<1x64x64xf32> to vector<64x64xf32>
    %26 = vector.shape_cast %25 : vector<64x64xf32> to vector<1x64x64xf32>
    %27 = vector.broadcast %26 : vector<1x64x64xf32> to vector<4x64x64xf32>
    %28 = arith.addf %23, %27 : vector<4x64x64xf32>
    %29 = arith.addf %28, %14 : vector<4x64x64xf32>
    %cst_14 = arith.constant dense<0xFF800000> : vector<4x64xf32>
    %30 = vector.multi_reduction <maximumf>, %29, %cst_14 [2] : vector<4x64x64xf32> to vector<4x64xf32>
    %31 = vector.shape_cast %30 : vector<4x64xf32> to vector<4x64x1xf32>
    %32 = vector.broadcast %31 : vector<4x64x1xf32> to vector<4x64x64xf32>
    %33 = arith.subf %29, %32 : vector<4x64x64xf32>
    %34 = math.exp %33 : vector<4x64x64xf32>
    %cst_15 = arith.constant dense<0.000000e+00> : vector<4x64xf32>
    %35 = vector.multi_reduction <add>, %34, %cst_15 [2] : vector<4x64x64xf32> to vector<4x64xf32>
    %36 = vector.shape_cast %35 : vector<4x64xf32> to vector<4x64x1xf32>
    %37 = tpu.reciprocal %36 {approx = true} : vector<4x64x1xf32> -> vector<4x64x1xf32>
    %38 = vector.broadcast %37 : vector<4x64x1xf32> to vector<4x64x64xf32>
    %39 = arith.mulf %34, %38 : vector<4x64x64xf32>
    %40 = arith.truncf %39 : vector<4x64x64xf32> to vector<4x64x64xbf16>
    "tpu.trace_start"() <{level = 10 : i32, message = "wnm,wmd->wnd"}> : () -> ()
    %cst_16 = arith.constant dense<0.000000e+00> : vector<4x64x8xf32>
    %41 = tpu.matmul %40, %20, %cst_16 {dimension_numbers = #tpu.dot_dimension_numbers<[2], [1], [1], [2], [0, 0, 0, 1, 1, 2], [0], [0]>} : vector<4x64x64xbf16>, vector<4x64x8xbf16>, vector<4x64x8xf32> -> vector<4x64x8xf32>
    "tpu.trace_stop"() : () -> ()
    %42 = vector.extract_strided_slice %12 {offsets = [0, 8], sizes = [256, 8], strides = [1, 1]} : vector<256x96xbf16> to vector<256x8xbf16>
    %43 = vector.shape_cast %42 : vector<256x8xbf16> to vector<4x64x8xbf16>
    %44 = vector.extract_strided_slice %12 {offsets = [0, 40], sizes = [256, 8], strides = [1, 1]} : vector<256x96xbf16> to vector<256x8xbf16>
    %45 = vector.shape_cast %44 : vector<256x8xbf16> to vector<4x64x8xbf16>
    %46 = vector.extract_strided_slice %12 {offsets = [0, 72], sizes = [256, 8], strides = [1, 1]} : vector<256x96xbf16> to vector<256x8xbf16>
    %47 = vector.shape_cast %46 : vector<256x8xbf16> to vector<4x64x8xbf16>
    "tpu.trace_start"() <{level = 10 : i32, message = "wnd,wmd->wnm"}> : () -> ()
    %cst_17 = arith.constant dense<0.000000e+00> : vector<4x64x64xf32>
    %48 = tpu.matmul %43, %45, %cst_17 {dimension_numbers = #tpu.dot_dimension_numbers<[2], [2], [1], [1], [0, 0, 0, 1, 1, 1], [0], [0]>} : vector<4x64x8xbf16>, vector<4x64x8xbf16>, vector<4x64x64xf32> -> vector<4x64x64xf32>
    "tpu.trace_stop"() : () -> ()
    %cst_18 = arith.constant 0.353553385 : f32
    %49 = vector.broadcast %cst_18 : f32 to vector<4x64x64xf32>
    %50 = arith.mulf %48, %49 : vector<4x64x64xf32>
    %51 = vector.extract_strided_slice %13 {offsets = [1, 0, 0], sizes = [1, 64, 64], strides = [1, 1, 1]} : vector<4x64x64xf32> to vector<1x64x64xf32>
    %52 = vector.shape_cast %51 : vector<1x64x64xf32> to vector<64x64xf32>
    %53 = vector.shape_cast %52 : vector<64x64xf32> to vector<1x64x64xf32>
    %54 = vector.broadcast %53 : vector<1x64x64xf32> to vector<4x64x64xf32>
    %55 = arith.addf %50, %54 : vector<4x64x64xf32>
    %56 = arith.addf %55, %14 : vector<4x64x64xf32>
    %cst_19 = arith.constant dense<0xFF800000> : vector<4x64xf32>
    %57 = vector.multi_reduction <maximumf>, %56, %cst_19 [2] : vector<4x64x64xf32> to vector<4x64xf32>
    %58 = vector.shape_cast %57 : vector<4x64xf32> to vector<4x64x1xf32>
    %59 = vector.broadcast %58 : vector<4x64x1xf32> to vector<4x64x64xf32>
    %60 = arith.subf %56, %59 : vector<4x64x64xf32>
    %61 = math.exp %60 : vector<4x64x64xf32>
    %cst_20 = arith.constant dense<0.000000e+00> : vector<4x64xf32>
    %62 = vector.multi_reduction <add>, %61, %cst_20 [2] : vector<4x64x64xf32> to vector<4x64xf32>
    %63 = vector.shape_cast %62 : vector<4x64xf32> to vector<4x64x1xf32>
    %64 = tpu.reciprocal %63 {approx = true} : vector<4x64x1xf32> -> vector<4x64x1xf32>
    %65 = vector.broadcast %64 : vector<4x64x1xf32> to vector<4x64x64xf32>
    %66 = arith.mulf %61, %65 : vector<4x64x64xf32>
    %67 = arith.truncf %66 : vector<4x64x64xf32> to vector<4x64x64xbf16>
    "tpu.trace_start"() <{level = 10 : i32, message = "wnm,wmd->wnd"}> : () -> ()
    %cst_21 = arith.constant dense<0.000000e+00> : vector<4x64x8xf32>
    %68 = tpu.matmul %67, %47, %cst_21 {dimension_numbers = #tpu.dot_dimension_numbers<[2], [1], [1], [2], [0, 0, 0, 1, 1, 2], [0], [0]>} : vector<4x64x64xbf16>, vector<4x64x8xbf16>, vector<4x64x8xf32> -> vector<4x64x8xf32>
    "tpu.trace_stop"() : () -> ()
    %69 = vector.extract_strided_slice %12 {offsets = [0, 16], sizes = [256, 8], strides = [1, 1]} : vector<256x96xbf16> to vector<256x8xbf16>
    %70 = vector.shape_cast %69 : vector<256x8xbf16> to vector<4x64x8xbf16>
    %71 = vector.extract_strided_slice %12 {offsets = [0, 48], sizes = [256, 8], strides = [1, 1]} : vector<256x96xbf16> to vector<256x8xbf16>
    %72 = vector.shape_cast %71 : vector<256x8xbf16> to vector<4x64x8xbf16>
    %73 = vector.extract_strided_slice %12 {offsets = [0, 80], sizes = [256, 8], strides = [1, 1]} : vector<256x96xbf16> to vector<256x8xbf16>
    %74 = vector.shape_cast %73 : vector<256x8xbf16> to vector<4x64x8xbf16>
    "tpu.trace_start"() <{level = 10 : i32, message = "wnd,wmd->wnm"}> : () -> ()
    %cst_22 = arith.constant dense<0.000000e+00> : vector<4x64x64xf32>
    %75 = tpu.matmul %70, %72, %cst_22 {dimension_numbers = #tpu.dot_dimension_numbers<[2], [2], [1], [1], [0, 0, 0, 1, 1, 1], [0], [0]>} : vector<4x64x8xbf16>, vector<4x64x8xbf16>, vector<4x64x64xf32> -> vector<4x64x64xf32>
    "tpu.trace_stop"() : () -> ()
    %cst_23 = arith.constant 0.353553385 : f32
    %76 = vector.broadcast %cst_23 : f32 to vector<4x64x64xf32>
    %77 = arith.mulf %75, %76 : vector<4x64x64xf32>
    %78 = vector.extract_strided_slice %13 {offsets = [2, 0, 0], sizes = [1, 64, 64], strides = [1, 1, 1]} : vector<4x64x64xf32> to vector<1x64x64xf32>
    %79 = vector.shape_cast %78 : vector<1x64x64xf32> to vector<64x64xf32>
    %80 = vector.shape_cast %79 : vector<64x64xf32> to vector<1x64x64xf32>
    %81 = vector.broadcast %80 : vector<1x64x64xf32> to vector<4x64x64xf32>
    %82 = arith.addf %77, %81 : vector<4x64x64xf32>
    %83 = arith.addf %82, %14 : vector<4x64x64xf32>
    %cst_24 = arith.constant dense<0xFF800000> : vector<4x64xf32>
    %84 = vector.multi_reduction <maximumf>, %83, %cst_24 [2] : vector<4x64x64xf32> to vector<4x64xf32>
    %85 = vector.shape_cast %84 : vector<4x64xf32> to vector<4x64x1xf32>
    %86 = vector.broadcast %85 : vector<4x64x1xf32> to vector<4x64x64xf32>
    %87 = arith.subf %83, %86 : vector<4x64x64xf32>
    %88 = math.exp %87 : vector<4x64x64xf32>
    %cst_25 = arith.constant dense<0.000000e+00> : vector<4x64xf32>
    %89 = vector.multi_reduction <add>, %88, %cst_25 [2] : vector<4x64x64xf32> to vector<4x64xf32>
    %90 = vector.shape_cast %89 : vector<4x64xf32> to vector<4x64x1xf32>
    %91 = tpu.reciprocal %90 {approx = true} : vector<4x64x1xf32> -> vector<4x64x1xf32>
    %92 = vector.broadcast %91 : vector<4x64x1xf32> to vector<4x64x64xf32>
    %93 = arith.mulf %88, %92 : vector<4x64x64xf32>
    %94 = arith.truncf %93 : vector<4x64x64xf32> to vector<4x64x64xbf16>
    "tpu.trace_start"() <{level = 10 : i32, message = "wnm,wmd->wnd"}> : () -> ()
    %cst_26 = arith.constant dense<0.000000e+00> : vector<4x64x8xf32>
    %95 = tpu.matmul %94, %74, %cst_26 {dimension_numbers = #tpu.dot_dimension_numbers<[2], [1], [1], [2], [0, 0, 0, 1, 1, 2], [0], [0]>} : vector<4x64x64xbf16>, vector<4x64x8xbf16>, vector<4x64x8xf32> -> vector<4x64x8xf32>
    "tpu.trace_stop"() : () -> ()
    %96 = vector.extract_strided_slice %12 {offsets = [0, 24], sizes = [256, 8], strides = [1, 1]} : vector<256x96xbf16> to vector<256x8xbf16>
    %97 = vector.shape_cast %96 : vector<256x8xbf16> to vector<4x64x8xbf16>
    %98 = vector.extract_strided_slice %12 {offsets = [0, 56], sizes = [256, 8], strides = [1, 1]} : vector<256x96xbf16> to vector<256x8xbf16>
    %99 = vector.shape_cast %98 : vector<256x8xbf16> to vector<4x64x8xbf16>
    %100 = vector.extract_strided_slice %12 {offsets = [0, 88], sizes = [256, 8], strides = [1, 1]} : vector<256x96xbf16> to vector<256x8xbf16>
    %101 = vector.shape_cast %100 : vector<256x8xbf16> to vector<4x64x8xbf16>
    "tpu.trace_start"() <{level = 10 : i32, message = "wnd,wmd->wnm"}> : () -> ()
    %cst_27 = arith.constant dense<0.000000e+00> : vector<4x64x64xf32>
    %102 = tpu.matmul %97, %99, %cst_27 {dimension_numbers = #tpu.dot_dimension_numbers<[2], [2], [1], [1], [0, 0, 0, 1, 1, 1], [0], [0]>} : vector<4x64x8xbf16>, vector<4x64x8xbf16>, vector<4x64x64xf32> -> vector<4x64x64xf32>
    "tpu.trace_stop"() : () -> ()
    %cst_28 = arith.constant 0.353553385 : f32
    %103 = vector.broadcast %cst_28 : f32 to vector<4x64x64xf32>
    %104 = arith.mulf %102, %103 : vector<4x64x64xf32>
    %105 = vector.extract_strided_slice %13 {offsets = [3, 0, 0], sizes = [1, 64, 64], strides = [1, 1, 1]} : vector<4x64x64xf32> to vector<1x64x64xf32>
    %106 = vector.shape_cast %105 : vector<1x64x64xf32> to vector<64x64xf32>
    %107 = vector.shape_cast %106 : vector<64x64xf32> to vector<1x64x64xf32>
    %108 = vector.broadcast %107 : vector<1x64x64xf32> to vector<4x64x64xf32>
    %109 = arith.addf %104, %108 : vector<4x64x64xf32>
    %110 = arith.addf %109, %14 : vector<4x64x64xf32>
    %cst_29 = arith.constant dense<0xFF800000> : vector<4x64xf32>
    %111 = vector.multi_reduction <maximumf>, %110, %cst_29 [2] : vector<4x64x64xf32> to vector<4x64xf32>
    %112 = vector.shape_cast %111 : vector<4x64xf32> to vector<4x64x1xf32>
    %113 = vector.broadcast %112 : vector<4x64x1xf32> to vector<4x64x64xf32>
    %114 = arith.subf %110, %113 : vector<4x64x64xf32>
    %115 = math.exp %114 : vector<4x64x64xf32>
    %cst_30 = arith.constant dense<0.000000e+00> : vector<4x64xf32>
    %116 = vector.multi_reduction <add>, %115, %cst_30 [2] : vector<4x64x64xf32> to vector<4x64xf32>
    %117 = vector.shape_cast %116 : vector<4x64xf32> to vector<4x64x1xf32>
    %118 = tpu.reciprocal %117 {approx = true} : vector<4x64x1xf32> -> vector<4x64x1xf32>
    %119 = vector.broadcast %118 : vector<4x64x1xf32> to vector<4x64x64xf32>
    %120 = arith.mulf %115, %119 : vector<4x64x64xf32>
    %121 = arith.truncf %120 : vector<4x64x64xf32> to vector<4x64x64xbf16>
    "tpu.trace_start"() <{level = 10 : i32, message = "wnm,wmd->wnd"}> : () -> ()
    %cst_31 = arith.constant dense<0.000000e+00> : vector<4x64x8xf32>
    %122 = tpu.matmul %121, %101, %cst_31 {dimension_numbers = #tpu.dot_dimension_numbers<[2], [1], [1], [2], [0, 0, 0, 1, 1, 2], [0], [0]>} : vector<4x64x64xbf16>, vector<4x64x8xbf16>, vector<4x64x8xf32> -> vector<4x64x8xf32>
    "tpu.trace_stop"() : () -> ()
    %123 = tpu.concatenate %41, %68, %95, %122 in 2 : vector<4x64x8xf32>, vector<4x64x8xf32>, vector<4x64x8xf32>, vector<4x64x8xf32> -> vector<4x64x32xf32>
    %124 = vector.shape_cast %123 : vector<4x64x32xf32> to vector<2x2x8x8x32xf32>
    %125 = tpu.transpose %124, [0, 2, 1, 3, 4] : vector<2x2x8x8x32xf32> -> vector<2x8x2x8x32xf32>
    %126 = vector.shape_cast %125 : vector<2x8x2x8x32xf32> to vector<256x32xf32>
    %c0_32 = arith.constant 0 : index
    %c0_33 = arith.constant 0 : index
    %127 = vector.load %arg4[%c0_32, %c0_33] : memref<32x32xbf16, #tpu.memory_space<vmem>>, vector<32x32xbf16>
    %128 = tpu.transpose %126, [1, 0] : vector<256x32xf32> -> vector<32x256xf32>
    %129 = arith.truncf %128 : vector<32x256xf32> to vector<32x256xbf16>
    %cst_34 = arith.constant dense<0.000000e+00> : vector<32x256xf32>
    %130 = tpu.matmul %127, %129, %cst_34 {dimension_numbers = #tpu.dot_dimension_numbers<[1], [0], [0], [1], [0, 0, 1, 1], [], []>} : vector<32x32xbf16>, vector<32x256xbf16>, vector<32x256xf32> -> vector<32x256xf32>
    %c0_35 = arith.constant 0 : index
    %c0_36 = arith.constant 0 : index
    %131 = vector.load %arg5[%c0_35, %c0_36] : memref<32x1xf32, #tpu.memory_space<vmem>>, vector<32x1xf32>
    %132 = vector.broadcast %131 : vector<32x1xf32> to vector<32x256xf32>
    %133 = arith.addf %130, %132 : vector<32x256xf32>
    %c0_37 = arith.constant 0 : index
    %c0_38 = arith.constant 0 : index
    %c0_39 = arith.constant 0 : index
    %134 = vector.load %arg8[%c0_37, %c0_38, %c0_39] : memref<1x32x256xf32, #tpu.memory_space<vmem>>, vector<1x32x256xf32>
    %135 = vector.shape_cast %134 : vector<1x32x256xf32> to vector<32x256xf32>
    %136 = vector.shape_cast %133 : vector<32x256xf32> to vector<1x32x256xf32>
    tpu.vector_store %arg8[%c0_37, %c0_38, %c0_39], %136 {strides = array<i32>} : memref<1x32x256xf32, #tpu.memory_space<vmem>>, vector<1x32x256xf32>,
    return
  }
  func.func @transform_0(%arg0: i32) -> (i32, i32, i32) {
    %c0_i32 = arith.constant 0 : i32
    %c0_i32_0 = arith.constant 0 : i32
    %c0_i32_1 = arith.constant 0 : i32
    return %arg0, %c0_i32, %c0_i32_0 : i32, i32, i32
  }
  func.func @transform_1(%arg0: i32) -> (i32, i32) {
    %c0_i32 = arith.constant 0 : i32
    %c0_i32_0 = arith.constant 0 : i32
    %c0_i32_1 = arith.constant 0 : i32
    return %c0_i32, %c0_i32_0 : i32, i32
  }
  func.func @transform_2(%arg0: i32) -> (i32, i32) {
    %c0_i32 = arith.constant 0 : i32
    %c0_i32_0 = arith.constant 0 : i32
    %c0_i32_1 = arith.constant 0 : i32
    return %c0_i32, %c0_i32_0 : i32, i32
  }
  func.func @transform_3(%arg0: i32) -> (i32, i32) {
    %c0_i32 = arith.constant 0 : i32
    %c0_i32_0 = arith.constant 0 : i32
    %c0_i32_1 = arith.constant 0 : i32
    return %c0_i32, %c0_i32_0 : i32, i32
  }
  func.func @transform_4(%arg0: i32) -> (i32, i32) {
    %c0_i32 = arith.constant 0 : i32
    %c0_i32_0 = arith.constant 0 : i32
    %c0_i32_1 = arith.constant 0 : i32
    return %c0_i32, %c0_i32_0 : i32, i32
  }
  func.func @transform_5(%arg0: i32) -> (i32, i32, i32) {
    %c0_i32 = arith.constant 0 : i32
    %c0_i32_0 = arith.constant 0 : i32
    %c0_i32_1 = arith.constant 0 : i32
    %c0_i32_2 = arith.constant 0 : i32
    return %c0_i32, %c0_i32_0, %c0_i32_1 : i32, i32, i32
  }
  func.func @transform_6(%arg0: i32) -> (i32, i32, i32) {
    %c0_i32 = arith.constant 0 : i32
    %c0_i32_0 = arith.constant 0 : i32
    %c0_i32_1 = arith.constant 0 : i32
    %c0_i32_2 = arith.constant 0 : i32
    return %c0_i32, %c0_i32_0, %c0_i32_1 : i32, i32, i32
  }
  func.func @transform_7(%arg0: i32) -> (i32, i32, i32) {
    %c0_i32 = arith.constant 0 : i32
    %c0_i32_0 = arith.constant 0 : i32
    %c0_i32_1 = arith.constant 0 : i32
    return %arg0, %c0_i32, %c0_i32_0 : i32, i32, i32
  }
}

</mosaic_0001>

<llo_original>
// kernel: sub.8
$region0: #{sub.8}
  %s0 = inlined_call_operand.vmem [shape: s32[2,8,8], index: 0, kind: input, shape index: {}]
  %s1 = inlined_call_operand.vmem [shape: s32[2,64], index: 1, kind: output, shape index: {}]
  $region1: #{sub.8} parent=0
    #allocation0 [shape = 'u8[4096]{0}', space=vmem, size = 0x1000, scoped, tag = 'scoped mem for output reshape']
    %s2 = smov 3
    %v3 = vld [vmem:[%s0] ss:$8 sm:%s2]
    %vm4 = vcmask 64512
    %5 = vst.msk [vmem:[#allocation0] sm:$0x3] %vm4, %v3
    %s6 = scalar_lea.vmem %s0, 7
    %s7 = smov 3
    %v8 = vld [vmem:[%s6] ss:$8 sm:%s7]
    %9 = vrot.lane.b32.xlu0 %v8, 56
    %v10 = vpop.permute.xlu0 %9
    %vm11 = vcmask 523712
    %12 = vst.msk [vmem:[#allocation0] sm:$0x3] %vm11, %v10
    %s13 = scalar_lea.vmem %s0, 6
    %s14 = smov 3
    %v15 = vld [vmem:[%s13] ss:$8 sm:%s14]
    %16 = vrot.lane.b32.xlu0 %v15, 48
    %v17 = vpop.permute.xlu0 %16
    %vm18 = vcmask 458112
    %19 = vst.msk [vmem:[#allocation0] sm:$0x3] %vm18, %v17
    %s20 = scalar_lea.vmem %s0, 5
    %s21 = smov 3
    %v22 = vld [vmem:[%s20] ss:$8 sm:%s21]
    %23 = vrot.lane.b32.xlu0 %v22, 40
    %v24 = vpop.permute.xlu0 %23
    %vm25 = vcmask 392512
    %26 = vst.msk [vmem:[#allocation0] sm:$0x3] %vm25, %v24
    %s27 = scalar_lea.vmem %s0, 4
    %s28 = smov 3
    %v29 = vld [vmem:[%s27] ss:$8 sm:%s28]
    %30 = vrot.lane.b32.xlu0 %v29, 32
    %v31 = vpop.permute.xlu0 %30
    %vm32 = vcmask 326912
    %33 = vst.msk [vmem:[#allocation0] sm:$0x3] %vm32, %v31
    %s34 = scalar_lea.vmem %s0, 3
    %s35 = smov 3
    %v36 = vld [vmem:[%s34] ss:$8 sm:%s35]
    %37 = vrot.lane.b32.xlu0 %v36, 24
    %v38 = vpop.permute.xlu0 %37
    %vm39 = vcmask 261312
    %40 = vst.msk [vmem:[#allocation0] sm:$0x3] %vm39, %v38
    %s41 = scalar_lea.vmem %s0, 2
    %s42 = smov 3
    %v43 = vld [vmem:[%s41] ss:$8 sm:%s42]
    %44 = vrot.lane.b32.xlu0 %v43, 16
    %v45 = vpop.permute.xlu0 %44
    %vm46 = vcmask 195712
    %47 = vst.msk [vmem:[#allocation0] sm:$0x3] %vm46, %v45
    %s48 = scalar_lea.vmem %s0, 1
    %s49 = smov 3
    %v50 = vld [vmem:[%s48] ss:$8 sm:%s49]
    %51 = vrot.lane.b32.xlu0 %v50, 8
    %v52 = vpop.permute.xlu0 %51
    %vm53 = vcmask 130112
    %54 = vst.msk [vmem:[#allocation0] sm:$0x3] %vm53, %v52
    %s56 = sshllo.u32 0, 2
    %v58 = vld [vmem:[#allocation0] sm:%s56]
    %s59 = sshllo.u32 0, 2
    %60 = vst [vmem:[%s1] sm:%s59] %v58

// kernel: attention_forward.1
$region0: #{attention_forward.1}
  #allocation0 [shape = 'u32[]', space=smem, size = 0x4, offset = 0x4, fixed_abs, tag = 'smem constant byte address 0x4 - core index']
  #allocation1 [shape = 'u32[144,128]{1,0:T(1,128)}', space=vmem, size = 0x12000, scoped, tag = 'internal scratch']
  %s0 = inlined_call_operand.vmem [shape: f32[2,32,256], index: 0, kind: input, shape index: {}]
  %s1 = inlined_call_operand.vmem [shape: bf16[32,96], index: 1, kind: input, shape index: {}]
  %s2 = inlined_call_operand.vmem [shape: f32[1,96], index: 2, kind: input, shape index: {}]
  %s3 = inlined_call_operand.vmem [shape: bf16[32,32], index: 3, kind: input, shape index: {}]
  %s4 = inlined_call_operand.vmem [shape: f32[32,1], index: 4, kind: input, shape index: {}]
  %s5 = inlined_call_operand.vmem [shape: f32[4,64,64], index: 5, kind: input, shape index: {}]
  %s6 = inlined_call_operand.vmem [shape: f32[4,64,64], index: 6, kind: input, shape index: {}]
  %s7 = inlined_call_operand.vmem [shape: f32[2,32,256], index: 7, kind: output, shape index: {}]
  %s8 = sld [smem:[#allocation0]]
  $region61: #{attention_forward.1} parent=0
    _
  %s10 = ssub.s32 1, %s8
  %s11 = scalar_select 0, %s10, %s8
  loop: start=0, step=1, limit=4
  $region2: #{attention_forward.1} parent=0 // loop_pre_header
    _
  $region3: #{attention_forward.1} parent=0 // loop_header
    %s13 = sphi 0, %s17
    %p14 = scmp.ge.s32.totalorder %s13, 4
    %s23 = sphi 0, %s25
    %s26 = sphi 0, %s23
    %s27 = sphi 0, %s26
    %s43 = sphi 0, %s27
    %s47 = sphi 0, %s47
    %s49 = sphi 0, %s47
    %s50 = sphi 0, %s49
    %s64 = sphi 0, %s50
    %s68 = sphi 0, %s68
    %s70 = sphi 0, %s68
    %s71 = sphi 0, %s70
    %s85 = sphi 0, %s71
    %s89 = sphi 0, %s89
    %s91 = sphi 0, %s89
    %s92 = sphi 0, %s91
    %s106 = sphi 0, %s92
    %s110 = sphi 0, %s110
    %s112 = sphi 0, %s110
    %s113 = sphi 0, %s112
    %s127 = sphi 0, %s113
    %s131 = sphi 0, %s131
    %s133 = sphi 0, %s131
    %s134 = sphi 0, %s133
    %s148 = sphi 0, %s134
    %s152 = sphi 0, %s152
    %s154 = sphi 0, %s152
    %s155 = sphi 0, %s154
    %s169 = sphi 0, %s155
    %s175 = sphi 0, %s177
    %s178 = sphi 0, %s175
    %s179 = sphi 0, %s178
    %s195 = sphi 0, %s179
  $region4: #{attention_forward.1} parent=0 // loop_header_branch
    %16 = sbr.rel (%p14) target = $region8
  $region5: #{attention_forward.1} parent=0 // loop_body
    %s18 = ssub.s32 %s13, 1
    %s19 = ssub.s32 %s13, 2
    %s20 = sadd.s32 %s13, 1
    %s21 = ssub.s32 %s13, %s20
    %p22 = scmp.eq.s32.totalorder %s21, 0
    %s24 = sadd.s32 %s23, 1
    %s25 = scalar_select %p22, %s23, %s24
    %p28 = pneg %p22
    %p29 = scmp.eq.s32.totalorder %s13, 1
    %p30 = por %p28, %p29
    %p31 = scmp.ne.s32.totalorder %s23, %s26
    %p32 = scmp.eq.s32.totalorder %s13, 0
    %p33 = por %p31, %p32
    %p34 = scmp.ne.s32.totalorder %s23, %s26
    %p35 = scmp.eq.s32.totalorder %s18, 1
    %p36 = por %p34, %p35
    %p37 = scmp.ne.s32.totalorder %s26, %s27
    %p38 = scmp.eq.s32.totalorder %s18, 0
    %p39 = por %p37, %p38
    %p40 = scmp.ne.s32.totalorder %s26, %s27
    %p41 = scmp.eq.s32.totalorder %s19, 1
    %p42 = por %p40, %p41
    %p44 = scmp.ne.s32.totalorder %s27, %s43
    %p45 = scmp.eq.s32.totalorder %s19, 0
    %p46 = por %p44, %p45
    %s48 = sadd.s32 %s47, 1
    %p51 = scmp.eq.s32.totalorder %s13, 1
    %p52 = scmp.ne.s32.totalorder %s47, %s49
    %p53 = scmp.eq.s32.totalorder %s13, 0
    %p54 = por %p52, %p53
    %p55 = scmp.ne.s32.totalorder %s47, %s49
    %p56 = scmp.eq.s32.totalorder %s18, 1
    %p57 = por %p55, %p56
    %p58 = scmp.ne.s32.totalorder %s49, %s50
    %p59 = scmp.eq.s32.totalorder %s18, 0
    %p60 = por %p58, %p59
    %p61 = scmp.ne.s32.totalorder %s49, %s50
    %p62 = scmp.eq.s32.totalorder %s19, 1
    %p63 = por %p61, %p62
    %p65 = scmp.ne.s32.totalorder %s50, %s64
    %p66 = scmp.eq.s32.totalorder %s19, 0
    %p67 = por %p65, %p66
    %s69 = sadd.s32 %s68, 1
    %p72 = scmp.eq.s32.totalorder %s13, 1
    %p73 = scmp.ne.s32.totalorder %s68, %s70
    %p74 = scmp.eq.s32.totalorder %s13, 0
    %p75 = por %p73, %p74
    %p76 = scmp.ne.s32.totalorder %s68, %s70
    %p77 = scmp.eq.s32.totalorder %s18, 1
    %p78 = por %p76, %p77
    %p79 = scmp.ne.s32.totalorder %s70, %s71
    %p80 = scmp.eq.s32.totalorder %s18, 0
    %p81 = por %p79, %p80
    %p82 = scmp.ne.s32.totalorder %s70, %s71
    %p83 = scmp.eq.s32.totalorder %s19, 1
    %p84 = por %p82, %p83
    %p86 = scmp.ne.s32.totalorder %s71, %s85
    %p87 = scmp.eq.s32.totalorder %s19, 0
    %p88 = por %p86, %p87
    %s90 = sadd.s32 %s89, 1
    %p93 = scmp.eq.s32.totalorder %s13, 1
    %p94 = scmp.ne.s32.totalorder %s89, %s91
    %p95 = scmp.eq.s32.totalorder %s13, 0
    %p96 = por %p94, %p95
    %p97 = scmp.ne.s32.totalorder %s89, %s91
    %p98 = scmp.eq.s32.totalorder %s18, 1
    %p99 = por %p97, %p98
    %p100 = scmp.ne.s32.totalorder %s91, %s92
    %p101 = scmp.eq.s32.totalorder %s18, 0
    %p102 = por %p100, %p101
    %p103 = scmp.ne.s32.totalorder %s91, %s92
    %p104 = scmp.eq.s32.totalorder %s19, 1
    %p105 = por %p103, %p104
    %p107 = scmp.ne.s32.totalorder %s92, %s106
    %p108 = scmp.eq.s32.totalorder %s19, 0
    %p109 = por %p107, %p108
    %s111 = sadd.s32 %s110, 1
    %p114 = scmp.eq.s32.totalorder %s13, 1
    %p115 = scmp.ne.s32.totalorder %s110, %s112
    %p116 = scmp.eq.s32.totalorder %s13, 0
    %p117 = por %p115, %p116
    %p118 = scmp.ne.s32.totalorder %s110, %s112
    %p119 = scmp.eq.s32.totalorder %s18, 1
    %p120 = por %p118, %p119
    %p121 = scmp.ne.s32.totalorder %s112, %s113
    %p122 = scmp.eq.s32.totalorder %s18, 0
    %p123 = por %p121, %p122
    %p124 = scmp.ne.s32.totalorder %s112, %s113
    %p125 = scmp.eq.s32.totalorder %s19, 1
    %p126 = por %p124, %p125
    %p128 = scmp.ne.s32.totalorder %s113, %s127
    %p129 = scmp.eq.s32.totalorder %s19, 0
    %p130 = por %p128, %p129
    %s132 = sadd.s32 %s131, 1
    %p135 = scmp.eq.s32.totalorder %s13, 1
    %p136 = scmp.ne.s32.totalorder %s131, %s133
    %p137 = scmp.eq.s32.totalorder %s13, 0
    %p138 = por %p136, %p137
    %p139 = scmp.ne.s32.totalorder %s131, %s133
    %p140 = scmp.eq.s32.totalorder %s18, 1
    %p141 = por %p139, %p140
    %p142 = scmp.ne.s32.totalorder %s133, %s134
    %p143 = scmp.eq.s32.totalorder %s18, 0
    %p144 = por %p142, %p143
    %p145 = scmp.ne.s32.totalorder %s133, %s134
    %p146 = scmp.eq.s32.totalorder %s19, 1
    %p147 = por %p145, %p146
    %p149 = scmp.ne.s32.totalorder %s134, %s148
    %p150 = scmp.eq.s32.totalorder %s19, 0
    %p151 = por %p149, %p150
    %s153 = sadd.s32 %s152, 1
    %p156 = scmp.eq.s32.totalorder %s13, 1
    %p157 = scmp.ne.s32.totalorder %s152, %s154
    %p158 = scmp.eq.s32.totalorder %s13, 0
    %p159 = por %p157, %p158
    %p160 = scmp.ne.s32.totalorder %s152, %s154
    %p161 = scmp.eq.s32.totalorder %s18, 1
    %p162 = por %p160, %p161
    %p163 = scmp.ne.s32.totalorder %s154, %s155
    %p164 = scmp.eq.s32.totalorder %s18, 0
    %p165 = por %p163, %p164
    %p166 = scmp.ne.s32.totalorder %s154, %s155
    %p167 = scmp.eq.s32.totalorder %s19, 1
    %p168 = por %p166, %p167
    %p170 = scmp.ne.s32.totalorder %s155, %s169
    %p171 = scmp.eq.s32.totalorder %s19, 0
    %p172 = por %p170, %p171
    %s173 = ssub.s32 %s13, %s20
    %p174 = scmp.eq.s32.totalorder %s173, 0
    %s176 = sadd.s32 %s175, 1
    %s177 = scalar_select %p174, %s175, %s176
    %p180 = pneg %p174
    %p181 = scmp.eq.s32.totalorder %s13, 1
    %p182 = por %p180, %p181
    %p183 = scmp.ne.s32.totalorder %s175, %s178
    %p184 = scmp.eq.s32.totalorder %s13, 0
    %p185 = por %p183, %p184
    %p186 = scmp.ne.s32.totalorder %s175, %s178
    %p187 = scmp.eq.s32.totalorder %s18, 1
    %p188 = por %p186, %p187
    %p189 = scmp.ne.s32.totalorder %s178, %s179
    %p190 = scmp.eq.s32.totalorder %s18, 0
    %p191 = por %p189, %p190
    %p192 = scmp.ne.s32.totalorder %s178, %s179
    %p193 = scmp.eq.s32.totalorder %s19, 1
    %p194 = por %p192, %p193
    %p196 = scmp.ne.s32.totalorder %s179, %s195
    %p197 = scmp.eq.s32.totalorder %s19, 0
    %p198 = por %p196, %p197
    %p199 = scmp.le.s32.totalorder 1, %s13
    %p200 = scmp.lt.s32.totalorder %s13, 3
    %p201 = pnand %p199, %p200
    %p202 = pneg %p201
    // Predicated region
    $region9: #{attention_forward.1} parent=5 // pred_check
      _
    $region10: #{attention_forward.1} parent=5 // pred_check_branch
      %204 = sbr.rel (%p201) target = $region12
    $region11: #{attention_forward.1} parent=5 // pred_region
      %s205 = ssub.s32 %s13, 1
      // Predicated region
      $region13: #{attention_forward.1} parent=11 // pred_check
        %p206 = pneg %p60
      $region14: #{attention_forward.1} parent=11 // pred_check_branch
        %208 = sbr.rel (%p206) target = $region16
      $region15: #{attention_forward.1} parent=11 // pred_region
        _
      $region16: #{attention_forward.1} parent=11 // pred_fallthru
        _
      // Predicated region
      $region17: #{attention_forward.1} parent=11 // pred_check
        %p209 = pneg %p81
      $region18: #{attention_forward.1} parent=11 // pred_check_branch
        %211 = sbr.rel (%p209) target = $region20
      $region19: #{attention_forward.1} parent=11 // pred_region
        _
      $region20: #{attention_forward.1} parent=11 // pred_fallthru
        _
      // Predicated region
      $region21: #{attention_forward.1} parent=11 // pred_check
        %p212 = pneg %p102
      $region22: #{attention_forward.1} parent=11 // pred_check_branch
        %214 = sbr.rel (%p212) target = $region24
      $region23: #{attention_forward.1} parent=11 // pred_region
        _
      $region24: #{attention_forward.1} parent=11 // pred_fallthru
        _
      // Predicated region
      $region25: #{attention_forward.1} parent=11 // pred_check
        %p215 = pneg %p123
      $region26: #{attention_forward.1} parent=11 // pred_check_branch
        %217 = sbr.rel (%p215) target = $region28
      $region27: #{attention_forward.1} parent=11 // pred_region
        _
      $region28: #{attention_forward.1} parent=11 // pred_fallthru
        _
      // Predicated region
      $region29: #{attention_forward.1} parent=11 // pred_check
        %p218 = pneg %p144
      $region30: #{attention_forward.1} parent=11 // pred_check_branch
        %220 = sbr.rel (%p218) target = $region32
      $region31: #{attention_forward.1} parent=11 // pred_region
        _
      $region32: #{attention_forward.1} parent=11 // pred_fallthru
        _
      // Predicated region
      $region33: #{attention_forward.1} parent=11 // pred_check
        %p221 = pneg %p165
      $region34: #{attention_forward.1} parent=11 // pred_check_branch
        %223 = sbr.rel (%p221) target = $region36
      $region35: #{attention_forward.1} parent=11 // pred_region
        _
      $region36: #{attention_forward.1} parent=11 // pred_fallthru
        _
    $region12: #{attention_forward.1} parent=5 // pred_fallthru
      _
    %p224 = scmp.lt.s32.totalorder %s13, 2
    // Predicated region
    $region37: #{attention_forward.1} parent=5 // pred_check
      %p225 = pneg %p224
    $region38: #{attention_forward.1} parent=5 // pred_check_branch
      %227 = sbr.rel (%p225) target = $region40
    $region39: #{attention_forward.1} parent=5 // pred_region
      // Predicated region
      $region41: #{attention_forward.1} parent=39 // pred_check
        %p228 = pneg %p33
      $region42: #{attention_forward.1} parent=39 // pred_check_branch
        %230 = sbr.rel (%p228) target = $region44
      $region43: #{attention_forward.1} parent=39 // pred_region
        %p231 = scmp.lt.s32.totalorder %s13, 1
        %s232 = scalar_select %p231, %s13, 1
        %s233 = smul.addr %s232, 8
        %s234 = smul.addr %s233, 8
        %s235 = scalar_lea.vmem %s0, %s234
      $region44: #{attention_forward.1} parent=39 // pred_fallthru
        _
    $region40: #{attention_forward.1} parent=5 // pred_fallthru
      _
    %p236 = scmp.le.s32.totalorder 1, %s13
    %p237 = scmp.lt.s32.totalorder %s13, 3
    %p238 = pnand %p236, %p237
    %p239 = pneg %p238
    // Predicated region
    $region45: #{attention_forward.1} parent=5 // pred_check
      _
    $region46: #{attention_forward.1} parent=5 // pred_check_branch
      %241 = sbr.rel (%p238) target = $region48
    $region47: #{attention_forward.1} parent=5 // pred_region
      %s242 = ssub.s32 %s13, 1
      %p243 = scmp.lt.s32.totalorder %s18, 1
      %s244 = scalar_select %p243, %s18, 1
      %s245 = smul.addr %s244, 8
      %s246 = smul.addr %s245, 8
      %s247 = scalar_lea.vmem %s0, %s246
      %p248 = pneg %p39
      %p249 = pneg %p36
      %p250 = pneg %p60
      %p251 = pneg %p57
      %p252 = pneg %p81
      %p253 = pneg %p78
      %p254 = pneg %p102
      %p255 = pneg %p99
      %p256 = pneg %p123
      %p257 = pneg %p120
      %p258 = pneg %p144
      %p259 = pneg %p141
      %p260 = pneg %p165
      %p261 = pneg %p162
      %p262 = pneg %p191
      %p263 = pneg %p188
      %p264 = scmp.lt.s32.totalorder %s18, 1
      %s265 = scalar_select %p264, %s18, 1
      %s266 = smul.addr %s265, 8
      %s267 = smul.addr %s266, 8
      %s268 = scalar_lea.vmem %s7, %s267
      %p269 = scmp.lt.s32.totalorder %s18, 1
      %s270 = scalar_select %p269, %s18, 1
      %s271 = smul.addr %s270, 8
      %s272 = smul.addr %s271, 8
      %s273 = scalar_lea.vmem %s0, %s272
      %p274 = scmp.lt.s32.totalorder %s18, 1
      %s275 = scalar_select %p274, %s18, 1
      %s276 = smul.addr %s275, 8
      %s277 = smul.addr %s276, 8
      %s278 = scalar_lea.vmem %s7, %s277
      %v280 = vld [vmem:[%s273] sm:$0xff]
      %v281 = vld [vmem:[%s273 + $0x8] sm:$0xff]
      %v282 = vld [vmem:[%s273 + $0x10] sm:$0xff]
      %v283 = vld [vmem:[%s273 + $0x18] sm:$0xff]
      %v284 = vld [vmem:[%s273 + $0x20] sm:$0xff]
      %v285 = vld [vmem:[%s273 + $0x28] sm:$0xff]
      %v286 = vld [vmem:[%s273 + $0x30] sm:$0xff]
      %v287 = vld [vmem:[%s273 + $0x38] sm:$0xff]
      %288 = vxpose.xlu0.b32.start [1/16] %v280, 128
      %289 = vxpose.xlu0.b32.cont [2/16] %v282, 128
      %290 = vxpose.xlu0.b32.cont [3/16] %v284, 128
      %291 = vxpose.xlu0.b32.cont [4/16] %v286, 128
      %292 = vxpose.xlu0.b32.cont [5/16] 0.0, 128
      %293 = vxpose.xlu0.b32.cont [6/16] 0.0, 128
      %294 = vxpose.xlu0.b32.cont [7/16] 0.0, 128
      %295 = vxpose.xlu0.b32.cont [8/16] 0.0, 128
      %296 = vxpose.xlu0.b32.cont [9/16] 0.0, 128
      %297 = vxpose.xlu0.b32.cont [10/16] 0.0, 128
      %298 = vxpose.xlu0.b32.cont [11/16] 0.0, 128
      %299 = vxpose.xlu0.b32.cont [12/16] 0.0, 128
      %300 = vxpose.xlu0.b32.cont [13/16] 0.0, 128
      %301 = vxpose.xlu0.b32.cont [14/16] 0.0, 128
      %302 = vxpose.xlu0.b32.cont [15/16] 0.0, 128
      %303 = vxpose.xlu0.b32.end [16/16] 0.0, 128
      %v304 = vpop.trf.xlu0
      %v305 = vpop.trf.xlu0
      %v306 = vpop.trf.xlu0
      %v307 = vpop.trf.xlu0
      %v308 = vpop.trf.xlu0
      %v309 = vpop.trf.xlu0
      %v310 = vpop.trf.xlu0
      %v311 = vpop.trf.xlu0
      %v312 = vpop.trf.xlu0
      %v313 = vpop.trf.xlu0
      %v314 = vpop.trf.xlu0
      %v315 = vpop.trf.xlu0
      %v316 = vpop.trf.xlu0
      %v317 = vpop.trf.xlu0
      %v318 = vpop.trf.xlu0
      %v319 = vpop.trf.xlu0
      %320 = vxpose.xlu0.b32.start [1/16] %v281, 128
      %321 = vxpose.xlu0.b32.cont [2/16] %v283, 128
      %322 = vxpose.xlu0.b32.cont [3/16] %v285, 128
      %323 = vxpose.xlu0.b32.cont [4/16] %v287, 128
      %324 = vxpose.xlu0.b32.cont [5/16] 0.0, 128
      %325 = vxpose.xlu0.b32.cont [6/16] 0.0, 128
      %326 = vxpose.xlu0.b32.cont [7/16] 0.0, 128
      %327 = vxpose.xlu0.b32.cont [8/16] 0.0, 128
      %328 = vxpose.xlu0.b32.cont [9/16] 0.0, 128
      %329 = vxpose.xlu0.b32.cont [10/16] 0.0, 128
      %330 = vxpose.xlu0.b32.cont [11/16] 0.0, 128
      %331 = vxpose.xlu0.b32.cont [12/16] 0.0, 128
      %332 = vxpose.xlu0.b32.cont [13/16] 0.0, 128
      %333 = vxpose.xlu0.b32.cont [14/16] 0.0, 128
      %334 = vxpose.xlu0.b32.cont [15/16] 0.0, 128
      %335 = vxpose.xlu0.b32.end [16/16] 0.0, 128
      %v336 = vpop.trf.xlu0
      %v337 = vpop.trf.xlu0
      %v338 = vpop.trf.xlu0
      %v339 = vpop.trf.xlu0
      %v340 = vpop.trf.xlu0
      %v341 = vpop.trf.xlu0
      %v342 = vpop.trf.xlu0
      %v343 = vpop.trf.xlu0
      %v344 = vpop.trf.xlu0
      %v345 = vpop.trf.xlu0
      %v346 = vpop.trf.xlu0
      %v347 = vpop.trf.xlu0
      %v348 = vpop.trf.xlu0
      %v349 = vpop.trf.xlu0
      %v350 = vpop.trf.xlu0
      %v351 = vpop.trf.xlu0
      %v352 = vpack.c.bf16 %v305, %v304
      %v353 = vpack.c.bf16 %v307, %v306
      %v354 = vpack.c.bf16 %v309, %v308
      %v355 = vpack.c.bf16 %v311, %v310
      %v356 = vpack.c.bf16 %v313, %v312
      %v357 = vpack.c.bf16 %v315, %v314
      %v358 = vpack.c.bf16 %v317, %v316
      %v359 = vpack.c.bf16 %v319, %v318
      %v360 = vpack.c.bf16 %v337, %v336
      %v361 = vpack.c.bf16 %v339, %v338
      %v362 = vpack.c.bf16 %v341, %v340
      %v363 = vpack.c.bf16 %v343, %v342
      %v364 = vpack.c.bf16 %v345, %v344
      %v365 = vpack.c.bf16 %v347, %v346
      %v366 = vpack.c.bf16 %v349, %v348
      %v367 = vpack.c.bf16 %v351, %v350
      %v368 = vld [vmem:[%s1] sm:$0xf]
      %v369 = vld [vmem:[%s1 + $0x4] sm:$0xf]
      %v370 = vld [vmem:[%s1 + $0x8] sm:$0xf]
      %v371 = vld [vmem:[%s1 + $0xc] sm:$0xf]
      %v372 = vld [vmem:[%s2] sm:$0x1]
      %v374 = vlaneseq
      %v375 = vshrl.u32 %v374, 7
      %v376 = vsub.s32 0, %v375
      %v377 = vrot.slane %v372, %v376
      %v383 = vunpack.c.l.b16 %v368
      %v384 = vunpack.c.l.b16 %v369
      %v385 = vunpack.c.l.b16 %v370
      %v386 = vunpack.c.l.b16 %v371
      %v387 = vpack.c.b16 %v384, %v383
      %v388 = vpack.c.b16 %v386, %v385
      %vm391 = vcmask 261120
      %v393 = vsel %vm391, %v352, 0
      %v396 = vsel %vm391, %v353, 0
      %v399 = vsel %vm391, %v354, 0
      %v402 = vsel %vm391, %v355, 0
      %v405 = vsel %vm391, %v356, 0
      %v408 = vsel %vm391, %v357, 0
      %v411 = vsel %vm391, %v358, 0
      %v414 = vsel %vm391, %v359, 0
      %v417 = vsel %vm391, %v360, 0
      %v420 = vsel %vm391, %v361, 0
      %v423 = vsel %vm391, %v362, 0
      %v426 = vsel %vm391, %v363, 0
      %v429 = vsel %vm391, %v364, 0
      %v432 = vsel %vm391, %v365, 0
      %v435 = vsel %vm391, %v366, 0
      %v438 = vsel %vm391, %v367, 0
      %440 = vmatprep.subr.bf16.mxu0 0
      %441 = vmatpush1.bf16.msra.mxu0 %v387
      %442 = vmatprep.subr.bf16.mxu0 0
      %443 = vmatpush1.bf16.msra.mxu0 %v388
      %444 = vmatprep.subr.bf16.mxu0 0
      %445 = vmatpush1.bf16.msra.mxu0 0
      %446 = vmatprep.subr.bf16.mxu0 0
      %447 = vmatpush1.bf16.msra.mxu0 0
      %448 = vmatprep.subr.bf16.mxu0 0
      %449 = vmatpush1.bf16.msra.mxu0 0
      %450 = vmatprep.subr.bf16.mxu0 0
      %451 = vmatpush1.bf16.msra.mxu0 0
      %452 = vmatprep.subr.bf16.mxu0 0
      %453 = vmatpush1.bf16.msra.mxu0 0
      %454 = vmatprep.subr.bf16.mxu0 0
      %455 = vmatpush1.bf16.msra.mxu0 0
      %456 = vmatprep.subr.bf16.mxu0 0
      %457 = vmatpush1.bf16.msra.mxu0 0
      %458 = vmatprep.subr.bf16.mxu0 0
      %459 = vmatpush1.bf16.msra.mxu0 0
      %460 = vmatprep.subr.bf16.mxu0 0
      %461 = vmatpush1.bf16.msra.mxu0 0
      %462 = vmatprep.subr.bf16.mxu0 0
      %463 = vmatpush1.bf16.msra.mxu0 0
      %464 = vmatprep.subr.bf16.mxu0 0
      %465 = vmatpush1.bf16.msra.mxu0 0
      %466 = vmatprep.subr.bf16.mxu0 0
      %467 = vmatpush1.bf16.msra.mxu0 0
      %468 = vmatprep.subr.bf16.mxu0 0
      %469 = vmatpush1.bf16.msra.mxu0 0
      %470 = vmatprep.subr.bf16.mxu0 0
      %471 = vmatpush1.bf16.msra.mxu0 0
      %472 = vmatprep.mubr.bf16.mxu0 0
      %473 = vmatmul.mubr.bf16.gmra.mrb[0].mxu0 %v393
      %v474 = vpop.f32.mrb[0].mxu0
      %v475 = vadd.f32 %v377, %v474
      %v476 = vpop.f32.mrb[0].mxu0
      %v477 = vpop.f32.mrb[0].mxu0
      %v478 = vadd.f32 %v377, %v477
      %v479 = vpop.f32.mrb[0].mxu0
      %480 = vmatprep.mubr.bf16.mxu0 0
      %481 = vmatmul.mubr.bf16.gmra.mrb[0].mxu0 %v396
      %v482 = vpop.f32.mrb[0].mxu0
      %v483 = vadd.f32 %v377, %v482
      %v484 = vpop.f32.mrb[0].mxu0
      %v485 = vpop.f32.mrb[0].mxu0
      %v486 = vadd.f32 %v377, %v485
      %v487 = vpop.f32.mrb[0].mxu0
      %488 = vmatprep.mubr.bf16.mxu0 0
      %489 = vmatmul.mubr.bf16.gmra.mrb[0].mxu0 %v399
      %v490 = vpop.f32.mrb[0].mxu0
      %v491 = vadd.f32 %v377, %v490
      %v492 = vpop.f32.mrb[0].mxu0
      %v493 = vpop.f32.mrb[0].mxu0
      %v494 = vadd.f32 %v377, %v493
      %v495 = vpop.f32.mrb[0].mxu0
      %496 = vmatprep.mubr.bf16.mxu0 0
      %497 = vmatmul.mubr.bf16.gmra.mrb[0].mxu0 %v402
      %v498 = vpop.f32.mrb[0].mxu0
      %v499 = vadd.f32 %v377, %v498
      %v500 = vpop.f32.mrb[0].mxu0
      %v501 = vpop.f32.mrb[0].mxu0
      %v502 = vadd.f32 %v377, %v501
      %v503 = vpop.f32.mrb[0].mxu0
      %504 = vmatprep.mubr.bf16.mxu0 0
      %505 = vmatmul.mubr.bf16.gmra.mrb[0].mxu0 %v405
      %v506 = vpop.f32.mrb[0].mxu0
      %v507 = vadd.f32 %v377, %v506
      %v508 = vpop.f32.mrb[0].mxu0
      %v509 = vpop.f32.mrb[0].mxu0
      %v510 = vadd.f32 %v377, %v509
      %v511 = vpop.f32.mrb[0].mxu0
      %512 = vmatprep.mubr.bf16.mxu0 0
      %513 = vmatmul.mubr.bf16.gmra.mrb[0].mxu0 %v408
      %v514 = vpop.f32.mrb[0].mxu0
      %v515 = vadd.f32 %v377, %v514
      %v516 = vpop.f32.mrb[0].mxu0
      %v517 = vpop.f32.mrb[0].mxu0
      %v518 = vadd.f32 %v377, %v517
      %v519 = vpop.f32.mrb[0].mxu0
      %520 = vmatprep.mubr.bf16.mxu0 0
      %521 = vmatmul.mubr.bf16.gmra.mrb[0].mxu0 %v411
      %v522 = vpop.f32.mrb[0].mxu0
      %v523 = vadd.f32 %v377, %v522
      %v524 = vpop.f32.mrb[0].mxu0
      %v525 = vpop.f32.mrb[0].mxu0
      %v526 = vadd.f32 %v377, %v525
      %v527 = vpop.f32.mrb[0].mxu0
      %528 = vmatprep.mubr.bf16.mxu0 0
      %529 = vmatmul.mubr.bf16.gmra.mrb[0].mxu0 %v414
      %v530 = vpop.f32.mrb[0].mxu0
      %v531 = vadd.f32 %v377, %v530
      %v532 = vpop.f32.mrb[0].mxu0
      %v533 = vpop.f32.mrb[0].mxu0
      %v534 = vadd.f32 %v377, %v533
      %v535 = vpop.f32.mrb[0].mxu0
      %536 = vmatprep.mubr.bf16.mxu0 0
      %537 = vmatmul.mubr.bf16.gmra.mrb[0].mxu0 %v417
      %v538 = vpop.f32.mrb[0].mxu0
      %v539 = vadd.f32 %v377, %v538
      %v540 = vpop.f32.mrb[0].mxu0
      %v541 = vpop.f32.mrb[0].mxu0
      %v542 = vadd.f32 %v377, %v541
      %v543 = vpop.f32.mrb[0].mxu0
      %544 = vmatprep.mubr.bf16.mxu0 0
      %545 = vmatmul.mubr.bf16.gmra.mrb[0].mxu0 %v420
      %v546 = vpop.f32.mrb[0].mxu0
      %v547 = vadd.f32 %v377, %v546
      %v548 = vpop.f32.mrb[0].mxu0
      %v549 = vpop.f32.mrb[0].mxu0
      %v550 = vadd.f32 %v377, %v549
      %v551 = vpop.f32.mrb[0].mxu0
      %552 = vmatprep.mubr.bf16.mxu0 0
      %553 = vmatmul.mubr.bf16.gmra.mrb[0].mxu0 %v423
      %v554 = vpop.f32.mrb[0].mxu0
      %v555 = vadd.f32 %v377, %v554
      %v556 = vpop.f32.mrb[0].mxu0
      %v557 = vpop.f32.mrb[0].mxu0
      %v558 = vadd.f32 %v377, %v557
      %v559 = vpop.f32.mrb[0].mxu0
      %560 = vmatprep.mubr.bf16.mxu0 0
      %561 = vmatmul.mubr.bf16.gmra.mrb[0].mxu0 %v426
      %v562 = vpop.f32.mrb[0].mxu0
      %v563 = vadd.f32 %v377, %v562
      %v564 = vpop.f32.mrb[0].mxu0
      %v565 = vpop.f32.mrb[0].mxu0
      %v566 = vadd.f32 %v377, %v565
      %v567 = vpop.f32.mrb[0].mxu0
      %568 = vmatprep.mubr.bf16.mxu0 0
      %569 = vmatmul.mubr.bf16.gmra.mrb[0].mxu0 %v429
      %v570 = vpop.f32.mrb[0].mxu0
      %v571 = vadd.f32 %v377, %v570
      %v572 = vpop.f32.mrb[0].mxu0
      %v573 = vpop.f32.mrb[0].mxu0
      %v574 = vadd.f32 %v377, %v573
      %v575 = vpop.f32.mrb[0].mxu0
      %576 = vmatprep.mubr.bf16.mxu0 0
      %577 = vmatmul.mubr.bf16.gmra.mrb[0].mxu0 %v432
      %v578 = vpop.f32.mrb[0].mxu0
      %v579 = vadd.f32 %v377, %v578
      %v580 = vpop.f32.mrb[0].mxu0
      %v581 = vpop.f32.mrb[0].mxu0
      %v582 = vadd.f32 %v377, %v581
      %v583 = vpop.f32.mrb[0].mxu0
      %584 = vmatprep.mubr.bf16.mxu0 0
      %585 = vmatmul.mubr.bf16.gmra.mrb[0].mxu0 %v435
      %v586 = vpop.f32.mrb[0].mxu0
      %v587 = vadd.f32 %v377, %v586
      %v588 = vpop.f32.mrb[0].mxu0
      %v589 = vpop.f32.mrb[0].mxu0
      %v590 = vadd.f32 %v377, %v589
      %v591 = vpop.f32.mrb[0].mxu0
      %592 = vmatprep.mubr.bf16.mxu0 0
      %593 = vmatmul.mubr.bf16.gmra.mrb[0].mxu0 %v438
      %v594 = vpop.f32.mrb[0].mxu0
      %v595 = vadd.f32 %v377, %v594
      %v596 = vpop.f32.mrb[0].mxu0
      %v597 = vpop.f32.mrb[0].mxu0
      %v598 = vadd.f32 %v377, %v597
      %v599 = vpop.f32.mrb[0].mxu0
      %600 = vdwg.mxu0
      %v601 = vpack.c.bf16 %v483, %v475
      %v602 = vpack.c.bf16 %v499, %v491
      %v603 = vpack.c.bf16 %v515, %v507
      %v604 = vpack.c.bf16 %v531, %v523
      %v605 = vpack.c.bf16 %v486, %v478
      %v606 = vpack.c.bf16 %v502, %v494
      %v607 = vpack.c.bf16 %v518, %v510
      %v608 = vpack.c.bf16 %v534, %v526
      %v609 = vpack.c.bf16 %v547, %v539
      %v610 = vpack.c.bf16 %v563, %v555
      %v611 = vpack.c.bf16 %v579, %v571
      %v612 = vpack.c.bf16 %v595, %v587
      %v613 = vpack.c.bf16 %v550, %v542
      %v614 = vpack.c.bf16 %v566, %v558
      %v615 = vpack.c.bf16 %v582, %v574
      %v616 = vpack.c.bf16 %v598, %v590
      %v617 = vld [vmem:[%s5] sm:$0xff]
      %v618 = vld [vmem:[%s5 + $0x8] sm:$0xff]
      %v619 = vld [vmem:[%s5 + $0x10] sm:$0xff]
      %v620 = vld [vmem:[%s5 + $0x18] sm:$0xff]
      %v621 = vld [vmem:[%s5 + $0x20] sm:$0xff]
      %v622 = vld [vmem:[%s5 + $0x28] sm:$0xff]
      %v623 = vld [vmem:[%s5 + $0x30] sm:$0xff]
      %v624 = vld [vmem:[%s5 + $0x38] sm:$0xff]
      %v625 = vld [vmem:[%s5 + $0x40] sm:$0xff]
      %v626 = vld [vmem:[%s5 + $0x48] sm:$0xff]
      %v627 = vld [vmem:[%s5 + $0x50] sm:$0xff]
      %v628 = vld [vmem:[%s5 + $0x58] sm:$0xff]
      %v629 = vld [vmem:[%s5 + $0x60] sm:$0xff]
      %v630 = vld [vmem:[%s5 + $0x68] sm:$0xff]
      %v631 = vld [vmem:[%s5 + $0x70] sm:$0xff]
      %v632 = vld [vmem:[%s5 + $0x78] sm:$0xff]
      %v633 = vld [vmem:[%s5 + $0x80] sm:$0xff]
      %v634 = vld [vmem:[%s5 + $0x88] sm:$0xff]
      %v635 = vld [vmem:[%s5 + $0x90] sm:$0xff]
      %v636 = vld [vmem:[%s5 + $0x98] sm:$0xff]
      %v637 = vld [vmem:[%s5 + $0xa0] sm:$0xff]
      %v638 = vld [vmem:[%s5 + $0xa8] sm:$0xff]
      %v639 = vld [vmem:[%s5 + $0xb0] sm:$0xff]
      %v640 = vld [vmem:[%s5 + $0xb8] sm:$0xff]
      %v641 = vld [vmem:[%s5 + $0xc0] sm:$0xff]
      %v642 = vld [vmem:[%s5 + $0xc8] sm:$0xff]
      %v643 = vld [vmem:[%s5 + $0xd0] sm:$0xff]
      %v644 = vld [vmem:[%s5 + $0xd8] sm:$0xff]
      %v645 = vld [vmem:[%s5 + $0xe0] sm:$0xff]
      %v646 = vld [vmem:[%s5 + $0xe8] sm:$0xff]
      %v647 = vld [vmem:[%s5 + $0xf0] sm:$0xff]
      %v648 = vld [vmem:[%s5 + $0xf8] sm:$0xff]
      %v649 = vld [vmem:[%s6] sm:$0xff]
      %v650 = vld [vmem:[%s6 + $0x8] sm:$0xff]
      %v651 = vld [vmem:[%s6 + $0x10] sm:$0xff]
      %v652 = vld [vmem:[%s6 + $0x18] sm:$0xff]
      %v653 = vld [vmem:[%s6 + $0x20] sm:$0xff]
      %v654 = vld [vmem:[%s6 + $0x28] sm:$0xff]
      %v655 = vld [vmem:[%s6 + $0x30] sm:$0xff]
      %v656 = vld [vmem:[%s6 + $0x38] sm:$0xff]
      %v657 = vld [vmem:[%s6 + $0x40] sm:$0xff]
      %v658 = vld [vmem:[%s6 + $0x48] sm:$0xff]
      %v659 = vld [vmem:[%s6 + $0x50] sm:$0xff]
      %v660 = vld [vmem:[%s6 + $0x58] sm:$0xff]
      %v661 = vld [vmem:[%s6 + $0x60] sm:$0xff]
      %v662 = vld [vmem:[%s6 + $0x68] sm:$0xff]
      %v663 = vld [vmem:[%s6 + $0x70] sm:$0xff]
      %v664 = vld [vmem:[%s6 + $0x78] sm:$0xff]
      %v665 = vld [vmem:[%s6 + $0x80] sm:$0xff]
      %v666 = vld [vmem:[%s6 + $0x88] sm:$0xff]
      %v667 = vld [vmem:[%s6 + $0x90] sm:$0xff]
      %v668 = vld [vmem:[%s6 + $0x98] sm:$0xff]
      %v669 = vld [vmem:[%s6 + $0xa0] sm:$0xff]
      %v670 = vld [vmem:[%s6 + $0xa8] sm:$0xff]
      %v671 = vld [vmem:[%s6 + $0xb0] sm:$0xff]
      %v672 = vld [vmem:[%s6 + $0xb8] sm:$0xff]
      %v673 = vld [vmem:[%s6 + $0xc0] sm:$0xff]
      %v674 = vld [vmem:[%s6 + $0xc8] sm:$0xff]
      %v675 = vld [vmem:[%s6 + $0xd0] sm:$0xff]
      %v676 = vld [vmem:[%s6 + $0xd8] sm:$0xff]
      %v677 = vld [vmem:[%s6 + $0xe0] sm:$0xff]
      %v678 = vld [vmem:[%s6 + $0xe8] sm:$0xff]
      %v679 = vld [vmem:[%s6 + $0xf0] sm:$0xff]
      %v680 = vld [vmem:[%s6 + $0xf8] sm:$0xff]
      %685 = vrot.lane.b32.xlu0 %v601, 96
      %v686 = vpop.permute.xlu0 %685
      %687 = vrot.lane.b32.xlu0 %v602, 96
      %v688 = vpop.permute.xlu0 %687
      %689 = vrot.lane.b32.xlu0 %v603, 96
      %v690 = vpop.permute.xlu0 %689
      %691 = vrot.lane.b32.xlu0 %v604, 96
      %v692 = vpop.permute.xlu0 %691
      %vm693 = vcmask 64512
      %v695 = vsel %vm693, %v601, 0
      %v698 = vsel %vm693, %v602, 0
      %v701 = vsel %vm693, %v603, 0
      %v704 = vsel %vm693, %v604, 0
      %v707 = vsel %vm693, %v686, 0
      %v710 = vsel %vm693, %v688, 0
      %v713 = vsel %vm693, %v690, 0
      %v716 = vsel %vm693, %v692, 0
      %718 = vmatprep.subr.bf16.mxu0 0
      %719 = vmatpush1.bf16.xpose.msra.mxu0 %v707
      %720 = vmatprep.subr.bf16.mxu0 0
      %721 = vmatpush1.bf16.xpose.msra.mxu0 %v710
      %722 = vmatprep.subr.bf16.mxu0 0
      %723 = vmatpush1.bf16.xpose.msra.mxu0 %v713
      %724 = vmatprep.subr.bf16.mxu0 0
      %725 = vmatpush1.bf16.xpose.msra.mxu0 %v716
      %726 = vmatprep.subr.bf16.mxu0 0
      %727 = vmatpush1.bf16.xpose.msra.mxu0 0
      %728 = vmatprep.subr.bf16.mxu0 0
      %729 = vmatpush1.bf16.xpose.msra.mxu0 0
      %730 = vmatprep.subr.bf16.mxu0 0
      %731 = vmatpush1.bf16.xpose.msra.mxu0 0
      %732 = vmatprep.subr.bf16.mxu0 0
      %733 = vmatpush1.bf16.xpose.msra.mxu0 0
      %734 = vmatprep.subr.bf16.mxu0 0
      %735 = vmatpush1.bf16.xpose.msra.mxu0 0
      %736 = vmatprep.subr.bf16.mxu0 0
      %737 = vmatpush1.bf16.xpose.msra.mxu0 0
      %738 = vmatprep.subr.bf16.mxu0 0
      %739 = vmatpush1.bf16.xpose.msra.mxu0 0
      %740 = vmatprep.subr.bf16.mxu0 0
      %741 = vmatpush1.bf16.xpose.msra.mxu0 0
      %742 = vmatprep.subr.bf16.mxu0 0
      %743 = vmatpush1.bf16.xpose.msra.mxu0 0
      %744 = vmatprep.subr.bf16.mxu0 0
      %745 = vmatpush1.bf16.xpose.msra.mxu0 0
      %746 = vmatprep.subr.bf16.mxu0 0
      %747 = vmatpush1.bf16.xpose.msra.mxu0 0
      %748 = vmatprep.subr.bf16.mxu0 0
      %749 = vmatpush1.bf16.xpose.msra.mxu0 0
      %750 = vmatprep.mubr.bf16.mxu0 0
      %751 = vmatmul.mubr.bf16.gmra.mrb[0].mxu0 %v695
      %v752 = vpop.f32.mrb[0].mxu0
      %v753 = vadd.f32 0.0, %v752
      %v754 = vpop.f32.mrb[0].mxu0
      %v755 = vpop.f32.mrb[0].mxu0
      %v756 = vadd.f32 0.0, %v755
      %v757 = vpop.f32.mrb[0].mxu0
      %758 = vmatprep.mubr.bf16.mxu0 0
      %759 = vmatmul.mubr.bf16.gmra.mrb[0].mxu0 %v698
      %v760 = vpop.f32.mrb[0].mxu0
      %v761 = vadd.f32 0.0, %v760
      %v762 = vpop.f32.mrb[0].mxu0
      %v763 = vpop.f32.mrb[0].mxu0
      %v764 = vadd.f32 0.0, %v763
      %v765 = vpop.f32.mrb[0].mxu0
      %766 = vmatprep.mubr.bf16.mxu0 0
      %767 = vmatmul.mubr.bf16.gmra.mrb[0].mxu0 %v701
      %v768 = vpop.f32.mrb[0].mxu0
      %v769 = vadd.f32 0.0, %v768
      %v770 = vpop.f32.mrb[0].mxu0
      %v771 = vpop.f32.mrb[0].mxu0
      %v772 = vadd.f32 0.0, %v771
      %v773 = vpop.f32.mrb[0].mxu0
      %774 = vmatprep.mubr.bf16.mxu0 0
      %775 = vmatmul.mubr.bf16.gmra.mrb[0].mxu0 %v704
      %v776 = vpop.f32.mrb[0].mxu0
      %v777 = vadd.f32 0.0, %v776
      %v778 = vpop.f32.mrb[0].mxu0
      %v779 = vpop.f32.mrb[0].mxu0
      %v780 = vadd.f32 0.0, %v779
      %v781 = vpop.f32.mrb[0].mxu0
      %782 = vdwg.mxu0
      %787 = vrot.lane.b32.xlu0 %v605, 96
      %v788 = vpop.permute.xlu0 %787
      %789 = vrot.lane.b32.xlu0 %v606, 96
      %v790 = vpop.permute.xlu0 %789
      %791 = vrot.lane.b32.xlu0 %v607, 96
      %v792 = vpop.permute.xlu0 %791
      %793 = vrot.lane.b32.xlu0 %v608, 96
      %v794 = vpop.permute.xlu0 %793
      %v796 = vsel %vm693, %v605, 0
      %v799 = vsel %vm693, %v606, 0
      %v802 = vsel %vm693, %v607, 0
      %v805 = vsel %vm693, %v608, 0
      %v808 = vsel %vm693, %v788, 0
      %v811 = vsel %vm693, %v790, 0
      %v814 = vsel %vm693, %v792, 0
      %v817 = vsel %vm693, %v794, 0
      %819 = vmatprep.subr.bf16.mxu0 0
      %820 = vmatpush1.bf16.xpose.msra.mxu0 %v808
      %821 = vmatprep.subr.bf16.mxu0 0
      %822 = vmatpush1.bf16.xpose.msra.mxu0 %v811
      %823 = vmatprep.subr.bf16.mxu0 0
      %824 = vmatpush1.bf16.xpose.msra.mxu0 %v814
      %825 = vmatprep.subr.bf16.mxu0 0
      %826 = vmatpush1.bf16.xpose.msra.mxu0 %v817
      %827 = vmatprep.subr.bf16.mxu0 0
      %828 = vmatpush1.bf16.xpose.msra.mxu0 0
      %829 = vmatprep.subr.bf16.mxu0 0
      %830 = vmatpush1.bf16.xpose.msra.mxu0 0
      %831 = vmatprep.subr.bf16.mxu0 0
      %832 = vmatpush1.bf16.xpose.msra.mxu0 0
      %833 = vmatprep.subr.bf16.mxu0 0
      %834 = vmatpush1.bf16.xpose.msra.mxu0 0
      %835 = vmatprep.subr.bf16.mxu0 0
      %836 = vmatpush1.bf16.xpose.msra.mxu0 0
      %837 = vmatprep.subr.bf16.mxu0 0
      %838 = vmatpush1.bf16.xpose.msra.mxu0 0
      %839 = vmatprep.subr.bf16.mxu0 0
      %840 = vmatpush1.bf16.xpose.msra.mxu0 0
      %841 = vmatprep.subr.bf16.mxu0 0
      %842 = vmatpush1.bf16.xpose.msra.mxu0 0
      %843 = vmatprep.subr.bf16.mxu0 0
      %844 = vmatpush1.bf16.xpose.msra.mxu0 0
      %845 = vmatprep.subr.bf16.mxu0 0
      %846 = vmatpush1.bf16.xpose.msra.mxu0 0
      %847 = vmatprep.subr.bf16.mxu0 0
      %848 = vmatpush1.bf16.xpose.msra.mxu0 0
      %849 = vmatprep.subr.bf16.mxu0 0
      %850 = vmatpush1.bf16.xpose.msra.mxu0 0
      %851 = vmatprep.mubr.bf16.mxu0 0
      %852 = vmatmul.mubr.bf16.gmra.mrb[0].mxu0 %v796
      %v853 = vpop.f32.mrb[0].mxu0
      %v854 = vadd.f32 0.0, %v853
      %v855 = vpop.f32.mrb[0].mxu0
      %v856 = vpop.f32.mrb[0].mxu0
      %v857 = vadd.f32 0.0, %v856
      %v858 = vpop.f32.mrb[0].mxu0
      %859 = vmatprep.mubr.bf16.mxu0 0
      %860 = vmatmul.mubr.bf16.gmra.mrb[0].mxu0 %v799
      %v861 = vpop.f32.mrb[0].mxu0
      %v862 = vadd.f32 0.0, %v861
      %v863 = vpop.f32.mrb[0].mxu0
      %v864 = vpop.f32.mrb[0].mxu0
      %v865 = vadd.f32 0.0, %v864
      %v866 = vpop.f32.mrb[0].mxu0
      %867 = vmatprep.mubr.bf16.mxu0 0
      %868 = vmatmul.mubr.bf16.gmra.mrb[0].mxu0 %v802
      %v869 = vpop.f32.mrb[0].mxu0
      %v870 = vadd.f32 0.0, %v869
      %v871 = vpop.f32.mrb[0].mxu0
      %v872 = vpop.f32.mrb[0].mxu0
      %v873 = vadd.f32 0.0, %v872
      %v874 = vpop.f32.mrb[0].mxu0
      %875 = vmatprep.mubr.bf16.mxu0 0
      %876 = vmatmul.mubr.bf16.gmra.mrb[0].mxu0 %v805
      %v877 = vpop.f32.mrb[0].mxu0
      %v878 = vadd.f32 0.0, %v877
      %v879 = vpop.f32.mrb[0].mxu0
      %v880 = vpop.f32.mrb[0].mxu0
      %v881 = vadd.f32 0.0, %v880
      %v882 = vpop.f32.mrb[0].mxu0
      %883 = vdwg.mxu0
      %888 = vrot.lane.b32.xlu0 %v609, 96
      %v889 = vpop.permute.xlu0 %888
      %890 = vrot.lane.b32.xlu0 %v610, 96
      %v891 = vpop.permute.xlu0 %890
      %892 = vrot.lane.b32.xlu0 %v611, 96
      %v893 = vpop.permute.xlu0 %892
      %894 = vrot.lane.b32.xlu0 %v612, 96
      %v895 = vpop.permute.xlu0 %894
      %v897 = vsel %vm693, %v609, 0
      %v900 = vsel %vm693, %v610, 0
      %v903 = vsel %vm693, %v611, 0
      %v906 = vsel %vm693, %v612, 0
      %v909 = vsel %vm693, %v889, 0
      %v912 = vsel %vm693, %v891, 0
      %v915 = vsel %vm693, %v893, 0
      %v918 = vsel %vm693, %v895, 0
      %920 = vmatprep.subr.bf16.mxu0 0
      %921 = vmatpush1.bf16.xpose.msra.mxu0 %v909
      %922 = vmatprep.subr.bf16.mxu0 0
      %923 = vmatpush1.bf16.xpose.msra.mxu0 %v912
      %924 = vmatprep.subr.bf16.mxu0 0
      %925 = vmatpush1.bf16.xpose.msra.mxu0 %v915
      %926 = vmatprep.subr.bf16.mxu0 0
      %927 = vmatpush1.bf16.xpose.msra.mxu0 %v918
      %928 = vmatprep.subr.bf16.mxu0 0
      %929 = vmatpush1.bf16.xpose.msra.mxu0 0
      %930 = vmatprep.subr.bf16.mxu0 0
      %931 = vmatpush1.bf16.xpose.msra.mxu0 0
      %932 = vmatprep.subr.bf16.mxu0 0
      %933 = vmatpush1.bf16.xpose.msra.mxu0 0
      %934 = vmatprep.subr.bf16.mxu0 0
      %935 = vmatpush1.bf16.xpose.msra.mxu0 0
      %936 = vmatprep.subr.bf16.mxu0 0
      %937 = vmatpush1.bf16.xpose.msra.mxu0 0
      %938 = vmatprep.subr.bf16.mxu0 0
      %939 = vmatpush1.bf16.xpose.msra.mxu0 0
      %940 = vmatprep.subr.bf16.mxu0 0
      %941 = vmatpush1.bf16.xpose.msra.mxu0 0
      %942 = vmatprep.subr.bf16.mxu0 0
      %943 = vmatpush1.bf16.xpose.msra.mxu0 0
      %944 = vmatprep.subr.bf16.mxu0 0
      %945 = vmatpush1.bf16.xpose.msra.mxu0 0
      %946 = vmatprep.subr.bf16.mxu0 0
      %947 = vmatpush1.bf16.xpose.msra.mxu0 0
      %948 = vmatprep.subr.bf16.mxu0 0
      %949 = vmatpush1.bf16.xpose.msra.mxu0 0
      %950 = vmatprep.subr.bf16.mxu0 0
      %951 = vmatpush1.bf16.xpose.msra.mxu0 0
      %952 = vmatprep.mubr.bf16.mxu0 0
      %953 = vmatmul.mubr.bf16.gmra.mrb[0].mxu0 %v897
      %v954 = vpop.f32.mrb[0].mxu0
      %v955 = vadd.f32 0.0, %v954
      %v956 = vpop.f32.mrb[0].mxu0
      %v957 = vpop.f32.mrb[0].mxu0
      %v958 = vadd.f32 0.0, %v957
      %v959 = vpop.f32.mrb[0].mxu0
      %960 = vmatprep.mubr.bf16.mxu0 0
      %961 = vmatmul.mubr.bf16.gmra.mrb[0].mxu0 %v900
      %v962 = vpop.f32.mrb[0].mxu0
      %v963 = vadd.f32 0.0, %v962
      %v964 = vpop.f32.mrb[0].mxu0
      %v965 = vpop.f32.mrb[0].mxu0
      %v966 = vadd.f32 0.0, %v965
      %v967 = vpop.f32.mrb[0].mxu0
      %968 = vmatprep.mubr.bf16.mxu0 0
      %969 = vmatmul.mubr.bf16.gmra.mrb[0].mxu0 %v903
      %v970 = vpop.f32.mrb[0].mxu0
      %v971 = vadd.f32 0.0, %v970
      %v972 = vpop.f32.mrb[0].mxu0
      %v973 = vpop.f32.mrb[0].mxu0
      %v974 = vadd.f32 0.0, %v973
      %v975 = vpop.f32.mrb[0].mxu0
      %976 = vmatprep.mubr.bf16.mxu0 0
      %977 = vmatmul.mubr.bf16.gmra.mrb[0].mxu0 %v906
      %v978 = vpop.f32.mrb[0].mxu0
      %v979 = vadd.f32 0.0, %v978
      %v980 = vpop.f32.mrb[0].mxu0
      %v981 = vpop.f32.mrb[0].mxu0
      %v982 = vadd.f32 0.0, %v981
      %v983 = vpop.f32.mrb[0].mxu0
      %984 = vdwg.mxu0
      %989 = vrot.lane.b32.xlu0 %v613, 96
      %v990 = vpop.permute.xlu0 %989
      %991 = vrot.lane.b32.xlu0 %v614, 96
      %v992 = vpop.permute.xlu0 %991
      %993 = vrot.lane.b32.xlu0 %v615, 96
      %v994 = vpop.permute.xlu0 %993
      %995 = vrot.lane.b32.xlu0 %v616, 96
      %v996 = vpop.permute.xlu0 %995
      %v998 = vsel %vm693, %v613, 0
      %v1001 = vsel %vm693, %v614, 0
      %v1004 = vsel %vm693, %v615, 0
      %v1007 = vsel %vm693, %v616, 0
      %v1010 = vsel %vm693, %v990, 0
      %v1013 = vsel %vm693, %v992, 0
      %v1016 = vsel %vm693, %v994, 0
      %v1019 = vsel %vm693, %v996, 0
      %1021 = vmatprep.subr.bf16.mxu0 0
      %1022 = vmatpush1.bf16.xpose.msra.mxu0 %v1010
      %1023 = vmatprep.subr.bf16.mxu0 0
      %1024 = vmatpush1.bf16.xpose.msra.mxu0 %v1013
      %1025 = vmatprep.subr.bf16.mxu0 0
      %1026 = vmatpush1.bf16.xpose.msra.mxu0 %v1016
      %1027 = vmatprep.subr.bf16.mxu0 0
      %1028 = vmatpush1.bf16.xpose.msra.mxu0 %v1019
      %1029 = vmatprep.subr.bf16.mxu0 0
      %1030 = vmatpush1.bf16.xpose.msra.mxu0 0
      %1031 = vmatprep.subr.bf16.mxu0 0
      %1032 = vmatpush1.bf16.xpose.msra.mxu0 0
      %1033 = vmatprep.subr.bf16.mxu0 0
      %1034 = vmatpush1.bf16.xpose.msra.mxu0 0
      %1035 = vmatprep.subr.bf16.mxu0 0
      %1036 = vmatpush1.bf16.xpose.msra.mxu0 0
      %1037 = vmatprep.subr.bf16.mxu0 0
      %1038 = vmatpush1.bf16.xpose.msra.mxu0 0
      %1039 = vmatprep.subr.bf16.mxu0 0
      %1040 = vmatpush1.bf16.xpose.msra.mxu0 0
      %1041 = vmatprep.subr.bf16.mxu0 0
      %1042 = vmatpush1.bf16.xpose.msra.mxu0 0
      %1043 = vmatprep.subr.bf16.mxu0 0
      %1044 = vmatpush1.bf16.xpose.msra.mxu0 0
      %1045 = vmatprep.subr.bf16.mxu0 0
      %1046 = vmatpush1.bf16.xpose.msra.mxu0 0
      %1047 = vmatprep.subr.bf16.mxu0 0
      %1048 = vmatpush1.bf16.xpose.msra.mxu0 0
      %1049 = vmatprep.subr.bf16.mxu0 0
      %1050 = vmatpush1.bf16.xpose.msra.mxu0 0
      %1051 = vmatprep.subr.bf16.mxu0 0
      %1052 = vmatpush1.bf16.xpose.msra.mxu0 0
      %1053 = vmatprep.mubr.bf16.mxu0 0
      %1054 = vmatmul.mubr.bf16.gmra.mrb[0].mxu0 %v998
      %v1055 = vpop.f32.mrb[0].mxu0
      %v1056 = vadd.f32 0.0, %v1055
      %v1057 = vpop.f32.mrb[0].mxu0
      %v1058 = vpop.f32.mrb[0].mxu0
      %v1059 = vadd.f32 0.0, %v1058
      %v1060 = vpop.f32.mrb[0].mxu0
      %1061 = vmatprep.mubr.bf16.mxu0 0
      %1062 = vmatmul.mubr.bf16.gmra.mrb[0].mxu0 %v1001
      %v1063 = vpop.f32.mrb[0].mxu0
      %v1064 = vadd.f32 0.0, %v1063
      %v1065 = vpop.f32.mrb[0].mxu0
      %v1066 = vpop.f32.mrb[0].mxu0
      %v1067 = vadd.f32 0.0, %v1066
      %v1068 = vpop.f32.mrb[0].mxu0
      %1069 = vmatprep.mubr.bf16.mxu0 0
      %1070 = vmatmul.mubr.bf16.gmra.mrb[0].mxu0 %v1004
      %v1071 = vpop.f32.mrb[0].mxu0
      %v1072 = vadd.f32 0.0, %v1071
      %v1073 = vpop.f32.mrb[0].mxu0
      %v1074 = vpop.f32.mrb[0].mxu0
      %v1075 = vadd.f32 0.0, %v1074
      %v1076 = vpop.f32.mrb[0].mxu0
      %1077 = vmatprep.mubr.bf16.mxu0 0
      %1078 = vmatmul.mubr.bf16.gmra.mrb[0].mxu0 %v1007
      %v1079 = vpop.f32.mrb[0].mxu0
      %v1080 = vadd.f32 0.0, %v1079
      %v1081 = vpop.f32.mrb[0].mxu0
      %v1082 = vpop.f32.mrb[0].mxu0
      %v1083 = vadd.f32 0.0, %v1082
      %v1084 = vpop.f32.mrb[0].mxu0
      %1085 = vdwg.mxu0
      %v1086 = vmul.f32 %v753, 0.35355338
      %v1087 = vmul.f32 %v756, 0.35355338
      %v1088 = vmul.f32 %v761, 0.35355338
      %v1089 = vmul.f32 %v764, 0.35355338
      %v1090 = vmul.f32 %v769, 0.35355338
      %v1091 = vmul.f32 %v772, 0.35355338
      %v1092 = vmul.f32 %v777, 0.35355338
      %v1093 = vmul.f32 %v780, 0.35355338
      %v1094 = vmul.f32 %v854, 0.35355338
      %v1095 = vmul.f32 %v857, 0.35355338
      %v1096 = vmul.f32 %v862, 0.35355338
      %v1097 = vmul.f32 %v865, 0.35355338
      %v1098 = vmul.f32 %v870, 0.35355338
      %v1099 = vmul.f32 %v873, 0.35355338
      %v1100 = vmul.f32 %v878, 0.35355338
      %v1101 = vmul.f32 %v881, 0.35355338
      %v1102 = vmul.f32 %v955, 0.35355338
      %v1103 = vmul.f32 %v958, 0.35355338
      %v1104 = vmul.f32 %v963, 0.35355338
      %v1105 = vmul.f32 %v966, 0.35355338
      %v1106 = vmul.f32 %v971, 0.35355338
      %v1107 = vmul.f32 %v974, 0.35355338
      %v1108 = vmul.f32 %v979, 0.35355338
      %v1109 = vmul.f32 %v982, 0.35355338
      %v1110 = vmul.f32 %v1056, 0.35355338
      %v1111 = vmul.f32 %v1059, 0.35355338
      %v1112 = vmul.f32 %v1064, 0.35355338
      %v1113 = vmul.f32 %v1067, 0.35355338
      %v1114 = vmul.f32 %v1072, 0.35355338
      %v1115 = vmul.f32 %v1075, 0.35355338
      %v1116 = vmul.f32 %v1080, 0.35355338
      %v1117 = vmul.f32 %v1083, 0.35355338
      %v1118 = vadd.f32 %v1086, %v617
      %v1119 = vadd.f32 %v1087, %v618
      %v1120 = vadd.f32 %v1088, %v619
      %v1121 = vadd.f32 %v1089, %v620
      %v1122 = vadd.f32 %v1090, %v621
      %v1123 = vadd.f32 %v1091, %v622
      %v1124 = vadd.f32 %v1092, %v623
      %v1125 = vadd.f32 %v1093, %v624
      %v1126 = vadd.f32 %v1094, %v617
      %v1127 = vadd.f32 %v1095, %v618
      %v1128 = vadd.f32 %v1096, %v619
      %v1129 = vadd.f32 %v1097, %v620
      %v1130 = vadd.f32 %v1098, %v621
      %v1131 = vadd.f32 %v1099, %v622
      %v1132 = vadd.f32 %v1100, %v623
      %v1133 = vadd.f32 %v1101, %v624
      %v1134 = vadd.f32 %v1102, %v617
      %v1135 = vadd.f32 %v1103, %v618
      %v1136 = vadd.f32 %v1104, %v619
      %v1137 = vadd.f32 %v1105, %v620
      %v1138 = vadd.f32 %v1106, %v621
      %v1139 = vadd.f32 %v1107, %v622
      %v1140 = vadd.f32 %v1108, %v623
      %v1141 = vadd.f32 %v1109, %v624
      %v1142 = vadd.f32 %v1110, %v617
      %v1143 = vadd.f32 %v1111, %v618
      %v1144 = vadd.f32 %v1112, %v619
      %v1145 = vadd.f32 %v1113, %v620
      %v1146 = vadd.f32 %v1114, %v621
      %v1147 = vadd.f32 %v1115, %v622
      %v1148 = vadd.f32 %v1116, %v623
      %v1149 = vadd.f32 %v1117, %v624
      %v1150 = vadd.f32 %v1118, %v649
      %v1151 = vadd.f32 %v1119, %v650
      %v1152 = vadd.f32 %v1120, %v651
      %v1153 = vadd.f32 %v1121, %v652
      %v1154 = vadd.f32 %v1122, %v653
      %v1155 = vadd.f32 %v1123, %v654
      %v1156 = vadd.f32 %v1124, %v655
      %v1157 = vadd.f32 %v1125, %v656
      %v1158 = vadd.f32 %v1126, %v657
      %v1159 = vadd.f32 %v1127, %v658
      %v1160 = vadd.f32 %v1128, %v659
      %v1161 = vadd.f32 %v1129, %v660
      %v1162 = vadd.f32 %v1130, %v661
      %v1163 = vadd.f32 %v1131, %v662
      %v1164 = vadd.f32 %v1132, %v663
      %v1165 = vadd.f32 %v1133, %v664
      %v1166 = vadd.f32 %v1134, %v665
      %v1167 = vadd.f32 %v1135, %v666
      %v1168 = vadd.f32 %v1136, %v667
      %v1169 = vadd.f32 %v1137, %v668
      %v1170 = vadd.f32 %v1138, %v669
      %v1171 = vadd.f32 %v1139, %v670
      %v1172 = vadd.f32 %v1140, %v671
      %v1173 = vadd.f32 %v1141, %v672
      %v1174 = vadd.f32 %v1142, %v673
      %v1175 = vadd.f32 %v1143, %v674
      %v1176 = vadd.f32 %v1144, %v675
      %v1177 = vadd.f32 %v1145, %v676
      %v1178 = vadd.f32 %v1146, %v677
      %v1179 = vadd.f32 %v1147, %v678
      %v1180 = vadd.f32 %v1148, %v679
      %v1181 = vadd.f32 %v1149, %v680
      %vm1182 = vcmask 523264
      %v1183 = vsel %vm1182, %v1150, -inf
      %1184 = vmax.xlane.f32.xlu0 %v1183
      %v1185 = vpop.xlane.xlu0 %1184
      %v1186 = vsel %vm1182, %v1151, -inf
      %1187 = vmax.xlane.f32.xlu0 %v1186
      %v1188 = vpop.xlane.xlu0 %1187
      %v1189 = vsel %vm1182, %v1152, -inf
      %1190 = vmax.xlane.f32.xlu0 %v1189
      %v1191 = vpop.xlane.xlu0 %1190
      %v1192 = vsel %vm1182, %v1153, -inf
      %1193 = vmax.xlane.f32.xlu0 %v1192
      %v1194 = vpop.xlane.xlu0 %1193
      %v1195 = vsel %vm1182, %v1154, -inf
      %1196 = vmax.xlane.f32.xlu0 %v1195
      %v1197 = vpop.xlane.xlu0 %1196
      %v1198 = vsel %vm1182, %v1155, -inf
      %1199 = vmax.xlane.f32.xlu0 %v1198
      %v1200 = vpop.xlane.xlu0 %1199
      %v1201 = vsel %vm1182, %v1156, -inf
      %1202 = vmax.xlane.f32.xlu0 %v1201
      %v1203 = vpop.xlane.xlu0 %1202
      %v1204 = vsel %vm1182, %v1157, -inf
      %1205 = vmax.xlane.f32.xlu0 %v1204
      %v1206 = vpop.xlane.xlu0 %1205
      %v1207 = vsel %vm1182, %v1158, -inf
      %1208 = vmax.xlane.f32.xlu0 %v1207
      %v1209 = vpop.xlane.xlu0 %1208
      %v1210 = vsel %vm1182, %v1159, -inf
      %1211 = vmax.xlane.f32.xlu0 %v1210
      %v1212 = vpop.xlane.xlu0 %1211
      %v1213 = vsel %vm1182, %v1160, -inf
      %1214 = vmax.xlane.f32.xlu0 %v1213
      %v1215 = vpop.xlane.xlu0 %1214
      %v1216 = vsel %vm1182, %v1161, -inf
      %1217 = vmax.xlane.f32.xlu0 %v1216
      %v1218 = vpop.xlane.xlu0 %1217
      %v1219 = vsel %vm1182, %v1162, -inf
      %1220 = vmax.xlane.f32.xlu0 %v1219
      %v1221 = vpop.xlane.xlu0 %1220
      %v1222 = vsel %vm1182, %v1163, -inf
      %1223 = vmax.xlane.f32.xlu0 %v1222
      %v1224 = vpop.xlane.xlu0 %1223
      %v1225 = vsel %vm1182, %v1164, -inf
      %1226 = vmax.xlane.f32.xlu0 %v1225
      %v1227 = vpop.xlane.xlu0 %1226
      %v1228 = vsel %vm1182, %v1165, -inf
      %1229 = vmax.xlane.f32.xlu0 %v1228
      %v1230 = vpop.xlane.xlu0 %1229
      %v1231 = vsel %vm1182, %v1166, -inf
      %1232 = vmax.xlane.f32.xlu0 %v1231
      %v1233 = vpop.xlane.xlu0 %1232
      %v1234 = vsel %vm1182, %v1167, -inf
      %1235 = vmax.xlane.f32.xlu0 %v1234
      %v1236 = vpop.xlane.xlu0 %1235
      %v1237 = vsel %vm1182, %v1168, -inf
      %1238 = vmax.xlane.f32.xlu0 %v1237
      %v1239 = vpop.xlane.xlu0 %1238
      %v1240 = vsel %vm1182, %v1169, -inf
      %1241 = vmax.xlane.f32.xlu0 %v1240
      %v1242 = vpop.xlane.xlu0 %1241
      %v1243 = vsel %vm1182, %v1170, -inf
      %1244 = vmax.xlane.f32.xlu0 %v1243
      %v1245 = vpop.xlane.xlu0 %1244
      %v1246 = vsel %vm1182, %v1171, -inf
      %1247 = vmax.xlane.f32.xlu0 %v1246
      %v1248 = vpop.xlane.xlu0 %1247
      %v1249 = vsel %vm1182, %v1172, -inf
      %1250 = vmax.xlane.f32.xlu0 %v1249
      %v1251 = vpop.xlane.xlu0 %1250
      %v1252 = vsel %vm1182, %v1173, -inf
      %1253 = vmax.xlane.f32.xlu0 %v1252
      %v1254 = vpop.xlane.xlu0 %1253
      %v1255 = vsel %vm1182, %v1174, -inf
      %1256 = vmax.xlane.f32.xlu0 %v1255
      %v1257 = vpop.xlane.xlu0 %1256
      %v1258 = vsel %vm1182, %v1175, -inf
      %1259 = vmax.xlane.f32.xlu0 %v1258
      %v1260 = vpop.xlane.xlu0 %1259
      %v1261 = vsel %vm1182, %v1176, -inf
      %1262 = vmax.xlane.f32.xlu0 %v1261
      %v1263 = vpop.xlane.xlu0 %1262
      %v1264 = vsel %vm1182, %v1177, -inf
      %1265 = vmax.xlane.f32.xlu0 %v1264
      %v1266 = vpop.xlane.xlu0 %1265
      %v1267 = vsel %vm1182, %v1178, -inf
      %1268 = vmax.xlane.f32.xlu0 %v1267
      %v1269 = vpop.xlane.xlu0 %1268
      %v1270 = vsel %vm1182, %v1179, -inf
      %1271 = vmax.xlane.f32.xlu0 %v1270
      %v1272 = vpop.xlane.xlu0 %1271
      %v1273 = vsel %vm1182, %v1180, -inf
      %1274 = vmax.xlane.f32.xlu0 %v1273
      %v1275 = vpop.xlane.xlu0 %1274
      %v1276 = vsel %vm1182, %v1181, -inf
      %1277 = vmax.xlane.f32.xlu0 %v1276
      %v1278 = vpop.xlane.xlu0 %1277
      %v1279 = vsub.f32 %v1150, %v1185
      %v1280 = vsub.f32 %v1151, %v1188
      %v1281 = vsub.f32 %v1152, %v1191
      %v1282 = vsub.f32 %v1153, %v1194
      %v1283 = vsub.f32 %v1154, %v1197
      %v1284 = vsub.f32 %v1155, %v1200
      %v1285 = vsub.f32 %v1156, %v1203
      %v1286 = vsub.f32 %v1157, %v1206
      %v1287 = vsub.f32 %v1158, %v1209
      %v1288 = vsub.f32 %v1159, %v1212
      %v1289 = vsub.f32 %v1160, %v1215
      %v1290 = vsub.f32 %v1161, %v1218
      %v1291 = vsub.f32 %v1162, %v1221
      %v1292 = vsub.f32 %v1163, %v1224
      %v1293 = vsub.f32 %v1164, %v1227
      %v1294 = vsub.f32 %v1165, %v1230
      %v1295 = vsub.f32 %v1166, %v1233
      %v1296 = vsub.f32 %v1167, %v1236
      %v1297 = vsub.f32 %v1168, %v1239
      %v1298 = vsub.f32 %v1169, %v1242
      %v1299 = vsub.f32 %v1170, %v1245
      %v1300 = vsub.f32 %v1171, %v1248
      %v1301 = vsub.f32 %v1172, %v1251
      %v1302 = vsub.f32 %v1173, %v1254
      %v1303 = vsub.f32 %v1174, %v1257
      %v1304 = vsub.f32 %v1175, %v1260
      %v1305 = vsub.f32 %v1176, %v1263
      %v1306 = vsub.f32 %v1177, %v1266
      %v1307 = vsub.f32 %v1178, %v1269
      %v1308 = vsub.f32 %v1179, %v1272
      %v1309 = vsub.f32 %v1180, %v1275
      %v1310 = vsub.f32 %v1181, %v1278
      %v1311 = vmul.f32 %v1279, 1.442695
      %v1312 = vpow.pop %v1311
      %v1313 = vmul.f32 %v1280, 1.442695
      %v1314 = vpow.pop %v1313
      %v1315 = vmul.f32 %v1281, 1.442695
      %v1316 = vpow.pop %v1315
      %v1317 = vmul.f32 %v1282, 1.442695
      %v1318 = vpow.pop %v1317
      %v1319 = vmul.f32 %v1283, 1.442695
      %v1320 = vpow.pop %v1319
      %v1321 = vmul.f32 %v1284, 1.442695
      %v1322 = vpow.pop %v1321
      %v1323 = vmul.f32 %v1285, 1.442695
      %v1324 = vpow.pop %v1323
      %v1325 = vmul.f32 %v1286, 1.442695
      %v1326 = vpow.pop %v1325
      %v1327 = vmul.f32 %v1287, 1.442695
      %v1328 = vpow.pop %v1327
      %v1329 = vmul.f32 %v1288, 1.442695
      %v1330 = vpow.pop %v1329
      %v1331 = vmul.f32 %v1289, 1.442695
      %v1332 = vpow.pop %v1331
      %v1333 = vmul.f32 %v1290, 1.442695
      %v1334 = vpow.pop %v1333
      %v1335 = vmul.f32 %v1291, 1.442695
      %v1336 = vpow.pop %v1335
      %v1337 = vmul.f32 %v1292, 1.442695
      %v1338 = vpow.pop %v1337
      %v1339 = vmul.f32 %v1293, 1.442695
      %v1340 = vpow.pop %v1339
      %v1341 = vmul.f32 %v1294, 1.442695
      %v1342 = vpow.pop %v1341
      %v1343 = vmul.f32 %v1295, 1.442695
      %v1344 = vpow.pop %v1343
      %v1345 = vmul.f32 %v1296, 1.442695
      %v1346 = vpow.pop %v1345
      %v1347 = vmul.f32 %v1297, 1.442695
      %v1348 = vpow.pop %v1347
      %v1349 = vmul.f32 %v1298, 1.442695
      %v1350 = vpow.pop %v1349
      %v1351 = vmul.f32 %v1299, 1.442695
      %v1352 = vpow.pop %v1351
      %v1353 = vmul.f32 %v1300, 1.442695
      %v1354 = vpow.pop %v1353
      %v1355 = vmul.f32 %v1301, 1.442695
      %v1356 = vpow.pop %v1355
      %v1357 = vmul.f32 %v1302, 1.442695
      %v1358 = vpow.pop %v1357
      %v1359 = vmul.f32 %v1303, 1.442695
      %v1360 = vpow.pop %v1359
      %v1361 = vmul.f32 %v1304, 1.442695
      %v1362 = vpow.pop %v1361
      %v1363 = vmul.f32 %v1305, 1.442695
      %v1364 = vpow.pop %v1363
      %v1365 = vmul.f32 %v1306, 1.442695
      %v1366 = vpow.pop %v1365
      %v1367 = vmul.f32 %v1307, 1.442695
      %v1368 = vpow.pop %v1367
      %v1369 = vmul.f32 %v1308, 1.442695
      %v1370 = vpow.pop %v1369
      %v1371 = vmul.f32 %v1309, 1.442695
      %v1372 = vpow.pop %v1371
      %v1373 = vmul.f32 %v1310, 1.442695
      %v1374 = vpow.pop %v1373
      %v1375 = vsel %vm1182, %v1312, 0.0
      %1376 = vadd.xlane.f32.xlu0 %v1375
      %v1377 = vpop.xlane.xlu0 %1376
      %v1378 = vsel %vm1182, %v1314, 0.0
      %1379 = vadd.xlane.f32.xlu0 %v1378
      %v1380 = vpop.xlane.xlu0 %1379
      %v1381 = vsel %vm1182, %v1316, 0.0
      %1382 = vadd.xlane.f32.xlu0 %v1381
      %v1383 = vpop.xlane.xlu0 %1382
      %v1384 = vsel %vm1182, %v1318, 0.0
      %1385 = vadd.xlane.f32.xlu0 %v1384
      %v1386 = vpop.xlane.xlu0 %1385
      %v1387 = vsel %vm1182, %v1320, 0.0
      %1388 = vadd.xlane.f32.xlu0 %v1387
      %v1389 = vpop.xlane.xlu0 %1388
      %v1390 = vsel %vm1182, %v1322, 0.0
      %1391 = vadd.xlane.f32.xlu0 %v1390
      %v1392 = vpop.xlane.xlu0 %1391
      %v1393 = vsel %vm1182, %v1324, 0.0
      %1394 = vadd.xlane.f32.xlu0 %v1393
      %v1395 = vpop.xlane.xlu0 %1394
      %v1396 = vsel %vm1182, %v1326, 0.0
      %1397 = vadd.xlane.f32.xlu0 %v1396
      %v1398 = vpop.xlane.xlu0 %1397
      %v1399 = vsel %vm1182, %v1328, 0.0
      %1400 = vadd.xlane.f32.xlu0 %v1399
      %v1401 = vpop.xlane.xlu0 %1400
      %v1402 = vsel %vm1182, %v1330, 0.0
      %1403 = vadd.xlane.f32.xlu0 %v1402
      %v1404 = vpop.xlane.xlu0 %1403
      %v1405 = vsel %vm1182, %v1332, 0.0
      %1406 = vadd.xlane.f32.xlu0 %v1405
      %v1407 = vpop.xlane.xlu0 %1406
      %v1408 = vsel %vm1182, %v1334, 0.0
      %1409 = vadd.xlane.f32.xlu0 %v1408
      %v1410 = vpop.xlane.xlu0 %1409
      %v1411 = vsel %vm1182, %v1336, 0.0
      %1412 = vadd.xlane.f32.xlu0 %v1411
      %v1413 = vpop.xlane.xlu0 %1412
      %v1414 = vsel %vm1182, %v1338, 0.0
      %1415 = vadd.xlane.f32.xlu0 %v1414
      %v1416 = vpop.xlane.xlu0 %1415
      %v1417 = vsel %vm1182, %v1340, 0.0
      %1418 = vadd.xlane.f32.xlu0 %v1417
      %v1419 = vpop.xlane.xlu0 %1418
      %v1420 = vsel %vm1182, %v1342, 0.0
      %1421 = vadd.xlane.f32.xlu0 %v1420
      %v1422 = vpop.xlane.xlu0 %1421
      %v1423 = vsel %vm1182, %v1344, 0.0
      %1424 = vadd.xlane.f32.xlu0 %v1423
      %v1425 = vpop.xlane.xlu0 %1424
      %v1426 = vsel %vm1182, %v1346, 0.0
      %1427 = vadd.xlane.f32.xlu0 %v1426
      %v1428 = vpop.xlane.xlu0 %1427
      %v1429 = vsel %vm1182, %v1348, 0.0
      %1430 = vadd.xlane.f32.xlu0 %v1429
      %v1431 = vpop.xlane.xlu0 %1430
      %v1432 = vsel %vm1182, %v1350, 0.0
      %1433 = vadd.xlane.f32.xlu0 %v1432
      %v1434 = vpop.xlane.xlu0 %1433
      %v1435 = vsel %vm1182, %v1352, 0.0
      %1436 = vadd.xlane.f32.xlu0 %v1435
      %v1437 = vpop.xlane.xlu0 %1436
      %v1438 = vsel %vm1182, %v1354, 0.0
      %1439 = vadd.xlane.f32.xlu0 %v1438
      %v1440 = vpop.xlane.xlu0 %1439
      %v1441 = vsel %vm1182, %v1356, 0.0
      %1442 = vadd.xlane.f32.xlu0 %v1441
      %v1443 = vpop.xlane.xlu0 %1442
      %v1444 = vsel %vm1182, %v1358, 0.0
      %1445 = vadd.xlane.f32.xlu0 %v1444
      %v1446 = vpop.xlane.xlu0 %1445
      %v1447 = vsel %vm1182, %v1360, 0.0
      %1448 = vadd.xlane.f32.xlu0 %v1447
      %v1449 = vpop.xlane.xlu0 %1448
      %v1450 = vsel %vm1182, %v1362, 0.0
      %1451 = vadd.xlane.f32.xlu0 %v1450
      %v1452 = vpop.xlane.xlu0 %1451
      %v1453 = vsel %vm1182, %v1364, 0.0
      %1454 = vadd.xlane.f32.xlu0 %v1453
      %v1455 = vpop.xlane.xlu0 %1454
      %v1456 = vsel %vm1182, %v1366, 0.0
      %1457 = vadd.xlane.f32.xlu0 %v1456
      %v1458 = vpop.xlane.xlu0 %1457
      %v1459 = vsel %vm1182, %v1368, 0.0
      %1460 = vadd.xlane.f32.xlu0 %v1459
      %v1461 = vpop.xlane.xlu0 %1460
      %v1462 = vsel %vm1182, %v1370, 0.0
      %1463 = vadd.xlane.f32.xlu0 %v1462
      %v1464 = vpop.xlane.xlu0 %1463
      %v1465 = vsel %vm1182, %v1372, 0.0
      %1466 = vadd.xlane.f32.xlu0 %v1465
      %v1467 = vpop.xlane.xlu0 %1466
      %v1468 = vsel %vm1182, %v1374, 0.0
      %1469 = vadd.xlane.f32.xlu0 %v1468
      %v1470 = vpop.xlane.xlu0 %1469
      %v1471 = vrcp.pop %v1377
      %v1472 = vrcp.pop %v1380
      %v1473 = vrcp.pop %v1383
      %v1474 = vrcp.pop %v1386
      %v1475 = vrcp.pop %v1389
      %v1476 = vrcp.pop %v1392
      %v1477 = vrcp.pop %v1395
      %v1478 = vrcp.pop %v1398
      %v1479 = vrcp.pop %v1401
      %v1480 = vrcp.pop %v1404
      %v1481 = vrcp.pop %v1407
      %v1482 = vrcp.pop %v1410
      %v1483 = vrcp.pop %v1413
      %v1484 = vrcp.pop %v1416
      %v1485 = vrcp.pop %v1419
      %v1486 = vrcp.pop %v1422
      %v1487 = vrcp.pop %v1425
      %v1488 = vrcp.pop %v1428
      %v1489 = vrcp.pop %v1431
      %v1490 = vrcp.pop %v1434
      %v1491 = vrcp.pop %v1437
      %v1492 = vrcp.pop %v1440
      %v1493 = vrcp.pop %v1443
      %v1494 = vrcp.pop %v1446
      %v1495 = vrcp.pop %v1449
      %v1496 = vrcp.pop %v1452
      %v1497 = vrcp.pop %v1455
      %v1498 = vrcp.pop %v1458
      %v1499 = vrcp.pop %v1461
      %v1500 = vrcp.pop %v1464
      %v1501 = vrcp.pop %v1467
      %v1502 = vrcp.pop %v1470
      %v1503 = vmul.f32 %v1312, %v1471
      %v1504 = vmul.f32 %v1314, %v1472
      %v1505 = vmul.f32 %v1316, %v1473
      %v1506 = vmul.f32 %v1318, %v1474
      %v1507 = vmul.f32 %v1320, %v1475
      %v1508 = vmul.f32 %v1322, %v1476
      %v1509 = vmul.f32 %v1324, %v1477
      %v1510 = vmul.f32 %v1326, %v1478
      %v1511 = vmul.f32 %v1328, %v1479
      %v1512 = vmul.f32 %v1330, %v1480
      %v1513 = vmul.f32 %v1332, %v1481
      %v1514 = vmul.f32 %v1334, %v1482
      %v1515 = vmul.f32 %v1336, %v1483
      %v1516 = vmul.f32 %v1338, %v1484
      %v1517 = vmul.f32 %v1340, %v1485
      %v1518 = vmul.f32 %v1342, %v1486
      %v1519 = vmul.f32 %v1344, %v1487
      %v1520 = vmul.f32 %v1346, %v1488
      %v1521 = vmul.f32 %v1348, %v1489
      %v1522 = vmul.f32 %v1350, %v1490
      %v1523 = vmul.f32 %v1352, %v1491
      %v1524 = vmul.f32 %v1354, %v1492
      %v1525 = vmul.f32 %v1356, %v1493
      %v1526 = vmul.f32 %v1358, %v1494
      %v1527 = vmul.f32 %v1360, %v1495
      %v1528 = vmul.f32 %v1362, %v1496
      %v1529 = vmul.f32 %v1364, %v1497
      %v1530 = vmul.f32 %v1366, %v1498
      %v1531 = vmul.f32 %v1368, %v1499
      %v1532 = vmul.f32 %v1370, %v1500
      %v1533 = vmul.f32 %v1372, %v1501
      %v1534 = vmul.f32 %v1374, %v1502
      %v1535 = vpack.c.bf16 %v1504, %v1503
      %v1536 = vpack.c.bf16 %v1506, %v1505
      %v1537 = vpack.c.bf16 %v1508, %v1507
      %v1538 = vpack.c.bf16 %v1510, %v1509
      %v1539 = vpack.c.bf16 %v1512, %v1511
      %v1540 = vpack.c.bf16 %v1514, %v1513
      %v1541 = vpack.c.bf16 %v1516, %v1515
      %v1542 = vpack.c.bf16 %v1518, %v1517
      %v1543 = vpack.c.bf16 %v1520, %v1519
      %v1544 = vpack.c.bf16 %v1522, %v1521
      %v1545 = vpack.c.bf16 %v1524, %v1523
      %v1546 = vpack.c.bf16 %v1526, %v1525
      %v1547 = vpack.c.bf16 %v1528, %v1527
      %v1548 = vpack.c.bf16 %v1530, %v1529
      %v1549 = vpack.c.bf16 %v1532, %v1531
      %v1550 = vpack.c.bf16 %v1534, %v1533
      %1551 = vrot.lane.b32.xlu0 %v601, 64
      %v1552 = vpop.permute.xlu0 %1551
      %1553 = vrot.lane.b32.xlu0 %v602, 64
      %v1554 = vpop.permute.xlu0 %1553
      %1555 = vrot.lane.b32.xlu0 %v603, 64
      %v1556 = vpop.permute.xlu0 %1555
      %1557 = vrot.lane.b32.xlu0 %v604, 64
      %v1558 = vpop.permute.xlu0 %1557
      %v1564 = vsel %vm1182, %v1535, 0
      %v1567 = vsel %vm1182, %v1536, 0
      %v1570 = vsel %vm1182, %v1537, 0
      %v1573 = vsel %vm1182, %v1538, 0
      %1575 = vmatprep.subr.bf16.mxu0 0
      %1576 = vmatpush1.bf16.msra.mxu0 %v1552
      %1577 = vmatprep.subr.bf16.mxu0 0
      %1578 = vmatpush1.bf16.msra.mxu0 %v1554
      %1579 = vmatprep.subr.bf16.mxu0 0
      %1580 = vmatpush1.bf16.msra.mxu0 %v1556
      %1581 = vmatprep.subr.bf16.mxu0 0
      %1582 = vmatpush1.bf16.msra.mxu0 %v1558
      %1583 = vmatprep.subr.bf16.mxu0 0
      %1584 = vmatpush1.bf16.msra.mxu0 0
      %1585 = vmatprep.subr.bf16.mxu0 0
      %1586 = vmatpush1.bf16.msra.mxu0 0
      %1587 = vmatprep.subr.bf16.mxu0 0
      %1588 = vmatpush1.bf16.msra.mxu0 0
      %1589 = vmatprep.subr.bf16.mxu0 0
      %1590 = vmatpush1.bf16.msra.mxu0 0
      %1591 = vmatprep.subr.bf16.mxu0 0
      %1592 = vmatpush1.bf16.msra.mxu0 0
      %1593 = vmatprep.subr.bf16.mxu0 0
      %1594 = vmatpush1.bf16.msra.mxu0 0
      %1595 = vmatprep.subr.bf16.mxu0 0
      %1596 = vmatpush1.bf16.msra.mxu0 0
      %1597 = vmatprep.subr.bf16.mxu0 0
      %1598 = vmatpush1.bf16.msra.mxu0 0
      %1599 = vmatprep.subr.bf16.mxu0 0
      %1600 = vmatpush1.bf16.msra.mxu0 0
      %1601 = vmatprep.subr.bf16.mxu0 0
      %1602 = vmatpush1.bf16.msra.mxu0 0
      %1603 = vmatprep.subr.bf16.mxu0 0
      %1604 = vmatpush1.bf16.msra.mxu0 0
      %1605 = vmatprep.subr.bf16.mxu0 0
      %1606 = vmatpush1.bf16.msra.mxu0 0
      %1607 = vmatprep.mubr.bf16.mxu0 0
      %1608 = vmatmul.mubr.bf16.gmra.mrb[0].mxu0 %v1564
      %v1609 = vpop.f32.mrb[0].mxu0
      %v1610 = vadd.f32 0.0, %v1609
      %v1611 = vpop.f32.mrb[0].mxu0
      %v1612 = vpop.f32.mrb[0].mxu0
      %v1613 = vadd.f32 0.0, %v1612
      %v1614 = vpop.f32.mrb[0].mxu0
      %1615 = vmatprep.mubr.bf16.mxu0 0
      %1616 = vmatmul.mubr.bf16.gmra.mrb[0].mxu0 %v1567
      %v1617 = vpop.f32.mrb[0].mxu0
      %v1618 = vadd.f32 0.0, %v1617
      %v1619 = vpop.f32.mrb[0].mxu0
      %v1620 = vpop.f32.mrb[0].mxu0
      %v1621 = vadd.f32 0.0, %v1620
      %v1622 = vpop.f32.mrb[0].mxu0
      %1623 = vmatprep.mubr.bf16.mxu0 0
      %1624 = vmatmul.mubr.bf16.gmra.mrb[0].mxu0 %v1570
      %v1625 = vpop.f32.mrb[0].mxu0
      %v1626 = vadd.f32 0.0, %v1625
      %v1627 = vpop.f32.mrb[0].mxu0
      %v1628 = vpop.f32.mrb[0].mxu0
      %v1629 = vadd.f32 0.0, %v1628
      %v1630 = vpop.f32.mrb[0].mxu0
      %1631 = vmatprep.mubr.bf16.mxu0 0
      %1632 = vmatmul.mubr.bf16.gmra.mrb[0].mxu0 %v1573
      %v1633 = vpop.f32.mrb[0].mxu0
      %v1634 = vadd.f32 0.0, %v1633
      %v1635 = vpop.f32.mrb[0].mxu0
      %v1636 = vpop.f32.mrb[0].mxu0
      %v1637 = vadd.f32 0.0, %v1636
      %v1638 = vpop.f32.mrb[0].mxu0
      %1639 = vdwg.mxu0
      %1640 = vrot.lane.b32.xlu0 %v605, 64
      %v1641 = vpop.permute.xlu0 %1640
      %1642 = vrot.lane.b32.xlu0 %v606, 64
      %v1643 = vpop.permute.xlu0 %1642
      %1644 = vrot.lane.b32.xlu0 %v607, 64
      %v1645 = vpop.permute.xlu0 %1644
      %1646 = vrot.lane.b32.xlu0 %v608, 64
      %v1647 = vpop.permute.xlu0 %1646
      %v1653 = vsel %vm1182, %v1539, 0
      %v1656 = vsel %vm1182, %v1540, 0
      %v1659 = vsel %vm1182, %v1541, 0
      %v1662 = vsel %vm1182, %v1542, 0
      %1664 = vmatprep.subr.bf16.mxu0 0
      %1665 = vmatpush1.bf16.msra.mxu0 %v1641
      %1666 = vmatprep.subr.bf16.mxu0 0
      %1667 = vmatpush1.bf16.msra.mxu0 %v1643
      %1668 = vmatprep.subr.bf16.mxu0 0
      %1669 = vmatpush1.bf16.msra.mxu0 %v1645
      %1670 = vmatprep.subr.bf16.mxu0 0
      %1671 = vmatpush1.bf16.msra.mxu0 %v1647
      %1672 = vmatprep.subr.bf16.mxu0 0
      %1673 = vmatpush1.bf16.msra.mxu0 0
      %1674 = vmatprep.subr.bf16.mxu0 0
      %1675 = vmatpush1.bf16.msra.mxu0 0
      %1676 = vmatprep.subr.bf16.mxu0 0
      %1677 = vmatpush1.bf16.msra.mxu0 0
      %1678 = vmatprep.subr.bf16.mxu0 0
      %1679 = vmatpush1.bf16.msra.mxu0 0
      %1680 = vmatprep.subr.bf16.mxu0 0
      %1681 = vmatpush1.bf16.msra.mxu0 0
      %1682 = vmatprep.subr.bf16.mxu0 0
      %1683 = vmatpush1.bf16.msra.mxu0 0
      %1684 = vmatprep.subr.bf16.mxu0 0
      %1685 = vmatpush1.bf16.msra.mxu0 0
      %1686 = vmatprep.subr.bf16.mxu0 0
      %1687 = vmatpush1.bf16.msra.mxu0 0
      %1688 = vmatprep.subr.bf16.mxu0 0
      %1689 = vmatpush1.bf16.msra.mxu0 0
      %1690 = vmatprep.subr.bf16.mxu0 0
      %1691 = vmatpush1.bf16.msra.mxu0 0
      %1692 = vmatprep.subr.bf16.mxu0 0
      %1693 = vmatpush1.bf16.msra.mxu0 0
      %1694 = vmatprep.subr.bf16.mxu0 0
      %1695 = vmatpush1.bf16.msra.mxu0 0
      %1696 = vmatprep.mubr.bf16.mxu0 0
      %1697 = vmatmul.mubr.bf16.gmra.mrb[0].mxu0 %v1653
      %v1698 = vpop.f32.mrb[0].mxu0
      %v1699 = vadd.f32 0.0, %v1698
      %v1700 = vpop.f32.mrb[0].mxu0
      %v1701 = vpop.f32.mrb[0].mxu0
      %v1702 = vadd.f32 0.0, %v1701
      %v1703 = vpop.f32.mrb[0].mxu0
      %1704 = vmatprep.mubr.bf16.mxu0 0
      %1705 = vmatmul.mubr.bf16.gmra.mrb[0].mxu0 %v1656
      %v1706 = vpop.f32.mrb[0].mxu0
      %v1707 = vadd.f32 0.0, %v1706
      %v1708 = vpop.f32.mrb[0].mxu0
      %v1709 = vpop.f32.mrb[0].mxu0
      %v1710 = vadd.f32 0.0, %v1709
      %v1711 = vpop.f32.mrb[0].mxu0
      %1712 = vmatprep.mubr.bf16.mxu0 0
      %1713 = vmatmul.mubr.bf16.gmra.mrb[0].mxu0 %v1659
      %v1714 = vpop.f32.mrb[0].mxu0
      %v1715 = vadd.f32 0.0, %v1714
      %v1716 = vpop.f32.mrb[0].mxu0
      %v1717 = vpop.f32.mrb[0].mxu0
      %v1718 = vadd.f32 0.0, %v1717
      %v1719 = vpop.f32.mrb[0].mxu0
      %1720 = vmatprep.mubr.bf16.mxu0 0
      %1721 = vmatmul.mubr.bf16.gmra.mrb[0].mxu0 %v1662
      %v1722 = vpop.f32.mrb[0].mxu0
      %v1723 = vadd.f32 0.0, %v1722
      %v1724 = vpop.f32.mrb[0].mxu0
      %v1725 = vpop.f32.mrb[0].mxu0
      %v1726 = vadd.f32 0.0, %v1725
      %v1727 = vpop.f32.mrb[0].mxu0
      %1728 = vdwg.mxu0
      %1729 = vrot.lane.b32.xlu0 %v609, 64
      %v1730 = vpop.permute.xlu0 %1729
      %1731 = vrot.lane.b32.xlu0 %v610, 64
      %v1732 = vpop.permute.xlu0 %1731
      %1733 = vrot.lane.b32.xlu0 %v611, 64
      %v1734 = vpop.permute.xlu0 %1733
      %1735 = vrot.lane.b32.xlu0 %v612, 64
      %v1736 = vpop.permute.xlu0 %1735
      %v1742 = vsel %vm1182, %v1543, 0
      %v1745 = vsel %vm1182, %v1544, 0
      %v1748 = vsel %vm1182, %v1545, 0
      %v1751 = vsel %vm1182, %v1546, 0
      %1753 = vmatprep.subr.bf16.mxu0 0
      %1754 = vmatpush1.bf16.msra.mxu0 %v1730
      %1755 = vmatprep.subr.bf16.mxu0 0
      %1756 = vmatpush1.bf16.msra.mxu0 %v1732
      %1757 = vmatprep.subr.bf16.mxu0 0
      %1758 = vmatpush1.bf16.msra.mxu0 %v1734
      %1759 = vmatprep.subr.bf16.mxu0 0
      %1760 = vmatpush1.bf16.msra.mxu0 %v1736
      %1761 = vmatprep.subr.bf16.mxu0 0
      %1762 = vmatpush1.bf16.msra.mxu0 0
      %1763 = vmatprep.subr.bf16.mxu0 0
      %1764 = vmatpush1.bf16.msra.mxu0 0
      %1765 = vmatprep.subr.bf16.mxu0 0
      %1766 = vmatpush1.bf16.msra.mxu0 0
      %1767 = vmatprep.subr.bf16.mxu0 0
      %1768 = vmatpush1.bf16.msra.mxu0 0
      %1769 = vmatprep.subr.bf16.mxu0 0
      %1770 = vmatpush1.bf16.msra.mxu0 0
      %1771 = vmatprep.subr.bf16.mxu0 0
      %1772 = vmatpush1.bf16.msra.mxu0 0
      %1773 = vmatprep.subr.bf16.mxu0 0
      %1774 = vmatpush1.bf16.msra.mxu0 0
      %1775 = vmatprep.subr.bf16.mxu0 0
      %1776 = vmatpush1.bf16.msra.mxu0 0
      %1777 = vmatprep.subr.bf16.mxu0 0
      %1778 = vmatpush1.bf16.msra.mxu0 0
      %1779 = vmatprep.subr.bf16.mxu0 0
      %1780 = vmatpush1.bf16.msra.mxu0 0
      %1781 = vmatprep.subr.bf16.mxu0 0
      %1782 = vmatpush1.bf16.msra.mxu0 0
      %1783 = vmatprep.subr.bf16.mxu0 0
      %1784 = vmatpush1.bf16.msra.mxu0 0
      %1785 = vmatprep.mubr.bf16.mxu0 0
      %1786 = vmatmul.mubr.bf16.gmra.mrb[0].mxu0 %v1742
      %v1787 = vpop.f32.mrb[0].mxu0
      %v1788 = vadd.f32 0.0, %v1787
      %v1789 = vpop.f32.mrb[0].mxu0
      %v1790 = vpop.f32.mrb[0].mxu0
      %v1791 = vadd.f32 0.0, %v1790
      %v1792 = vpop.f32.mrb[0].mxu0
      %1793 = vmatprep.mubr.bf16.mxu0 0
      %1794 = vmatmul.mubr.bf16.gmra.mrb[0].mxu0 %v1745
      %v1795 = vpop.f32.mrb[0].mxu0
      %v1796 = vadd.f32 0.0, %v1795
      %v1797 = vpop.f32.mrb[0].mxu0
      %v1798 = vpop.f32.mrb[0].mxu0
      %v1799 = vadd.f32 0.0, %v1798
      %v1800 = vpop.f32.mrb[0].mxu0
      %1801 = vmatprep.mubr.bf16.mxu0 0
      %1802 = vmatmul.mubr.bf16.gmra.mrb[0].mxu0 %v1748
      %v1803 = vpop.f32.mrb[0].mxu0
      %v1804 = vadd.f32 0.0, %v1803
      %v1805 = vpop.f32.mrb[0].mxu0
      %v1806 = vpop.f32.mrb[0].mxu0
      %v1807 = vadd.f32 0.0, %v1806
      %v1808 = vpop.f32.mrb[0].mxu0
      %1809 = vmatprep.mubr.bf16.mxu0 0
      %1810 = vmatmul.mubr.bf16.gmra.mrb[0].mxu0 %v1751
      %v1811 = vpop.f32.mrb[0].mxu0
      %v1812 = vadd.f32 0.0, %v1811
      %v1813 = vpop.f32.mrb[0].mxu0
      %v1814 = vpop.f32.mrb[0].mxu0
      %v1815 = vadd.f32 0.0, %v1814
      %v1816 = vpop.f32.mrb[0].mxu0
      %1817 = vdwg.mxu0
      %1818 = vrot.lane.b32.xlu0 %v613, 64
      %v1819 = vpop.permute.xlu0 %1818
      %1820 = vrot.lane.b32.xlu0 %v614, 64
      %v1821 = vpop.permute.xlu0 %1820
      %1822 = vrot.lane.b32.xlu0 %v615, 64
      %v1823 = vpop.permute.xlu0 %1822
      %1824 = vrot.lane.b32.xlu0 %v616, 64
      %v1825 = vpop.permute.xlu0 %1824
      %v1831 = vsel %vm1182, %v1547, 0
      %v1834 = vsel %vm1182, %v1548, 0
      %v1837 = vsel %vm1182, %v1549, 0
      %v1840 = vsel %vm1182, %v1550, 0
      %1842 = vmatprep.subr.bf16.mxu0 0
      %1843 = vmatpush1.bf16.msra.mxu0 %v1819
      %1844 = vmatprep.subr.bf16.mxu0 0
      %1845 = vmatpush1.bf16.msra.mxu0 %v1821
      %1846 = vmatprep.subr.bf16.mxu0 0
      %1847 = vmatpush1.bf16.msra.mxu0 %v1823
      %1848 = vmatprep.subr.bf16.mxu0 0
      %1849 = vmatpush1.bf16.msra.mxu0 %v1825
      %1850 = vmatprep.subr.bf16.mxu0 0
      %1851 = vmatpush1.bf16.msra.mxu0 0
      %1852 = vmatprep.subr.bf16.mxu0 0
      %1853 = vmatpush1.bf16.msra.mxu0 0
      %1854 = vmatprep.subr.bf16.mxu0 0
      %1855 = vmatpush1.bf16.msra.mxu0 0
      %1856 = vmatprep.subr.bf16.mxu0 0
      %1857 = vmatpush1.bf16.msra.mxu0 0
      %1858 = vmatprep.subr.bf16.mxu0 0
      %1859 = vmatpush1.bf16.msra.mxu0 0
      %1860 = vmatprep.subr.bf16.mxu0 0
      %1861 = vmatpush1.bf16.msra.mxu0 0
      %1862 = vmatprep.subr.bf16.mxu0 0
      %1863 = vmatpush1.bf16.msra.mxu0 0
      %1864 = vmatprep.subr.bf16.mxu0 0
      %1865 = vmatpush1.bf16.msra.mxu0 0
      %1866 = vmatprep.subr.bf16.mxu0 0
      %1867 = vmatpush1.bf16.msra.mxu0 0
      %1868 = vmatprep.subr.bf16.mxu0 0
      %1869 = vmatpush1.bf16.msra.mxu0 0
      %1870 = vmatprep.subr.bf16.mxu0 0
      %1871 = vmatpush1.bf16.msra.mxu0 0
      %1872 = vmatprep.subr.bf16.mxu0 0
      %1873 = vmatpush1.bf16.msra.mxu0 0
      %1874 = vmatprep.mubr.bf16.mxu0 0
      %1875 = vmatmul.mubr.bf16.gmra.mrb[0].mxu0 %v1831
      %v1876 = vpop.f32.mrb[0].mxu0
      %v1877 = vadd.f32 0.0, %v1876
      %v1878 = vpop.f32.mrb[0].mxu0
      %v1879 = vpop.f32.mrb[0].mxu0
      %v1880 = vadd.f32 0.0, %v1879
      %v1881 = vpop.f32.mrb[0].mxu0
      %1882 = vmatprep.mubr.bf16.mxu0 0
      %1883 = vmatmul.mubr.bf16.gmra.mrb[0].mxu0 %v1834
      %v1884 = vpop.f32.mrb[0].mxu0
      %v1885 = vadd.f32 0.0, %v1884
      %v1886 = vpop.f32.mrb[0].mxu0
      %v1887 = vpop.f32.mrb[0].mxu0
      %v1888 = vadd.f32 0.0, %v1887
      %v1889 = vpop.f32.mrb[0].mxu0
      %1890 = vmatprep.mubr.bf16.mxu0 0
      %1891 = vmatmul.mubr.bf16.gmra.mrb[0].mxu0 %v1837
      %v1892 = vpop.f32.mrb[0].mxu0
      %v1893 = vadd.f32 0.0, %v1892
      %v1894 = vpop.f32.mrb[0].mxu0
      %v1895 = vpop.f32.mrb[0].mxu0
      %v1896 = vadd.f32 0.0, %v1895
      %v1897 = vpop.f32.mrb[0].mxu0
      %1898 = vmatprep.mubr.bf16.mxu0 0
      %1899 = vmatmul.mubr.bf16.gmra.mrb[0].mxu0 %v1840
      %v1900 = vpop.f32.mrb[0].mxu0
      %v1901 = vadd.f32 0.0, %v1900
      %v1902 = vpop.f32.mrb[0].mxu0
      %v1903 = vpop.f32.mrb[0].mxu0
      %v1904 = vadd.f32 0.0, %v1903
      %v1905 = vpop.f32.mrb[0].mxu0
      %1906 = vdwg.mxu0
      %1907 = vrot.lane.b32.xlu0 %v601, 120
      %v1908 = vpop.permute.xlu0 %1907
      %1909 = vrot.lane.b32.xlu0 %v602, 120
      %v1910 = vpop.permute.xlu0 %1909
      %1911 = vrot.lane.b32.xlu0 %v603, 120
      %v1912 = vpop.permute.xlu0 %1911
      %1913 = vrot.lane.b32.xlu0 %v604, 120
      %v1914 = vpop.permute.xlu0 %1913
      %1915 = vrot.lane.b32.xlu0 %v601, 88
      %v1916 = vpop.permute.xlu0 %1915
      %1917 = vrot.lane.b32.xlu0 %v602, 88
      %v1918 = vpop.permute.xlu0 %1917
      %1919 = vrot.lane.b32.xlu0 %v603, 88
      %v1920 = vpop.permute.xlu0 %1919
      %1921 = vrot.lane.b32.xlu0 %v604, 88
      %v1922 = vpop.permute.xlu0 %1921
      %v1924 = vsel %vm693, %v1908, 0
      %v1927 = vsel %vm693, %v1910, 0
      %v1930 = vsel %vm693, %v1912, 0
      %v1933 = vsel %vm693, %v1914, 0
      %v1936 = vsel %vm693, %v1916, 0
      %v1939 = vsel %vm693, %v1918, 0
      %v1942 = vsel %vm693, %v1920, 0
      %v1945 = vsel %vm693, %v1922, 0
      %1947 = vmatprep.subr.bf16.mxu0 0
      %1948 = vmatpush1.bf16.xpose.msra.mxu0 %v1936
      %1949 = vmatprep.subr.bf16.mxu0 0
      %1950 = vmatpush1.bf16.xpose.msra.mxu0 %v1939
      %1951 = vmatprep.subr.bf16.mxu0 0
      %1952 = vmatpush1.bf16.xpose.msra.mxu0 %v1942
      %1953 = vmatprep.subr.bf16.mxu0 0
      %1954 = vmatpush1.bf16.xpose.msra.mxu0 %v1945
      %1955 = vmatprep.subr.bf16.mxu0 0
      %1956 = vmatpush1.bf16.xpose.msra.mxu0 0
      %1957 = vmatprep.subr.bf16.mxu0 0
      %1958 = vmatpush1.bf16.xpose.msra.mxu0 0
      %1959 = vmatprep.subr.bf16.mxu0 0
      %1960 = vmatpush1.bf16.xpose.msra.mxu0 0
      %1961 = vmatprep.subr.bf16.mxu0 0
      %1962 = vmatpush1.bf16.xpose.msra.mxu0 0
      %1963 = vmatprep.subr.bf16.mxu0 0
      %1964 = vmatpush1.bf16.xpose.msra.mxu0 0
      %1965 = vmatprep.subr.bf16.mxu0 0
      %1966 = vmatpush1.bf16.xpose.msra.mxu0 0
      %1967 = vmatprep.subr.bf16.mxu0 0
      %1968 = vmatpush1.bf16.xpose.msra.mxu0 0
      %1969 = vmatprep.subr.bf16.mxu0 0
      %1970 = vmatpush1.bf16.xpose.msra.mxu0 0
      %1971 = vmatprep.subr.bf16.mxu0 0
      %1972 = vmatpush1.bf16.xpose.msra.mxu0 0
      %1973 = vmatprep.subr.bf16.mxu0 0
      %1974 = vmatpush1.bf16.xpose.msra.mxu0 0
      %1975 = vmatprep.subr.bf16.mxu0 0
      %1976 = vmatpush1.bf16.xpose.msra.mxu0 0
      %1977 = vmatprep.subr.bf16.mxu0 0
      %1978 = vmatpush1.bf16.xpose.msra.mxu0 0
      %1979 = vmatprep.mubr.bf16.mxu0 0
      %1980 = vmatmul.mubr.bf16.gmra.mrb[0].mxu0 %v1924
      %v1981 = vpop.f32.mrb[0].mxu0
      %v1982 = vadd.f32 0.0, %v1981
      %v1983 = vpop.f32.mrb[0].mxu0
      %v1984 = vpop.f32.mrb[0].mxu0
      %v1985 = vadd.f32 0.0, %v1984
      %v1986 = vpop.f32.mrb[0].mxu0
      %1987 = vmatprep.mubr.bf16.mxu0 0
      %1988 = vmatmul.mubr.bf16.gmra.mrb[0].mxu0 %v1927
      %v1989 = vpop.f32.mrb[0].mxu0
      %v1990 = vadd.f32 0.0, %v1989
      %v1991 = vpop.f32.mrb[0].mxu0
      %v1992 = vpop.f32.mrb[0].mxu0
      %v1993 = vadd.f32 0.0, %v1992
      %v1994 = vpop.f32.mrb[0].mxu0
      %1995 = vmatprep.mubr.bf16.mxu0 0
      %1996 = vmatmul.mubr.bf16.gmra.mrb[0].mxu0 %v1930
      %v1997 = vpop.f32.mrb[0].mxu0
      %v1998 = vadd.f32 0.0, %v1997
      %v1999 = vpop.f32.mrb[0].mxu0
      %v2000 = vpop.f32.mrb[0].mxu0
      %v2001 = vadd.f32 0.0, %v2000
      %v2002 = vpop.f32.mrb[0].mxu0
      %2003 = vmatprep.mubr.bf16.mxu0 0
      %2004 = vmatmul.mubr.bf16.gmra.mrb[0].mxu0 %v1933
      %v2005 = vpop.f32.mrb[0].mxu0
      %v2006 = vadd.f32 0.0, %v2005
      %v2007 = vpop.f32.mrb[0].mxu0
      %v2008 = vpop.f32.mrb[0].mxu0
      %v2009 = vadd.f32 0.0, %v2008
      %v2010 = vpop.f32.mrb[0].mxu0
      %2011 = vdwg.mxu0
      %2012 = vrot.lane.b32.xlu0 %v605, 120
      %v2013 = vpop.permute.xlu0 %2012
      %2014 = vrot.lane.b32.xlu0 %v606, 120
      %v2015 = vpop.permute.xlu0 %2014
      %2016 = vrot.lane.b32.xlu0 %v607, 120
      %v2017 = vpop.permute.xlu0 %2016
      %2018 = vrot.lane.b32.xlu0 %v608, 120
      %v2019 = vpop.permute.xlu0 %2018
      %2020 = vrot.lane.b32.xlu0 %v605, 88
      %v2021 = vpop.permute.xlu0 %2020
      %2022 = vrot.lane.b32.xlu0 %v606, 88
      %v2023 = vpop.permute.xlu0 %2022
      %2024 = vrot.lane.b32.xlu0 %v607, 88
      %v2025 = vpop.permute.xlu0 %2024
      %2026 = vrot.lane.b32.xlu0 %v608, 88
      %v2027 = vpop.permute.xlu0 %2026
      %v2029 = vsel %vm693, %v2013, 0
      %v2032 = vsel %vm693, %v2015, 0
      %v2035 = vsel %vm693, %v2017, 0
      %v2038 = vsel %vm693, %v2019, 0
      %v2041 = vsel %vm693, %v2021, 0
      %v2044 = vsel %vm693, %v2023, 0
      %v2047 = vsel %vm693, %v2025, 0
      %v2050 = vsel %vm693, %v2027, 0
      %2052 = vmatprep.subr.bf16.mxu0 0
      %2053 = vmatpush1.bf16.xpose.msra.mxu0 %v2041
      %2054 = vmatprep.subr.bf16.mxu0 0
      %2055 = vmatpush1.bf16.xpose.msra.mxu0 %v2044
      %2056 = vmatprep.subr.bf16.mxu0 0
      %2057 = vmatpush1.bf16.xpose.msra.mxu0 %v2047
      %2058 = vmatprep.subr.bf16.mxu0 0
      %2059 = vmatpush1.bf16.xpose.msra.mxu0 %v2050
      %2060 = vmatprep.subr.bf16.mxu0 0
      %2061 = vmatpush1.bf16.xpose.msra.mxu0 0
      %2062 = vmatprep.subr.bf16.mxu0 0
      %2063 = vmatpush1.bf16.xpose.msra.mxu0 0
      %2064 = vmatprep.subr.bf16.mxu0 0
      %2065 = vmatpush1.bf16.xpose.msra.mxu0 0
      %2066 = vmatprep.subr.bf16.mxu0 0
      %2067 = vmatpush1.bf16.xpose.msra.mxu0 0
      %2068 = vmatprep.subr.bf16.mxu0 0
      %2069 = vmatpush1.bf16.xpose.msra.mxu0 0
      %2070 = vmatprep.subr.bf16.mxu0 0
      %2071 = vmatpush1.bf16.xpose.msra.mxu0 0
      %2072 = vmatprep.subr.bf16.mxu0 0
      %2073 = vmatpush1.bf16.xpose.msra.mxu0 0
      %2074 = vmatprep.subr.bf16.mxu0 0
      %2075 = vmatpush1.bf16.xpose.msra.mxu0 0
      %2076 = vmatprep.subr.bf16.mxu0 0
      %2077 = vmatpush1.bf16.xpose.msra.mxu0 0
      %2078 = vmatprep.subr.bf16.mxu0 0
      %2079 = vmatpush1.bf16.xpose.msra.mxu0 0
      %2080 = vmatprep.subr.bf16.mxu0 0
      %2081 = vmatpush1.bf16.xpose.msra.mxu0 0
      %2082 = vmatprep.subr.bf16.mxu0 0
      %2083 = vmatpush1.bf16.xpose.msra.mxu0 0
      %2084 = vmatprep.mubr.bf16.mxu0 0
      %2085 = vmatmul.mubr.bf16.gmra.mrb[0].mxu0 %v2029
      %v2086 = vpop.f32.mrb[0].mxu0
      %v2087 = vadd.f32 0.0, %v2086
      %v2088 = vpop.f32.mrb[0].mxu0
      %v2089 = vpop.f32.mrb[0].mxu0
      %v2090 = vadd.f32 0.0, %v2089
      %v2091 = vpop.f32.mrb[0].mxu0
      %2092 = vmatprep.mubr.bf16.mxu0 0
      %2093 = vmatmul.mubr.bf16.gmra.mrb[0].mxu0 %v2032
      %v2094 = vpop.f32.mrb[0].mxu0
      %v2095 = vadd.f32 0.0, %v2094
      %v2096 = vpop.f32.mrb[0].mxu0
      %v2097 = vpop.f32.mrb[0].mxu0
      %v2098 = vadd.f32 0.0, %v2097
      %v2099 = vpop.f32.mrb[0].mxu0
      %2100 = vmatprep.mubr.bf16.mxu0 0
      %2101 = vmatmul.mubr.bf16.gmra.mrb[0].mxu0 %v2035
      %v2102 = vpop.f32.mrb[0].mxu0
      %v2103 = vadd.f32 0.0, %v2102
      %v2104 = vpop.f32.mrb[0].mxu0
      %v2105 = vpop.f32.mrb[0].mxu0
      %v2106 = vadd.f32 0.0, %v2105
      %v2107 = vpop.f32.mrb[0].mxu0
      %2108 = vmatprep.mubr.bf16.mxu0 0
      %2109 = vmatmul.mubr.bf16.gmra.mrb[0].mxu0 %v2038
      %v2110 = vpop.f32.mrb[0].mxu0
      %v2111 = vadd.f32 0.0, %v2110
      %v2112 = vpop.f32.mrb[0].mxu0
      %v2113 = vpop.f32.mrb[0].mxu0
      %v2114 = vadd.f32 0.0, %v2113
      %v2115 = vpop.f32.mrb[0].mxu0
      %2116 = vdwg.mxu0
      %2117 = vrot.lane.b32.xlu0 %v609, 120
      %v2118 = vpop.permute.xlu0 %2117
      %2119 = vrot.lane.b32.xlu0 %v610, 120
      %v2120 = vpop.permute.xlu0 %2119
      %2121 = vrot.lane.b32.xlu0 %v611, 120
      %v2122 = vpop.permute.xlu0 %2121
      %2123 = vrot.lane.b32.xlu0 %v612, 120
      %v2124 = vpop.permute.xlu0 %2123
      %2125 = vrot.lane.b32.xlu0 %v609, 88
      %v2126 = vpop.permute.xlu0 %2125
      %2127 = vrot.lane.b32.xlu0 %v610, 88
      %v2128 = vpop.permute.xlu0 %2127
      %2129 = vrot.lane.b32.xlu0 %v611, 88
      %v2130 = vpop.permute.xlu0 %2129
      %2131 = vrot.lane.b32.xlu0 %v612, 88
      %v2132 = vpop.permute.xlu0 %2131
      %v2134 = vsel %vm693, %v2118, 0
      %v2137 = vsel %vm693, %v2120, 0
      %v2140 = vsel %vm693, %v2122, 0
      %v2143 = vsel %vm693, %v2124, 0
      %v2146 = vsel %vm693, %v2126, 0
      %v2149 = vsel %vm693, %v2128, 0
      %v2152 = vsel %vm693, %v2130, 0
      %v2155 = vsel %vm693, %v2132, 0
      %2157 = vmatprep.subr.bf16.mxu0 0
      %2158 = vmatpush1.bf16.xpose.msra.mxu0 %v2146
      %2159 = vmatprep.subr.bf16.mxu0 0
      %2160 = vmatpush1.bf16.xpose.msra.mxu0 %v2149
      %2161 = vmatprep.subr.bf16.mxu0 0
      %2162 = vmatpush1.bf16.xpose.msra.mxu0 %v2152
      %2163 = vmatprep.subr.bf16.mxu0 0
      %2164 = vmatpush1.bf16.xpose.msra.mxu0 %v2155
      %2165 = vmatprep.subr.bf16.mxu0 0
      %2166 = vmatpush1.bf16.xpose.msra.mxu0 0
      %2167 = vmatprep.subr.bf16.mxu0 0
      %2168 = vmatpush1.bf16.xpose.msra.mxu0 0
      %2169 = vmatprep.subr.bf16.mxu0 0
      %2170 = vmatpush1.bf16.xpose.msra.mxu0 0
      %2171 = vmatprep.subr.bf16.mxu0 0
      %2172 = vmatpush1.bf16.xpose.msra.mxu0 0
      %2173 = vmatprep.subr.bf16.mxu0 0
      %2174 = vmatpush1.bf16.xpose.msra.mxu0 0
      %2175 = vmatprep.subr.bf16.mxu0 0
      %2176 = vmatpush1.bf16.xpose.msra.mxu0 0
      %2177 = vmatprep.subr.bf16.mxu0 0
      %2178 = vmatpush1.bf16.xpose.msra.mxu0 0
      %2179 = vmatprep.subr.bf16.mxu0 0
      %2180 = vmatpush1.bf16.xpose.msra.mxu0 0
      %2181 = vmatprep.subr.bf16.mxu0 0
      %2182 = vmatpush1.bf16.xpose.msra.mxu0 0
      %2183 = vmatprep.subr.bf16.mxu0 0
      %2184 = vmatpush1.bf16.xpose.msra.mxu0 0
      %2185 = vmatprep.subr.bf16.mxu0 0
      %2186 = vmatpush1.bf16.xpose.msra.mxu0 0
      %2187 = vmatprep.subr.bf16.mxu0 0
      %2188 = vmatpush1.bf16.xpose.msra.mxu0 0
      %2189 = vmatprep.mubr.bf16.mxu0 0
      %2190 = vmatmul.mubr.bf16.gmra.mrb[0].mxu0 %v2134
      %v2191 = vpop.f32.mrb[0].mxu0
      %v2192 = vadd.f32 0.0, %v2191
      %v2193 = vpop.f32.mrb[0].mxu0
      %v2194 = vpop.f32.mrb[0].mxu0
      %v2195 = vadd.f32 0.0, %v2194
      %v2196 = vpop.f32.mrb[0].mxu0
      %2197 = vmatprep.mubr.bf16.mxu0 0
      %2198 = vmatmul.mubr.bf16.gmra.mrb[0].mxu0 %v2137
      %v2199 = vpop.f32.mrb[0].mxu0
      %v2200 = vadd.f32 0.0, %v2199
      %v2201 = vpop.f32.mrb[0].mxu0
      %v2202 = vpop.f32.mrb[0].mxu0
      %v2203 = vadd.f32 0.0, %v2202
      %v2204 = vpop.f32.mrb[0].mxu0
      %2205 = vmatprep.mubr.bf16.mxu0 0
      %2206 = vmatmul.mubr.bf16.gmra.mrb[0].mxu0 %v2140
      %v2207 = vpop.f32.mrb[0].mxu0
      %v2208 = vadd.f32 0.0, %v2207
      %v2209 = vpop.f32.mrb[0].mxu0
      %v2210 = vpop.f32.mrb[0].mxu0
      %v2211 = vadd.f32 0.0, %v2210
      %v2212 = vpop.f32.mrb[0].mxu0
      %2213 = vmatprep.mubr.bf16.mxu0 0
      %2214 = vmatmul.mubr.bf16.gmra.mrb[0].mxu0 %v2143
      %v2215 = vpop.f32.mrb[0].mxu0
      %v2216 = vadd.f32 0.0, %v2215
      %v2217 = vpop.f32.mrb[0].mxu0
      %v2218 = vpop.f32.mrb[0].mxu0
      %v2219 = vadd.f32 0.0, %v2218
      %v2220 = vpop.f32.mrb[0].mxu0
      %2221 = vdwg.mxu0
      %2222 = vrot.lane.b32.xlu0 %v613, 120
      %v2223 = vpop.permute.xlu0 %2222
      %2224 = vrot.lane.b32.xlu0 %v614, 120
      %v2225 = vpop.permute.xlu0 %2224
      %2226 = vrot.lane.b32.xlu0 %v615, 120
      %v2227 = vpop.permute.xlu0 %2226
      %2228 = vrot.lane.b32.xlu0 %v616, 120
      %v2229 = vpop.permute.xlu0 %2228
      %2230 = vrot.lane.b32.xlu0 %v613, 88
      %v2231 = vpop.permute.xlu0 %2230
      %2232 = vrot.lane.b32.xlu0 %v614, 88
      %v2233 = vpop.permute.xlu0 %2232
      %2234 = vrot.lane.b32.xlu0 %v615, 88
      %v2235 = vpop.permute.xlu0 %2234
      %2236 = vrot.lane.b32.xlu0 %v616, 88
      %v2237 = vpop.permute.xlu0 %2236
      %v2239 = vsel %vm693, %v2223, 0
      %v2242 = vsel %vm693, %v2225, 0
      %v2245 = vsel %vm693, %v2227, 0
      %v2248 = vsel %vm693, %v2229, 0
      %v2251 = vsel %vm693, %v2231, 0
      %v2254 = vsel %vm693, %v2233, 0
      %v2257 = vsel %vm693, %v2235, 0
      %v2260 = vsel %vm693, %v2237, 0
      %2262 = vmatprep.subr.bf16.mxu0 0
      %2263 = vmatpush1.bf16.xpose.msra.mxu0 %v2251
      %2264 = vmatprep.subr.bf16.mxu0 0
      %2265 = vmatpush1.bf16.xpose.msra.mxu0 %v2254
      %2266 = vmatprep.subr.bf16.mxu0 0
      %2267 = vmatpush1.bf16.xpose.msra.mxu0 %v2257
      %2268 = vmatprep.subr.bf16.mxu0 0
      %2269 = vmatpush1.bf16.xpose.msra.mxu0 %v2260
      %2270 = vmatprep.subr.bf16.mxu0 0
      %2271 = vmatpush1.bf16.xpose.msra.mxu0 0
      %2272 = vmatprep.subr.bf16.mxu0 0
      %2273 = vmatpush1.bf16.xpose.msra.mxu0 0
      %2274 = vmatprep.subr.bf16.mxu0 0
      %2275 = vmatpush1.bf16.xpose.msra.mxu0 0
      %2276 = vmatprep.subr.bf16.mxu0 0
      %2277 = vmatpush1.bf16.xpose.msra.mxu0 0
      %2278 = vmatprep.subr.bf16.mxu0 0
      %2279 = vmatpush1.bf16.xpose.msra.mxu0 0
      %2280 = vmatprep.subr.bf16.mxu0 0
      %2281 = vmatpush1.bf16.xpose.msra.mxu0 0
      %2282 = vmatprep.subr.bf16.mxu0 0
      %2283 = vmatpush1.bf16.xpose.msra.mxu0 0
      %2284 = vmatprep.subr.bf16.mxu0 0
      %2285 = vmatpush1.bf16.xpose.msra.mxu0 0
      %2286 = vmatprep.subr.bf16.mxu0 0
      %2287 = vmatpush1.bf16.xpose.msra.mxu0 0
      %2288 = vmatprep.subr.bf16.mxu0 0
      %2289 = vmatpush1.bf16.xpose.msra.mxu0 0
      %2290 = vmatprep.subr.bf16.mxu0 0
      %2291 = vmatpush1.bf16.xpose.msra.mxu0 0
      %2292 = vmatprep.subr.bf16.mxu0 0
      %2293 = vmatpush1.bf16.xpose.msra.mxu0 0
      %2294 = vmatprep.mubr.bf16.mxu0 0
      %2295 = vmatmul.mubr.bf16.gmra.mrb[0].mxu0 %v2239
      %v2296 = vpop.f32.mrb[0].mxu0
      %v2297 = vadd.f32 0.0, %v2296
      %v2298 = vpop.f32.mrb[0].mxu0
      %v2299 = vpop.f32.mrb[0].mxu0
      %v2300 = vadd.f32 0.0, %v2299
      %v2301 = vpop.f32.mrb[0].mxu0
      %2302 = vmatprep.mubr.bf16.mxu0 0
      %2303 = vmatmul.mubr.bf16.gmra.mrb[0].mxu0 %v2242
      %v2304 = vpop.f32.mrb[0].mxu0
      %v2305 = vadd.f32 0.0, %v2304
      %v2306 = vpop.f32.mrb[0].mxu0
      %v2307 = vpop.f32.mrb[0].mxu0
      %v2308 = vadd.f32 0.0, %v2307
      %v2309 = vpop.f32.mrb[0].mxu0
      %2310 = vmatprep.mubr.bf16.mxu0 0
      %2311 = vmatmul.mubr.bf16.gmra.mrb[0].mxu0 %v2245
      %v2312 = vpop.f32.mrb[0].mxu0
      %v2313 = vadd.f32 0.0, %v2312
      %v2314 = vpop.f32.mrb[0].mxu0
      %v2315 = vpop.f32.mrb[0].mxu0
      %v2316 = vadd.f32 0.0, %v2315
      %v2317 = vpop.f32.mrb[0].mxu0
      %2318 = vmatprep.mubr.bf16.mxu0 0
      %2319 = vmatmul.mubr.bf16.gmra.mrb[0].mxu0 %v2248
      %v2320 = vpop.f32.mrb[0].mxu0
      %v2321 = vadd.f32 0.0, %v2320
      %v2322 = vpop.f32.mrb[0].mxu0
      %v2323 = vpop.f32.mrb[0].mxu0
      %v2324 = vadd.f32 0.0, %v2323
      %v2325 = vpop.f32.mrb[0].mxu0
      %2326 = vdwg.mxu0
      %v2327 = vmul.f32 %v1982, 0.35355338
      %v2328 = vmul.f32 %v1985, 0.35355338
      %v2329 = vmul.f32 %v1990, 0.35355338
      %v2330 = vmul.f32 %v1993, 0.35355338
      %v2331 = vmul.f32 %v1998, 0.35355338
      %v2332 = vmul.f32 %v2001, 0.35355338
      %v2333 = vmul.f32 %v2006, 0.35355338
      %v2334 = vmul.f32 %v2009, 0.35355338
      %v2335 = vmul.f32 %v2087, 0.35355338
      %v2336 = vmul.f32 %v2090, 0.35355338
      %v2337 = vmul.f32 %v2095, 0.35355338
      %v2338 = vmul.f32 %v2098, 0.35355338
      %v2339 = vmul.f32 %v2103, 0.35355338
      %v2340 = vmul.f32 %v2106, 0.35355338
      %v2341 = vmul.f32 %v2111, 0.35355338
      %v2342 = vmul.f32 %v2114, 0.35355338
      %v2343 = vmul.f32 %v2192, 0.35355338
      %v2344 = vmul.f32 %v2195, 0.35355338
      %v2345 = vmul.f32 %v2200, 0.35355338
      %v2346 = vmul.f32 %v2203, 0.35355338
      %v2347 = vmul.f32 %v2208, 0.35355338
      %v2348 = vmul.f32 %v2211, 0.35355338
      %v2349 = vmul.f32 %v2216, 0.35355338
      %v2350 = vmul.f32 %v2219, 0.35355338
      %v2351 = vmul.f32 %v2297, 0.35355338
      %v2352 = vmul.f32 %v2300, 0.35355338
      %v2353 = vmul.f32 %v2305, 0.35355338
      %v2354 = vmul.f32 %v2308, 0.35355338
      %v2355 = vmul.f32 %v2313, 0.35355338
      %v2356 = vmul.f32 %v2316, 0.35355338
      %v2357 = vmul.f32 %v2321, 0.35355338
      %v2358 = vmul.f32 %v2324, 0.35355338
      %v2359 = vadd.f32 %v2327, %v625
      %v2360 = vadd.f32 %v2328, %v626
      %v2361 = vadd.f32 %v2329, %v627
      %v2362 = vadd.f32 %v2330, %v628
      %v2363 = vadd.f32 %v2331, %v629
      %v2364 = vadd.f32 %v2332, %v630
      %v2365 = vadd.f32 %v2333, %v631
      %v2366 = vadd.f32 %v2334, %v632
      %v2367 = vadd.f32 %v2335, %v625
      %v2368 = vadd.f32 %v2336, %v626
      %v2369 = vadd.f32 %v2337, %v627
      %v2370 = vadd.f32 %v2338, %v628
      %v2371 = vadd.f32 %v2339, %v629
      %v2372 = vadd.f32 %v2340, %v630
      %v2373 = vadd.f32 %v2341, %v631
      %v2374 = vadd.f32 %v2342, %v632
      %v2375 = vadd.f32 %v2343, %v625
      %v2376 = vadd.f32 %v2344, %v626
      %v2377 = vadd.f32 %v2345, %v627
      %v2378 = vadd.f32 %v2346, %v628
      %v2379 = vadd.f32 %v2347, %v629
      %v2380 = vadd.f32 %v2348, %v630
      %v2381 = vadd.f32 %v2349, %v631
      %v2382 = vadd.f32 %v2350, %v632
      %v2383 = vadd.f32 %v2351, %v625
      %v2384 = vadd.f32 %v2352, %v626
      %v2385 = vadd.f32 %v2353, %v627
      %v2386 = vadd.f32 %v2354, %v628
      %v2387 = vadd.f32 %v2355, %v629
      %v2388 = vadd.f32 %v2356, %v630
      %v2389 = vadd.f32 %v2357, %v631
      %v2390 = vadd.f32 %v2358, %v632
      %v2391 = vadd.f32 %v2359, %v649
      %v2392 = vadd.f32 %v2360, %v650
      %v2393 = vadd.f32 %v2361, %v651
      %v2394 = vadd.f32 %v2362, %v652
      %v2395 = vadd.f32 %v2363, %v653
      %v2396 = vadd.f32 %v2364, %v654
      %v2397 = vadd.f32 %v2365, %v655
      %v2398 = vadd.f32 %v2366, %v656
      %v2399 = vadd.f32 %v2367, %v657
      %v2400 = vadd.f32 %v2368, %v658
      %v2401 = vadd.f32 %v2369, %v659
      %v2402 = vadd.f32 %v2370, %v660
      %v2403 = vadd.f32 %v2371, %v661
      %v2404 = vadd.f32 %v2372, %v662
      %v2405 = vadd.f32 %v2373, %v663
      %v2406 = vadd.f32 %v2374, %v664
      %v2407 = vadd.f32 %v2375, %v665
      %v2408 = vadd.f32 %v2376, %v666
      %v2409 = vadd.f32 %v2377, %v667
      %v2410 = vadd.f32 %v2378, %v668
      %v2411 = vadd.f32 %v2379, %v669
      %v2412 = vadd.f32 %v2380, %v670
      %v2413 = vadd.f32 %v2381, %v671
      %v2414 = vadd.f32 %v2382, %v672
      %v2415 = vadd.f32 %v2383, %v673
      %v2416 = vadd.f32 %v2384, %v674
      %v2417 = vadd.f32 %v2385, %v675
      %v2418 = vadd.f32 %v2386, %v676
      %v2419 = vadd.f32 %v2387, %v677
      %v2420 = vadd.f32 %v2388, %v678
      %v2421 = vadd.f32 %v2389, %v679
      %v2422 = vadd.f32 %v2390, %v680
      %v2423 = vsel %vm1182, %v2391, -inf
      %2424 = vmax.xlane.f32.xlu0 %v2423
      %v2425 = vpop.xlane.xlu0 %2424
      %v2426 = vsel %vm1182, %v2392, -inf
      %2427 = vmax.xlane.f32.xlu0 %v2426
      %v2428 = vpop.xlane.xlu0 %2427
      %v2429 = vsel %vm1182, %v2393, -inf
      %2430 = vmax.xlane.f32.xlu0 %v2429
      %v2431 = vpop.xlane.xlu0 %2430
      %v2432 = vsel %vm1182, %v2394, -inf
      %2433 = vmax.xlane.f32.xlu0 %v2432
      %v2434 = vpop.xlane.xlu0 %2433
      %v2435 = vsel %vm1182, %v2395, -inf
      %2436 = vmax.xlane.f32.xlu0 %v2435
      %v2437 = vpop.xlane.xlu0 %2436
      %v2438 = vsel %vm1182, %v2396, -inf
      %2439 = vmax.xlane.f32.xlu0 %v2438
      %v2440 = vpop.xlane.xlu0 %2439
      %v2441 = vsel %vm1182, %v2397, -inf
      %2442 = vmax.xlane.f32.xlu0 %v2441
      %v2443 = vpop.xlane.xlu0 %2442
      %v2444 = vsel %vm1182, %v2398, -inf
      %2445 = vmax.xlane.f32.xlu0 %v2444
      %v2446 = vpop.xlane.xlu0 %2445
      %v2447 = vsel %vm1182, %v2399, -inf
      %2448 = vmax.xlane.f32.xlu0 %v2447
      %v2449 = vpop.xlane.xlu0 %2448
      %v2450 = vsel %vm1182, %v2400, -inf
      %2451 = vmax.xlane.f32.xlu0 %v2450
      %v2452 = vpop.xlane.xlu0 %2451
      %v2453 = vsel %vm1182, %v2401, -inf
      %2454 = vmax.xlane.f32.xlu0 %v2453
      %v2455 = vpop.xlane.xlu0 %2454
      %v2456 = vsel %vm1182, %v2402, -inf
      %2457 = vmax.xlane.f32.xlu0 %v2456
      %v2458 = vpop.xlane.xlu0 %2457
      %v2459 = vsel %vm1182, %v2403, -inf
      %2460 = vmax.xlane.f32.xlu0 %v2459
      %v2461 = vpop.xlane.xlu0 %2460
      %v2462 = vsel %vm1182, %v2404, -inf
      %2463 = vmax.xlane.f32.xlu0 %v2462
      %v2464 = vpop.xlane.xlu0 %2463
      %v2465 = vsel %vm1182, %v2405, -inf
      %2466 = vmax.xlane.f32.xlu0 %v2465
      %v2467 = vpop.xlane.xlu0 %2466
      %v2468 = vsel %vm1182, %v2406, -inf
      %2469 = vmax.xlane.f32.xlu0 %v2468
      %v2470 = vpop.xlane.xlu0 %2469
      %v2471 = vsel %vm1182, %v2407, -inf
      %2472 = vmax.xlane.f32.xlu0 %v2471
      %v2473 = vpop.xlane.xlu0 %2472
      %v2474 = vsel %vm1182, %v2408, -inf
      %2475 = vmax.xlane.f32.xlu0 %v2474
      %v2476 = vpop.xlane.xlu0 %2475
      %v2477 = vsel %vm1182, %v2409, -inf
      %2478 = vmax.xlane.f32.xlu0 %v2477
      %v2479 = vpop.xlane.xlu0 %2478
      %v2480 = vsel %vm1182, %v2410, -inf
      %2481 = vmax.xlane.f32.xlu0 %v2480
      %v2482 = vpop.xlane.xlu0 %2481
      %v2483 = vsel %vm1182, %v2411, -inf
      %2484 = vmax.xlane.f32.xlu0 %v2483
      %v2485 = vpop.xlane.xlu0 %2484
      %v2486 = vsel %vm1182, %v2412, -inf
      %2487 = vmax.xlane.f32.xlu0 %v2486
      %v2488 = vpop.xlane.xlu0 %2487
      %v2489 = vsel %vm1182, %v2413, -inf
      %2490 = vmax.xlane.f32.xlu0 %v2489
      %v2491 = vpop.xlane.xlu0 %2490
      %v2492 = vsel %vm1182, %v2414, -inf
      %2493 = vmax.xlane.f32.xlu0 %v2492
      %v2494 = vpop.xlane.xlu0 %2493
      %v2495 = vsel %vm1182, %v2415, -inf
      %2496 = vmax.xlane.f32.xlu0 %v2495
      %v2497 = vpop.xlane.xlu0 %2496
      %v2498 = vsel %vm1182, %v2416, -inf
      %2499 = vmax.xlane.f32.xlu0 %v2498
      %v2500 = vpop.xlane.xlu0 %2499
      %v2501 = vsel %vm1182, %v2417, -inf
      %2502 = vmax.xlane.f32.xlu0 %v2501
      %v2503 = vpop.xlane.xlu0 %2502
      %v2504 = vsel %vm1182, %v2418, -inf
      %2505 = vmax.xlane.f32.xlu0 %v2504
      %v2506 = vpop.xlane.xlu0 %2505
      %v2507 = vsel %vm1182, %v2419, -inf
      %2508 = vmax.xlane.f32.xlu0 %v2507
      %v2509 = vpop.xlane.xlu0 %2508
      %v2510 = vsel %vm1182, %v2420, -inf
      %2511 = vmax.xlane.f32.xlu0 %v2510
      %v2512 = vpop.xlane.xlu0 %2511
      %v2513 = vsel %vm1182, %v2421, -inf
      %2514 = vmax.xlane.f32.xlu0 %v2513
      %v2515 = vpop.xlane.xlu0 %2514
      %v2516 = vsel %vm1182, %v2422, -inf
      %2517 = vmax.xlane.f32.xlu0 %v2516
      %v2518 = vpop.xlane.xlu0 %2517
      %v2519 = vsub.f32 %v2391, %v2425
      %v2520 = vsub.f32 %v2392, %v2428
      %v2521 = vsub.f32 %v2393, %v2431
      %v2522 = vsub.f32 %v2394, %v2434
      %v2523 = vsub.f32 %v2395, %v2437
      %v2524 = vsub.f32 %v2396, %v2440
      %v2525 = vsub.f32 %v2397, %v2443
      %v2526 = vsub.f32 %v2398, %v2446
      %v2527 = vsub.f32 %v2399, %v2449
      %v2528 = vsub.f32 %v2400, %v2452
      %v2529 = vsub.f32 %v2401, %v2455
      %v2530 = vsub.f32 %v2402, %v2458
      %v2531 = vsub.f32 %v2403, %v2461
      %v2532 = vsub.f32 %v2404, %v2464
      %v2533 = vsub.f32 %v2405, %v2467
      %v2534 = vsub.f32 %v2406, %v2470
      %v2535 = vsub.f32 %v2407, %v2473
      %v2536 = vsub.f32 %v2408, %v2476
      %v2537 = vsub.f32 %v2409, %v2479
      %v2538 = vsub.f32 %v2410, %v2482
      %v2539 = vsub.f32 %v2411, %v2485
      %v2540 = vsub.f32 %v2412, %v2488
      %v2541 = vsub.f32 %v2413, %v2491
      %v2542 = vsub.f32 %v2414, %v2494
      %v2543 = vsub.f32 %v2415, %v2497
      %v2544 = vsub.f32 %v2416, %v2500
      %v2545 = vsub.f32 %v2417, %v2503
      %v2546 = vsub.f32 %v2418, %v2506
      %v2547 = vsub.f32 %v2419, %v2509
      %v2548 = vsub.f32 %v2420, %v2512
      %v2549 = vsub.f32 %v2421, %v2515
      %v2550 = vsub.f32 %v2422, %v2518
      %v2551 = vmul.f32 %v2519, 1.442695
      %v2552 = vpow.pop %v2551
      %v2553 = vmul.f32 %v2520, 1.442695
      %v2554 = vpow.pop %v2553
      %v2555 = vmul.f32 %v2521, 1.442695
      %v2556 = vpow.pop %v2555
      %v2557 = vmul.f32 %v2522, 1.442695
      %v2558 = vpow.pop %v2557
      %v2559 = vmul.f32 %v2523, 1.442695
      %v2560 = vpow.pop %v2559
      %v2561 = vmul.f32 %v2524, 1.442695
      %v2562 = vpow.pop %v2561
      %v2563 = vmul.f32 %v2525, 1.442695
      %v2564 = vpow.pop %v2563
      %v2565 = vmul.f32 %v2526, 1.442695
      %v2566 = vpow.pop %v2565
      %v2567 = vmul.f32 %v2527, 1.442695
      %v2568 = vpow.pop %v2567
      %v2569 = vmul.f32 %v2528, 1.442695
      %v2570 = vpow.pop %v2569
      %v2571 = vmul.f32 %v2529, 1.442695
      %v2572 = vpow.pop %v2571
      %v2573 = vmul.f32 %v2530, 1.442695
      %v2574 = vpow.pop %v2573
      %v2575 = vmul.f32 %v2531, 1.442695
      %v2576 = vpow.pop %v2575
      %v2577 = vmul.f32 %v2532, 1.442695
      %v2578 = vpow.pop %v2577
      %v2579 = vmul.f32 %v2533, 1.442695
      %v2580 = vpow.pop %v2579
      %v2581 = vmul.f32 %v2534, 1.442695
      %v2582 = vpow.pop %v2581
      %v2583 = vmul.f32 %v2535, 1.442695
      %v2584 = vpow.pop %v2583
      %v2585 = vmul.f32 %v2536, 1.442695
      %v2586 = vpow.pop %v2585
      %v2587 = vmul.f32 %v2537, 1.442695
      %v2588 = vpow.pop %v2587
      %v2589 = vmul.f32 %v2538, 1.442695
      %v2590 = vpow.pop %v2589
      %v2591 = vmul.f32 %v2539, 1.442695
      %v2592 = vpow.pop %v2591
      %v2593 = vmul.f32 %v2540, 1.442695
      %v2594 = vpow.pop %v2593
      %v2595 = vmul.f32 %v2541, 1.442695
      %v2596 = vpow.pop %v2595
      %v2597 = vmul.f32 %v2542, 1.442695
      %v2598 = vpow.pop %v2597
      %v2599 = vmul.f32 %v2543, 1.442695
      %v2600 = vpow.pop %v2599
      %v2601 = vmul.f32 %v2544, 1.442695
      %v2602 = vpow.pop %v2601
      %v2603 = vmul.f32 %v2545, 1.442695
      %v2604 = vpow.pop %v2603
      %v2605 = vmul.f32 %v2546, 1.442695
      %v2606 = vpow.pop %v2605
      %v2607 = vmul.f32 %v2547, 1.442695
      %v2608 = vpow.pop %v2607
      %v2609 = vmul.f32 %v2548, 1.442695
      %v2610 = vpow.pop %v2609
      %v2611 = vmul.f32 %v2549, 1.442695
      %v2612 = vpow.pop %v2611
      %v2613 = vmul.f32 %v2550, 1.442695
      %v2614 = vpow.pop %v2613
      %v2615 = vsel %vm1182, %v2552, 0.0
      %2616 = vadd.xlane.f32.xlu0 %v2615
      %v2617 = vpop.xlane.xlu0 %2616
      %v2618 = vsel %vm1182, %v2554, 0.0
      %2619 = vadd.xlane.f32.xlu0 %v2618
      %v2620 = vpop.xlane.xlu0 %2619
      %v2621 = vsel %vm1182, %v2556, 0.0
      %2622 = vadd.xlane.f32.xlu0 %v2621
      %v2623 = vpop.xlane.xlu0 %2622
      %v2624 = vsel %vm1182, %v2558, 0.0
      %2625 = vadd.xlane.f32.xlu0 %v2624
      %v2626 = vpop.xlane.xlu0 %2625
      %v2627 = vsel %vm1182, %v2560, 0.0
      %2628 = vadd.xlane.f32.xlu0 %v2627
      %v2629 = vpop.xlane.xlu0 %2628
      %v2630 = vsel %vm1182, %v2562, 0.0
      %2631 = vadd.xlane.f32.xlu0 %v2630
      %v2632 = vpop.xlane.xlu0 %2631
      %v2633 = vsel %vm1182, %v2564, 0.0
      %2634 = vadd.xlane.f32.xlu0 %v2633
      %v2635 = vpop.xlane.xlu0 %2634
      %v2636 = vsel %vm1182, %v2566, 0.0
      %2637 = vadd.xlane.f32.xlu0 %v2636
      %v2638 = vpop.xlane.xlu0 %2637
      %v2639 = vsel %vm1182, %v2568, 0.0
      %2640 = vadd.xlane.f32.xlu0 %v2639
      %v2641 = vpop.xlane.xlu0 %2640
      %v2642 = vsel %vm1182, %v2570, 0.0
      %2643 = vadd.xlane.f32.xlu0 %v2642
      %v2644 = vpop.xlane.xlu0 %2643
      %v2645 = vsel %vm1182, %v2572, 0.0
      %2646 = vadd.xlane.f32.xlu0 %v2645
      %v2647 = vpop.xlane.xlu0 %2646
      %v2648 = vsel %vm1182, %v2574, 0.0
      %2649 = vadd.xlane.f32.xlu0 %v2648
      %v2650 = vpop.xlane.xlu0 %2649
      %v2651 = vsel %vm1182, %v2576, 0.0
      %2652 = vadd.xlane.f32.xlu0 %v2651
      %v2653 = vpop.xlane.xlu0 %2652
      %v2654 = vsel %vm1182, %v2578, 0.0
      %2655 = vadd.xlane.f32.xlu0 %v2654
      %v2656 = vpop.xlane.xlu0 %2655
      %v2657 = vsel %vm1182, %v2580, 0.0
      %2658 = vadd.xlane.f32.xlu0 %v2657
      %v2659 = vpop.xlane.xlu0 %2658
      %v2660 = vsel %vm1182, %v2582, 0.0
      %2661 = vadd.xlane.f32.xlu0 %v2660
      %v2662 = vpop.xlane.xlu0 %2661
      %v2663 = vsel %vm1182, %v2584, 0.0
      %2664 = vadd.xlane.f32.xlu0 %v2663
      %v2665 = vpop.xlane.xlu0 %2664
      %v2666 = vsel %vm1182, %v2586, 0.0
      %2667 = vadd.xlane.f32.xlu0 %v2666
      %v2668 = vpop.xlane.xlu0 %2667
      %v2669 = vsel %vm1182, %v2588, 0.0
      %2670 = vadd.xlane.f32.xlu0 %v2669
      %v2671 = vpop.xlane.xlu0 %2670
      %v2672 = vsel %vm1182, %v2590, 0.0
      %2673 = vadd.xlane.f32.xlu0 %v2672
      %v2674 = vpop.xlane.xlu0 %2673
      %v2675 = vsel %vm1182, %v2592, 0.0
      %2676 = vadd.xlane.f32.xlu0 %v2675
      %v2677 = vpop.xlane.xlu0 %2676
      %v2678 = vsel %vm1182, %v2594, 0.0
      %2679 = vadd.xlane.f32.xlu0 %v2678
      %v2680 = vpop.xlane.xlu0 %2679
      %v2681 = vsel %vm1182, %v2596, 0.0
      %2682 = vadd.xlane.f32.xlu0 %v2681
      %v2683 = vpop.xlane.xlu0 %2682
      %v2684 = vsel %vm1182, %v2598, 0.0
      %2685 = vadd.xlane.f32.xlu0 %v2684
      %v2686 = vpop.xlane.xlu0 %2685
      %v2687 = vsel %vm1182, %v2600, 0.0
      %2688 = vadd.xlane.f32.xlu0 %v2687
      %v2689 = vpop.xlane.xlu0 %2688
      %v2690 = vsel %vm1182, %v2602, 0.0
      %2691 = vadd.xlane.f32.xlu0 %v2690
      %v2692 = vpop.xlane.xlu0 %2691
      %v2693 = vsel %vm1182, %v2604, 0.0
      %2694 = vadd.xlane.f32.xlu0 %v2693
      %v2695 = vpop.xlane.xlu0 %2694
      %v2696 = vsel %vm1182, %v2606, 0.0
      %2697 = vadd.xlane.f32.xlu0 %v2696
      %v2698 = vpop.xlane.xlu0 %2697
      %v2699 = vsel %vm1182, %v2608, 0.0
      %2700 = vadd.xlane.f32.xlu0 %v2699
      %v2701 = vpop.xlane.xlu0 %2700
      %v2702 = vsel %vm1182, %v2610, 0.0
      %2703 = vadd.xlane.f32.xlu0 %v2702
      %v2704 = vpop.xlane.xlu0 %2703
      %v2705 = vsel %vm1182, %v2612, 0.0
      %2706 = vadd.xlane.f32.xlu0 %v2705
      %v2707 = vpop.xlane.xlu0 %2706
      %v2708 = vsel %vm1182, %v2614, 0.0
      %2709 = vadd.xlane.f32.xlu0 %v2708
      %v2710 = vpop.xlane.xlu0 %2709
      %v2711 = vrcp.pop %v2617
      %v2712 = vrcp.pop %v2620
      %v2713 = vrcp.pop %v2623
      %v2714 = vrcp.pop %v2626
      %v2715 = vrcp.pop %v2629
      %v2716 = vrcp.pop %v2632
      %v2717 = vrcp.pop %v2635
      %v2718 = vrcp.pop %v2638
      %v2719 = vrcp.pop %v2641
      %v2720 = vrcp.pop %v2644
      %v2721 = vrcp.pop %v2647
      %v2722 = vrcp.pop %v2650
      %v2723 = vrcp.pop %v2653
      %v2724 = vrcp.pop %v2656
      %v2725 = vrcp.pop %v2659
      %v2726 = vrcp.pop %v2662
      %v2727 = vrcp.pop %v2665
      %v2728 = vrcp.pop %v2668
      %v2729 = vrcp.pop %v2671
      %v2730 = vrcp.pop %v2674
      %v2731 = vrcp.pop %v2677
      %v2732 = vrcp.pop %v2680
      %v2733 = vrcp.pop %v2683
      %v2734 = vrcp.pop %v2686
      %v2735 = vrcp.pop %v2689
      %v2736 = vrcp.pop %v2692
      %v2737 = vrcp.pop %v2695
      %v2738 = vrcp.pop %v2698
      %v2739 = vrcp.pop %v2701
      %v2740 = vrcp.pop %v2704
      %v2741 = vrcp.pop %v2707
      %v2742 = vrcp.pop %v2710
      %v2743 = vmul.f32 %v2552, %v2711
      %v2744 = vmul.f32 %v2554, %v2712
      %v2745 = vmul.f32 %v2556, %v2713
      %v2746 = vmul.f32 %v2558, %v2714
      %v2747 = vmul.f32 %v2560, %v2715
      %v2748 = vmul.f32 %v2562, %v2716
      %v2749 = vmul.f32 %v2564, %v2717
      %v2750 = vmul.f32 %v2566, %v2718
      %v2751 = vmul.f32 %v2568, %v2719
      %v2752 = vmul.f32 %v2570, %v2720
      %v2753 = vmul.f32 %v2572, %v2721
      %v2754 = vmul.f32 %v2574, %v2722
      %v2755 = vmul.f32 %v2576, %v2723
      %v2756 = vmul.f32 %v2578, %v2724
      %v2757 = vmul.f32 %v2580, %v2725
      %v2758 = vmul.f32 %v2582, %v2726
      %v2759 = vmul.f32 %v2584, %v2727
      %v2760 = vmul.f32 %v2586, %v2728
      %v2761 = vmul.f32 %v2588, %v2729
      %v2762 = vmul.f32 %v2590, %v2730
      %v2763 = vmul.f32 %v2592, %v2731
      %v2764 = vmul.f32 %v2594, %v2732
      %v2765 = vmul.f32 %v2596, %v2733
      %v2766 = vmul.f32 %v2598, %v2734
      %v2767 = vmul.f32 %v2600, %v2735
      %v2768 = vmul.f32 %v2602, %v2736
      %v2769 = vmul.f32 %v2604, %v2737
      %v2770 = vmul.f32 %v2606, %v2738
      %v2771 = vmul.f32 %v2608, %v2739
      %v2772 = vmul.f32 %v2610, %v2740
      %v2773 = vmul.f32 %v2612, %v2741
      %v2774 = vmul.f32 %v2614, %v2742
      %v2775 = vpack.c.bf16 %v2744, %v2743
      %v2776 = vpack.c.bf16 %v2746, %v2745
      %v2777 = vpack.c.bf16 %v2748, %v2747
      %v2778 = vpack.c.bf16 %v2750, %v2749
      %v2779 = vpack.c.bf16 %v2752, %v2751
      %v2780 = vpack.c.bf16 %v2754, %v2753
      %v2781 = vpack.c.bf16 %v2756, %v2755
      %v2782 = vpack.c.bf16 %v2758, %v2757
      %v2783 = vpack.c.bf16 %v2760, %v2759
      %v2784 = vpack.c.bf16 %v2762, %v2761
      %v2785 = vpack.c.bf16 %v2764, %v2763
      %v2786 = vpack.c.bf16 %v2766, %v2765
      %v2787 = vpack.c.bf16 %v2768, %v2767
      %v2788 = vpack.c.bf16 %v2770, %v2769
      %v2789 = vpack.c.bf16 %v2772, %v2771
      %v2790 = vpack.c.bf16 %v2774, %v2773
      %2791 = vrot.lane.b32.xlu0 %v601, 56
      %v2792 = vpop.permute.xlu0 %2791
      %2793 = vrot.lane.b32.xlu0 %v602, 56
      %v2794 = vpop.permute.xlu0 %2793
      %2795 = vrot.lane.b32.xlu0 %v603, 56
      %v2796 = vpop.permute.xlu0 %2795
      %2797 = vrot.lane.b32.xlu0 %v604, 56
      %v2798 = vpop.permute.xlu0 %2797
      %v2804 = vsel %vm1182, %v2775, 0
      %v2807 = vsel %vm1182, %v2776, 0
      %v2810 = vsel %vm1182, %v2777, 0
      %v2813 = vsel %vm1182, %v2778, 0
      %2815 = vmatprep.subr.bf16.mxu0 0
      %2816 = vmatpush1.bf16.msra.mxu0 %v2792
      %2817 = vmatprep.subr.bf16.mxu0 0
      %2818 = vmatpush1.bf16.msra.mxu0 %v2794
      %2819 = vmatprep.subr.bf16.mxu0 0
      %2820 = vmatpush1.bf16.msra.mxu0 %v2796
      %2821 = vmatprep.subr.bf16.mxu0 0
      %2822 = vmatpush1.bf16.msra.mxu0 %v2798
      %2823 = vmatprep.subr.bf16.mxu0 0
      %2824 = vmatpush1.bf16.msra.mxu0 0
      %2825 = vmatprep.subr.bf16.mxu0 0
      %2826 = vmatpush1.bf16.msra.mxu0 0
      %2827 = vmatprep.subr.bf16.mxu0 0
      %2828 = vmatpush1.bf16.msra.mxu0 0
      %2829 = vmatprep.subr.bf16.mxu0 0
      %2830 = vmatpush1.bf16.msra.mxu0 0
      %2831 = vmatprep.subr.bf16.mxu0 0
      %2832 = vmatpush1.bf16.msra.mxu0 0
      %2833 = vmatprep.subr.bf16.mxu0 0
      %2834 = vmatpush1.bf16.msra.mxu0 0
      %2835 = vmatprep.subr.bf16.mxu0 0
      %2836 = vmatpush1.bf16.msra.mxu0 0
      %2837 = vmatprep.subr.bf16.mxu0 0
      %2838 = vmatpush1.bf16.msra.mxu0 0
      %2839 = vmatprep.subr.bf16.mxu0 0
      %2840 = vmatpush1.bf16.msra.mxu0 0
      %2841 = vmatprep.subr.bf16.mxu0 0
      %2842 = vmatpush1.bf16.msra.mxu0 0
      %2843 = vmatprep.subr.bf16.mxu0 0
      %2844 = vmatpush1.bf16.msra.mxu0 0
      %2845 = vmatprep.subr.bf16.mxu0 0
      %2846 = vmatpush1.bf16.msra.mxu0 0
      %2847 = vmatprep.mubr.bf16.mxu0 0
      %2848 = vmatmul.mubr.bf16.gmra.mrb[0].mxu0 %v2804
      %v2849 = vpop.f32.mrb[0].mxu0
      %v2850 = vadd.f32 0.0, %v2849
      %v2851 = vpop.f32.mrb[0].mxu0
      %v2852 = vpop.f32.mrb[0].mxu0
      %v2853 = vadd.f32 0.0, %v2852
      %v2854 = vpop.f32.mrb[0].mxu0
      %2855 = vmatprep.mubr.bf16.mxu0 0
      %2856 = vmatmul.mubr.bf16.gmra.mrb[0].mxu0 %v2807
      %v2857 = vpop.f32.mrb[0].mxu0
      %v2858 = vadd.f32 0.0, %v2857
      %v2859 = vpop.f32.mrb[0].mxu0
      %v2860 = vpop.f32.mrb[0].mxu0
      %v2861 = vadd.f32 0.0, %v2860
      %v2862 = vpop.f32.mrb[0].mxu0
      %2863 = vmatprep.mubr.bf16.mxu0 0
      %2864 = vmatmul.mubr.bf16.gmra.mrb[0].mxu0 %v2810
      %v2865 = vpop.f32.mrb[0].mxu0
      %v2866 = vadd.f32 0.0, %v2865
      %v2867 = vpop.f32.mrb[0].mxu0
      %v2868 = vpop.f32.mrb[0].mxu0
      %v2869 = vadd.f32 0.0, %v2868
      %v2870 = vpop.f32.mrb[0].mxu0
      %2871 = vmatprep.mubr.bf16.mxu0 0
      %2872 = vmatmul.mubr.bf16.gmra.mrb[0].mxu0 %v2813
      %v2873 = vpop.f32.mrb[0].mxu0
      %v2874 = vadd.f32 0.0, %v2873
      %v2875 = vpop.f32.mrb[0].mxu0
      %v2876 = vpop.f32.mrb[0].mxu0
      %v2877 = vadd.f32 0.0, %v2876
      %v2878 = vpop.f32.mrb[0].mxu0
      %2879 = vdwg.mxu0
      %2880 = vrot.lane.b32.xlu0 %v605, 56
      %v2881 = vpop.permute.xlu0 %2880
      %2882 = vrot.lane.b32.xlu0 %v606, 56
      %v2883 = vpop.permute.xlu0 %2882
      %2884 = vrot.lane.b32.xlu0 %v607, 56
      %v2885 = vpop.permute.xlu0 %2884
      %2886 = vrot.lane.b32.xlu0 %v608, 56
      %v2887 = vpop.permute.xlu0 %2886
      %v2893 = vsel %vm1182, %v2779, 0
      %v2896 = vsel %vm1182, %v2780, 0
      %v2899 = vsel %vm1182, %v2781, 0
      %v2902 = vsel %vm1182, %v2782, 0
      %2904 = vmatprep.subr.bf16.mxu0 0
      %2905 = vmatpush1.bf16.msra.mxu0 %v2881
      %2906 = vmatprep.subr.bf16.mxu0 0
      %2907 = vmatpush1.bf16.msra.mxu0 %v2883
      %2908 = vmatprep.subr.bf16.mxu0 0
      %2909 = vmatpush1.bf16.msra.mxu0 %v2885
      %2910 = vmatprep.subr.bf16.mxu0 0
      %2911 = vmatpush1.bf16.msra.mxu0 %v2887
      %2912 = vmatprep.subr.bf16.mxu0 0
      %2913 = vmatpush1.bf16.msra.mxu0 0
      %2914 = vmatprep.subr.bf16.mxu0 0
      %2915 = vmatpush1.bf16.msra.mxu0 0
      %2916 = vmatprep.subr.bf16.mxu0 0
      %2917 = vmatpush1.bf16.msra.mxu0 0
      %2918 = vmatprep.subr.bf16.mxu0 0
      %2919 = vmatpush1.bf16.msra.mxu0 0
      %2920 = vmatprep.subr.bf16.mxu0 0
      %2921 = vmatpush1.bf16.msra.mxu0 0
      %2922 = vmatprep.subr.bf16.mxu0 0
      %2923 = vmatpush1.bf16.msra.mxu0 0
      %2924 = vmatprep.subr.bf16.mxu0 0
      %2925 = vmatpush1.bf16.msra.mxu0 0
      %2926 = vmatprep.subr.bf16.mxu0 0
      %2927 = vmatpush1.bf16.msra.mxu0 0
      %2928 = vmatprep.subr.bf16.mxu0 0
      %2929 = vmatpush1.bf16.msra.mxu0 0
      %2930 = vmatprep.subr.bf16.mxu0 0
      %2931 = vmatpush1.bf16.msra.mxu0 0
      %2932 = vmatprep.subr.bf16.mxu0 0
      %2933 = vmatpush1.bf16.msra.mxu0 0
      %2934 = vmatprep.subr.bf16.mxu0 0
      %2935 = vmatpush1.bf16.msra.mxu0 0
      %2936 = vmatprep.mubr.bf16.mxu0 0
      %2937 = vmatmul.mubr.bf16.gmra.mrb[0].mxu0 %v2893
      %v2938 = vpop.f32.mrb[0].mxu0
      %v2939 = vadd.f32 0.0, %v2938
      %v2940 = vpop.f32.mrb[0].mxu0
      %v2941 = vpop.f32.mrb[0].mxu0
      %v2942 = vadd.f32 0.0, %v2941
      %v2943 = vpop.f32.mrb[0].mxu0
      %2944 = vmatprep.mubr.bf16.mxu0 0
      %2945 = vmatmul.mubr.bf16.gmra.mrb[0].mxu0 %v2896
      %v2946 = vpop.f32.mrb[0].mxu0
      %v2947 = vadd.f32 0.0, %v2946
      %v2948 = vpop.f32.mrb[0].mxu0
      %v2949 = vpop.f32.mrb[0].mxu0
      %v2950 = vadd.f32 0.0, %v2949
      %v2951 = vpop.f32.mrb[0].mxu0
      %2952 = vmatprep.mubr.bf16.mxu0 0
      %2953 = vmatmul.mubr.bf16.gmra.mrb[0].mxu0 %v2899
      %v2954 = vpop.f32.mrb[0].mxu0
      %v2955 = vadd.f32 0.0, %v2954
      %v2956 = vpop.f32.mrb[0].mxu0
      %v2957 = vpop.f32.mrb[0].mxu0
      %v2958 = vadd.f32 0.0, %v2957
      %v2959 = vpop.f32.mrb[0].mxu0
      %2960 = vmatprep.mubr.bf16.mxu0 0
      %2961 = vmatmul.mubr.bf16.gmra.mrb[0].mxu0 %v2902
      %v2962 = vpop.f32.mrb[0].mxu0
      %v2963 = vadd.f32 0.0, %v2962
      %v2964 = vpop.f32.mrb[0].mxu0
      %v2965 = vpop.f32.mrb[0].mxu0
      %v2966 = vadd.f32 0.0, %v2965
      %v2967 = vpop.f32.mrb[0].mxu0
      %2968 = vdwg.mxu0
      %2969 = vrot.lane.b32.xlu0 %v609, 56
      %v2970 = vpop.permute.xlu0 %2969
      %2971 = vrot.lane.b32.xlu0 %v610, 56
      %v2972 = vpop.permute.xlu0 %2971
      %2973 = vrot.lane.b32.xlu0 %v611, 56
      %v2974 = vpop.permute.xlu0 %2973
      %2975 = vrot.lane.b32.xlu0 %v612, 56
      %v2976 = vpop.permute.xlu0 %2975
      %v2982 = vsel %vm1182, %v2783, 0
      %v2985 = vsel %vm1182, %v2784, 0
      %v2988 = vsel %vm1182, %v2785, 0
      %v2991 = vsel %vm1182, %v2786, 0
      %2993 = vmatprep.subr.bf16.mxu0 0
      %2994 = vmatpush1.bf16.msra.mxu0 %v2970
      %2995 = vmatprep.subr.bf16.mxu0 0
      %2996 = vmatpush1.bf16.msra.mxu0 %v2972
      %2997 = vmatprep.subr.bf16.mxu0 0
      %2998 = vmatpush1.bf16.msra.mxu0 %v2974
      %2999 = vmatprep.subr.bf16.mxu0 0
      %3000 = vmatpush1.bf16.msra.mxu0 %v2976
      %3001 = vmatprep.subr.bf16.mxu0 0
      %3002 = vmatpush1.bf16.msra.mxu0 0
      %3003 = vmatprep.subr.bf16.mxu0 0
      %3004 = vmatpush1.bf16.msra.mxu0 0
      %3005 = vmatprep.subr.bf16.mxu0 0
      %3006 = vmatpush1.bf16.msra.mxu0 0
      %3007 = vmatprep.subr.bf16.mxu0 0
      %3008 = vmatpush1.bf16.msra.mxu0 0
      %3009 = vmatprep.subr.bf16.mxu0 0
      %3010 = vmatpush1.bf16.msra.mxu0 0
      %3011 = vmatprep.subr.bf16.mxu0 0
      %3012 = vmatpush1.bf16.msra.mxu0 0
      %3013 = vmatprep.subr.bf16.mxu0 0
      %3014 = vmatpush1.bf16.msra.mxu0 0
      %3015 = vmatprep.subr.bf16.mxu0 0
      %3016 = vmatpush1.bf16.msra.mxu0 0
      %3017 = vmatprep.subr.bf16.mxu0 0
      %3018 = vmatpush1.bf16.msra.mxu0 0
      %3019 = vmatprep.subr.bf16.mxu0 0
      %3020 = vmatpush1.bf16.msra.mxu0 0
      %3021 = vmatprep.subr.bf16.mxu0 0
      %3022 = vmatpush1.bf16.msra.mxu0 0
      %3023 = vmatprep.subr.bf16.mxu0 0
      %3024 = vmatpush1.bf16.msra.mxu0 0
      %3025 = vmatprep.mubr.bf16.mxu0 0
      %3026 = vmatmul.mubr.bf16.gmra.mrb[0].mxu0 %v2982
      %v3027 = vpop.f32.mrb[0].mxu0
      %v3028 = vadd.f32 0.0, %v3027
      %v3029 = vpop.f32.mrb[0].mxu0
      %v3030 = vpop.f32.mrb[0].mxu0
      %v3031 = vadd.f32 0.0, %v3030
      %v3032 = vpop.f32.mrb[0].mxu0
      %3033 = vmatprep.mubr.bf16.mxu0 0
      %3034 = vmatmul.mubr.bf16.gmra.mrb[0].mxu0 %v2985
      %v3035 = vpop.f32.mrb[0].mxu0
      %v3036 = vadd.f32 0.0, %v3035
      %v3037 = vpop.f32.mrb[0].mxu0
      %v3038 = vpop.f32.mrb[0].mxu0
      %v3039 = vadd.f32 0.0, %v3038
      %v3040 = vpop.f32.mrb[0].mxu0
      %3041 = vmatprep.mubr.bf16.mxu0 0
      %3042 = vmatmul.mubr.bf16.gmra.mrb[0].mxu0 %v2988
      %v3043 = vpop.f32.mrb[0].mxu0
      %v3044 = vadd.f32 0.0, %v3043
      %v3045 = vpop.f32.mrb[0].mxu0
      %v3046 = vpop.f32.mrb[0].mxu0
      %v3047 = vadd.f32 0.0, %v3046
      %v3048 = vpop.f32.mrb[0].mxu0
      %3049 = vmatprep.mubr.bf16.mxu0 0
      %3050 = vmatmul.mubr.bf16.gmra.mrb[0].mxu0 %v2991
      %v3051 = vpop.f32.mrb[0].mxu0
      %v3052 = vadd.f32 0.0, %v3051
      %v3053 = vpop.f32.mrb[0].mxu0
      %v3054 = vpop.f32.mrb[0].mxu0
      %v3055 = vadd.f32 0.0, %v3054
      %v3056 = vpop.f32.mrb[0].mxu0
      %3057 = vdwg.mxu0
      %3058 = vrot.lane.b32.xlu0 %v613, 56
      %v3059 = vpop.permute.xlu0 %3058
      %3060 = vrot.lane.b32.xlu0 %v614, 56
      %v3061 = vpop.permute.xlu0 %3060
      %3062 = vrot.lane.b32.xlu0 %v615, 56
      %v3063 = vpop.permute.xlu0 %3062
      %3064 = vrot.lane.b32.xlu0 %v616, 56
      %v3065 = vpop.permute.xlu0 %3064
      %v3071 = vsel %vm1182, %v2787, 0
      %v3074 = vsel %vm1182, %v2788, 0
      %v3077 = vsel %vm1182, %v2789, 0
      %v3080 = vsel %vm1182, %v2790, 0
      %3082 = vmatprep.subr.bf16.mxu0 0
      %3083 = vmatpush1.bf16.msra.mxu0 %v3059
      %3084 = vmatprep.subr.bf16.mxu0 0
      %3085 = vmatpush1.bf16.msra.mxu0 %v3061
      %3086 = vmatprep.subr.bf16.mxu0 0
      %3087 = vmatpush1.bf16.msra.mxu0 %v3063
      %3088 = vmatprep.subr.bf16.mxu0 0
      %3089 = vmatpush1.bf16.msra.mxu0 %v3065
      %3090 = vmatprep.subr.bf16.mxu0 0
      %3091 = vmatpush1.bf16.msra.mxu0 0
      %3092 = vmatprep.subr.bf16.mxu0 0
      %3093 = vmatpush1.bf16.msra.mxu0 0
      %3094 = vmatprep.subr.bf16.mxu0 0
      %3095 = vmatpush1.bf16.msra.mxu0 0
      %3096 = vmatprep.subr.bf16.mxu0 0
      %3097 = vmatpush1.bf16.msra.mxu0 0
      %3098 = vmatprep.subr.bf16.mxu0 0
      %3099 = vmatpush1.bf16.msra.mxu0 0
      %3100 = vmatprep.subr.bf16.mxu0 0
      %3101 = vmatpush1.bf16.msra.mxu0 0
      %3102 = vmatprep.subr.bf16.mxu0 0
      %3103 = vmatpush1.bf16.msra.mxu0 0
      %3104 = vmatprep.subr.bf16.mxu0 0
      %3105 = vmatpush1.bf16.msra.mxu0 0
      %3106 = vmatprep.subr.bf16.mxu0 0
      %3107 = vmatpush1.bf16.msra.mxu0 0
      %3108 = vmatprep.subr.bf16.mxu0 0
      %3109 = vmatpush1.bf16.msra.mxu0 0
      %3110 = vmatprep.subr.bf16.mxu0 0
      %3111 = vmatpush1.bf16.msra.mxu0 0
      %3112 = vmatprep.subr.bf16.mxu0 0
      %3113 = vmatpush1.bf16.msra.mxu0 0
      %3114 = vmatprep.mubr.bf16.mxu0 0
      %3115 = vmatmul.mubr.bf16.gmra.mrb[0].mxu0 %v3071
      %v3116 = vpop.f32.mrb[0].mxu0
      %v3117 = vadd.f32 0.0, %v3116
      %v3118 = vpop.f32.mrb[0].mxu0
      %v3119 = vpop.f32.mrb[0].mxu0
      %v3120 = vadd.f32 0.0, %v3119
      %v3121 = vpop.f32.mrb[0].mxu0
      %3122 = vmatprep.mubr.bf16.mxu0 0
      %3123 = vmatmul.mubr.bf16.gmra.mrb[0].mxu0 %v3074
      %v3124 = vpop.f32.mrb[0].mxu0
      %v3125 = vadd.f32 0.0, %v3124
      %v3126 = vpop.f32.mrb[0].mxu0
      %v3127 = vpop.f32.mrb[0].mxu0
      %v3128 = vadd.f32 0.0, %v3127
      %v3129 = vpop.f32.mrb[0].mxu0
      %3130 = vmatprep.mubr.bf16.mxu0 0
      %3131 = vmatmul.mubr.bf16.gmra.mrb[0].mxu0 %v3077
      %v3132 = vpop.f32.mrb[0].mxu0
      %v3133 = vadd.f32 0.0, %v3132
      %v3134 = vpop.f32.mrb[0].mxu0
      %v3135 = vpop.f32.mrb[0].mxu0
      %v3136 = vadd.f32 0.0, %v3135
      %v3137 = vpop.f32.mrb[0].mxu0
      %3138 = vmatprep.mubr.bf16.mxu0 0
      %3139 = vmatmul.mubr.bf16.gmra.mrb[0].mxu0 %v3080
      %v3140 = vpop.f32.mrb[0].mxu0
      %v3141 = vadd.f32 0.0, %v3140
      %v3142 = vpop.f32.mrb[0].mxu0
      %v3143 = vpop.f32.mrb[0].mxu0
      %v3144 = vadd.f32 0.0, %v3143
      %v3145 = vpop.f32.mrb[0].mxu0
      %3146 = vdwg.mxu0
      %3147 = vrot.lane.b32.xlu0 %v601, 112
      %v3148 = vpop.permute.xlu0 %3147
      %3149 = vrot.lane.b32.xlu0 %v602, 112
      %v3150 = vpop.permute.xlu0 %3149
      %3151 = vrot.lane.b32.xlu0 %v603, 112
      %v3152 = vpop.permute.xlu0 %3151
      %3153 = vrot.lane.b32.xlu0 %v604, 112
      %v3154 = vpop.permute.xlu0 %3153
      %3155 = vrot.lane.b32.xlu0 %v601, 80
      %v3156 = vpop.permute.xlu0 %3155
      %3157 = vrot.lane.b32.xlu0 %v602, 80
      %v3158 = vpop.permute.xlu0 %3157
      %3159 = vrot.lane.b32.xlu0 %v603, 80
      %v3160 = vpop.permute.xlu0 %3159
      %3161 = vrot.lane.b32.xlu0 %v604, 80
      %v3162 = vpop.permute.xlu0 %3161
      %v3164 = vsel %vm693, %v3148, 0
      %v3167 = vsel %vm693, %v3150, 0
      %v3170 = vsel %vm693, %v3152, 0
      %v3173 = vsel %vm693, %v3154, 0
      %v3176 = vsel %vm693, %v3156, 0
      %v3179 = vsel %vm693, %v3158, 0
      %v3182 = vsel %vm693, %v3160, 0
      %v3185 = vsel %vm693, %v3162, 0
      %3187 = vmatprep.subr.bf16.mxu0 0
      %3188 = vmatpush1.bf16.xpose.msra.mxu0 %v3176
      %3189 = vmatprep.subr.bf16.mxu0 0
      %3190 = vmatpush1.bf16.xpose.msra.mxu0 %v3179
      %3191 = vmatprep.subr.bf16.mxu0 0
      %3192 = vmatpush1.bf16.xpose.msra.mxu0 %v3182
      %3193 = vmatprep.subr.bf16.mxu0 0
      %3194 = vmatpush1.bf16.xpose.msra.mxu0 %v3185
      %3195 = vmatprep.subr.bf16.mxu0 0
      %3196 = vmatpush1.bf16.xpose.msra.mxu0 0
      %3197 = vmatprep.subr.bf16.mxu0 0
      %3198 = vmatpush1.bf16.xpose.msra.mxu0 0
      %3199 = vmatprep.subr.bf16.mxu0 0
      %3200 = vmatpush1.bf16.xpose.msra.mxu0 0
      %3201 = vmatprep.subr.bf16.mxu0 0
      %3202 = vmatpush1.bf16.xpose.msra.mxu0 0
      %3203 = vmatprep.subr.bf16.mxu0 0
      %3204 = vmatpush1.bf16.xpose.msra.mxu0 0
      %3205 = vmatprep.subr.bf16.mxu0 0
      %3206 = vmatpush1.bf16.xpose.msra.mxu0 0
      %3207 = vmatprep.subr.bf16.mxu0 0
      %3208 = vmatpush1.bf16.xpose.msra.mxu0 0
      %3209 = vmatprep.subr.bf16.mxu0 0
      %3210 = vmatpush1.bf16.xpose.msra.mxu0 0
      %3211 = vmatprep.subr.bf16.mxu0 0
      %3212 = vmatpush1.bf16.xpose.msra.mxu0 0
      %3213 = vmatprep.subr.bf16.mxu0 0
      %3214 = vmatpush1.bf16.xpose.msra.mxu0 0
      %3215 = vmatprep.subr.bf16.mxu0 0
      %3216 = vmatpush1.bf16.xpose.msra.mxu0 0
      %3217 = vmatprep.subr.bf16.mxu0 0
      %3218 = vmatpush1.bf16.xpose.msra.mxu0 0
      %3219 = vmatprep.mubr.bf16.mxu0 0
      %3220 = vmatmul.mubr.bf16.gmra.mrb[0].mxu0 %v3164
      %v3221 = vpop.f32.mrb[0].mxu0
      %v3222 = vadd.f32 0.0, %v3221
      %v3223 = vpop.f32.mrb[0].mxu0
      %v3224 = vpop.f32.mrb[0].mxu0
      %v3225 = vadd.f32 0.0, %v3224
      %v3226 = vpop.f32.mrb[0].mxu0
      %3227 = vmatprep.mubr.bf16.mxu0 0
      %3228 = vmatmul.mubr.bf16.gmra.mrb[0].mxu0 %v3167
      %v3229 = vpop.f32.mrb[0].mxu0
      %v3230 = vadd.f32 0.0, %v3229
      %v3231 = vpop.f32.mrb[0].mxu0
      %v3232 = vpop.f32.mrb[0].mxu0
      %v3233 = vadd.f32 0.0, %v3232
      %v3234 = vpop.f32.mrb[0].mxu0
      %3235 = vmatprep.mubr.bf16.mxu0 0
      %3236 = vmatmul.mubr.bf16.gmra.mrb[0].mxu0 %v3170
      %v3237 = vpop.f32.mrb[0].mxu0
      %v3238 = vadd.f32 0.0, %v3237
      %v3239 = vpop.f32.mrb[0].mxu0
      %v3240 = vpop.f32.mrb[0].mxu0
      %v3241 = vadd.f32 0.0, %v3240
      %v3242 = vpop.f32.mrb[0].mxu0
      %3243 = vmatprep.mubr.bf16.mxu0 0
      %3244 = vmatmul.mubr.bf16.gmra.mrb[0].mxu0 %v3173
      %v3245 = vpop.f32.mrb[0].mxu0
      %v3246 = vadd.f32 0.0, %v3245
      %v3247 = vpop.f32.mrb[0].mxu0
      %v3248 = vpop.f32.mrb[0].mxu0
      %v3249 = vadd.f32 0.0, %v3248
      %v3250 = vpop.f32.mrb[0].mxu0
      %3251 = vdwg.mxu0
      %3252 = vrot.lane.b32.xlu0 %v605, 112
      %v3253 = vpop.permute.xlu0 %3252
      %3254 = vrot.lane.b32.xlu0 %v606, 112
      %v3255 = vpop.permute.xlu0 %3254
      %3256 = vrot.lane.b32.xlu0 %v607, 112
      %v3257 = vpop.permute.xlu0 %3256
      %3258 = vrot.lane.b32.xlu0 %v608, 112
      %v3259 = vpop.permute.xlu0 %3258
      %3260 = vrot.lane.b32.xlu0 %v605, 80
      %v3261 = vpop.permute.xlu0 %3260
      %3262 = vrot.lane.b32.xlu0 %v606, 80
      %v3263 = vpop.permute.xlu0 %3262
      %3264 = vrot.lane.b32.xlu0 %v607, 80
      %v3265 = vpop.permute.xlu0 %3264
      %3266 = vrot.lane.b32.xlu0 %v608, 80
      %v3267 = vpop.permute.xlu0 %3266
      %v3269 = vsel %vm693, %v3253, 0
      %v3272 = vsel %vm693, %v3255, 0
      %v3275 = vsel %vm693, %v3257, 0
      %v3278 = vsel %vm693, %v3259, 0
      %v3281 = vsel %vm693, %v3261, 0
      %v3284 = vsel %vm693, %v3263, 0
      %v3287 = vsel %vm693, %v3265, 0
      %v3290 = vsel %vm693, %v3267, 0
      %3292 = vmatprep.subr.bf16.mxu0 0
      %3293 = vmatpush1.bf16.xpose.msra.mxu0 %v3281
      %3294 = vmatprep.subr.bf16.mxu0 0
      %3295 = vmatpush1.bf16.xpose.msra.mxu0 %v3284
      %3296 = vmatprep.subr.bf16.mxu0 0
      %3297 = vmatpush1.bf16.xpose.msra.mxu0 %v3287
      %3298 = vmatprep.subr.bf16.mxu0 0
      %3299 = vmatpush1.bf16.xpose.msra.mxu0 %v3290
      %3300 = vmatprep.subr.bf16.mxu0 0
      %3301 = vmatpush1.bf16.xpose.msra.mxu0 0
      %3302 = vmatprep.subr.bf16.mxu0 0
      %3303 = vmatpush1.bf16.xpose.msra.mxu0 0
      %3304 = vmatprep.subr.bf16.mxu0 0
      %3305 = vmatpush1.bf16.xpose.msra.mxu0 0
      %3306 = vmatprep.subr.bf16.mxu0 0
      %3307 = vmatpush1.bf16.xpose.msra.mxu0 0
      %3308 = vmatprep.subr.bf16.mxu0 0
      %3309 = vmatpush1.bf16.xpose.msra.mxu0 0
      %3310 = vmatprep.subr.bf16.mxu0 0
      %3311 = vmatpush1.bf16.xpose.msra.mxu0 0
      %3312 = vmatprep.subr.bf16.mxu0 0
      %3313 = vmatpush1.bf16.xpose.msra.mxu0 0
      %3314 = vmatprep.subr.bf16.mxu0 0
      %3315 = vmatpush1.bf16.xpose.msra.mxu0 0
      %3316 = vmatprep.subr.bf16.mxu0 0
      %3317 = vmatpush1.bf16.xpose.msra.mxu0 0
      %3318 = vmatprep.subr.bf16.mxu0 0
      %3319 = vmatpush1.bf16.xpose.msra.mxu0 0
      %3320 = vmatprep.subr.bf16.mxu0 0
      %3321 = vmatpush1.bf16.xpose.msra.mxu0 0
      %3322 = vmatprep.subr.bf16.mxu0 0
      %3323 = vmatpush1.bf16.xpose.msra.mxu0 0
      %3324 = vmatprep.mubr.bf16.mxu0 0
      %3325 = vmatmul.mubr.bf16.gmra.mrb[0].mxu0 %v3269
      %v3326 = vpop.f32.mrb[0].mxu0
      %v3327 = vadd.f32 0.0, %v3326
      %v3328 = vpop.f32.mrb[0].mxu0
      %v3329 = vpop.f32.mrb[0].mxu0
      %v3330 = vadd.f32 0.0, %v3329
      %v3331 = vpop.f32.mrb[0].mxu0
      %3332 = vmatprep.mubr.bf16.mxu0 0
      %3333 = vmatmul.mubr.bf16.gmra.mrb[0].mxu0 %v3272
      %v3334 = vpop.f32.mrb[0].mxu0
      %v3335 = vadd.f32 0.0, %v3334
      %v3336 = vpop.f32.mrb[0].mxu0
      %v3337 = vpop.f32.mrb[0].mxu0
      %v3338 = vadd.f32 0.0, %v3337
      %v3339 = vpop.f32.mrb[0].mxu0
      %3340 = vmatprep.mubr.bf16.mxu0 0
      %3341 = vmatmul.mubr.bf16.gmra.mrb[0].mxu0 %v3275
      %v3342 = vpop.f32.mrb[0].mxu0
      %v3343 = vadd.f32 0.0, %v3342
      %v3344 = vpop.f32.mrb[0].mxu0
      %v3345 = vpop.f32.mrb[0].mxu0
      %v3346 = vadd.f32 0.0, %v3345
      %v3347 = vpop.f32.mrb[0].mxu0
      %3348 = vmatprep.mubr.bf16.mxu0 0
      %3349 = vmatmul.mubr.bf16.gmra.mrb[0].mxu0 %v3278
      %v3350 = vpop.f32.mrb[0].mxu0
      %v3351 = vadd.f32 0.0, %v3350
      %v3352 = vpop.f32.mrb[0].mxu0
      %v3353 = vpop.f32.mrb[0].mxu0
      %v3354 = vadd.f32 0.0, %v3353
      %v3355 = vpop.f32.mrb[0].mxu0
      %3356 = vdwg.mxu0
      %3357 = vrot.lane.b32.xlu0 %v609, 112
      %v3358 = vpop.permute.xlu0 %3357
      %3359 = vrot.lane.b32.xlu0 %v610, 112
      %v3360 = vpop.permute.xlu0 %3359
      %3361 = vrot.lane.b32.xlu0 %v611, 112
      %v3362 = vpop.permute.xlu0 %3361
      %3363 = vrot.lane.b32.xlu0 %v612, 112
      %v3364 = vpop.permute.xlu0 %3363
      %3365 = vrot.lane.b32.xlu0 %v609, 80
      %v3366 = vpop.permute.xlu0 %3365
      %3367 = vrot.lane.b32.xlu0 %v610, 80
      %v3368 = vpop.permute.xlu0 %3367
      %3369 = vrot.lane.b32.xlu0 %v611, 80
      %v3370 = vpop.permute.xlu0 %3369
      %3371 = vrot.lane.b32.xlu0 %v612, 80
      %v3372 = vpop.permute.xlu0 %3371
      %v3374 = vsel %vm693, %v3358, 0
      %v3377 = vsel %vm693, %v3360, 0
      %v3380 = vsel %vm693, %v3362, 0
      %v3383 = vsel %vm693, %v3364, 0
      %v3386 = vsel %vm693, %v3366, 0
      %v3389 = vsel %vm693, %v3368, 0
      %v3392 = vsel %vm693, %v3370, 0
      %v3395 = vsel %vm693, %v3372, 0
      %3397 = vmatprep.subr.bf16.mxu0 0
      %3398 = vmatpush1.bf16.xpose.msra.mxu0 %v3386
      %3399 = vmatprep.subr.bf16.mxu0 0
      %3400 = vmatpush1.bf16.xpose.msra.mxu0 %v3389
      %3401 = vmatprep.subr.bf16.mxu0 0
      %3402 = vmatpush1.bf16.xpose.msra.mxu0 %v3392
      %3403 = vmatprep.subr.bf16.mxu0 0
      %3404 = vmatpush1.bf16.xpose.msra.mxu0 %v3395
      %3405 = vmatprep.subr.bf16.mxu0 0
      %3406 = vmatpush1.bf16.xpose.msra.mxu0 0
      %3407 = vmatprep.subr.bf16.mxu0 0
      %3408 = vmatpush1.bf16.xpose.msra.mxu0 0
      %3409 = vmatprep.subr.bf16.mxu0 0
      %3410 = vmatpush1.bf16.xpose.msra.mxu0 0
      %3411 = vmatprep.subr.bf16.mxu0 0
      %3412 = vmatpush1.bf16.xpose.msra.mxu0 0
      %3413 = vmatprep.subr.bf16.mxu0 0
      %3414 = vmatpush1.bf16.xpose.msra.mxu0 0
      %3415 = vmatprep.subr.bf16.mxu0 0
      %3416 = vmatpush1.bf16.xpose.msra.mxu0 0
      %3417 = vmatprep.subr.bf16.mxu0 0
      %3418 = vmatpush1.bf16.xpose.msra.mxu0 0
      %3419 = vmatprep.subr.bf16.mxu0 0
      %3420 = vmatpush1.bf16.xpose.msra.mxu0 0
      %3421 = vmatprep.subr.bf16.mxu0 0
      %3422 = vmatpush1.bf16.xpose.msra.mxu0 0
      %3423 = vmatprep.subr.bf16.mxu0 0
      %3424 = vmatpush1.bf16.xpose.msra.mxu0 0
      %3425 = vmatprep.subr.bf16.mxu0 0
      %3426 = vmatpush1.bf16.xpose.msra.mxu0 0
      %3427 = vmatprep.subr.bf16.mxu0 0
      %3428 = vmatpush1.bf16.xpose.msra.mxu0 0
      %3429 = vmatprep.mubr.bf16.mxu0 0
      %3430 = vmatmul.mubr.bf16.gmra.mrb[0].mxu0 %v3374
      %v3431 = vpop.f32.mrb[0].mxu0
      %v3432 = vadd.f32 0.0, %v3431
      %v3433 = vpop.f32.mrb[0].mxu0
      %v3434 = vpop.f32.mrb[0].mxu0
      %v3435 = vadd.f32 0.0, %v3434
      %v3436 = vpop.f32.mrb[0].mxu0
      %3437 = vmatprep.mubr.bf16.mxu0 0
      %3438 = vmatmul.mubr.bf16.gmra.mrb[0].mxu0 %v3377
      %v3439 = vpop.f32.mrb[0].mxu0
      %v3440 = vadd.f32 0.0, %v3439
      %v3441 = vpop.f32.mrb[0].mxu0
      %v3442 = vpop.f32.mrb[0].mxu0
      %v3443 = vadd.f32 0.0, %v3442
      %v3444 = vpop.f32.mrb[0].mxu0
      %3445 = vmatprep.mubr.bf16.mxu0 0
      %3446 = vmatmul.mubr.bf16.gmra.mrb[0].mxu0 %v3380
      %v3447 = vpop.f32.mrb[0].mxu0
      %v3448 = vadd.f32 0.0, %v3447
      %v3449 = vpop.f32.mrb[0].mxu0
      %v3450 = vpop.f32.mrb[0].mxu0
      %v3451 = vadd.f32 0.0, %v3450
      %v3452 = vpop.f32.mrb[0].mxu0
      %3453 = vmatprep.mubr.bf16.mxu0 0
      %3454 = vmatmul.mubr.bf16.gmra.mrb[0].mxu0 %v3383
      %v3455 = vpop.f32.mrb[0].mxu0
      %v3456 = vadd.f32 0.0, %v3455
      %v3457 = vpop.f32.mrb[0].mxu0
      %v3458 = vpop.f32.mrb[0].mxu0
      %v3459 = vadd.f32 0.0, %v3458
      %v3460 = vpop.f32.mrb[0].mxu0
      %3461 = vdwg.mxu0
      %3462 = vrot.lane.b32.xlu0 %v613, 112
      %v3463 = vpop.permute.xlu0 %3462
      %3464 = vrot.lane.b32.xlu0 %v614, 112
      %v3465 = vpop.permute.xlu0 %3464
      %3466 = vrot.lane.b32.xlu0 %v615, 112
      %v3467 = vpop.permute.xlu0 %3466
      %3468 = vrot.lane.b32.xlu0 %v616, 112
      %v3469 = vpop.permute.xlu0 %3468
      %3470 = vrot.lane.b32.xlu0 %v613, 80
      %v3471 = vpop.permute.xlu0 %3470
      %3472 = vrot.lane.b32.xlu0 %v614, 80
      %v3473 = vpop.permute.xlu0 %3472
      %3474 = vrot.lane.b32.xlu0 %v615, 80
      %v3475 = vpop.permute.xlu0 %3474
      %3476 = vrot.lane.b32.xlu0 %v616, 80
      %v3477 = vpop.permute.xlu0 %3476
      %v3479 = vsel %vm693, %v3463, 0
      %v3482 = vsel %vm693, %v3465, 0
      %v3485 = vsel %vm693, %v3467, 0
      %v3488 = vsel %vm693, %v3469, 0
      %v3491 = vsel %vm693, %v3471, 0
      %v3494 = vsel %vm693, %v3473, 0
      %v3497 = vsel %vm693, %v3475, 0
      %v3500 = vsel %vm693, %v3477, 0
      %3502 = vmatprep.subr.bf16.mxu0 0
      %3503 = vmatpush1.bf16.xpose.msra.mxu0 %v3491
      %3504 = vmatprep.subr.bf16.mxu0 0
      %3505 = vmatpush1.bf16.xpose.msra.mxu0 %v3494
      %3506 = vmatprep.subr.bf16.mxu0 0
      %3507 = vmatpush1.bf16.xpose.msra.mxu0 %v3497
      %3508 = vmatprep.subr.bf16.mxu0 0
      %3509 = vmatpush1.bf16.xpose.msra.mxu0 %v3500
      %3510 = vmatprep.subr.bf16.mxu0 0
      %3511 = vmatpush1.bf16.xpose.msra.mxu0 0
      %3512 = vmatprep.subr.bf16.mxu0 0
      %3513 = vmatpush1.bf16.xpose.msra.mxu0 0
      %3514 = vmatprep.subr.bf16.mxu0 0
      %3515 = vmatpush1.bf16.xpose.msra.mxu0 0
      %3516 = vmatprep.subr.bf16.mxu0 0
      %3517 = vmatpush1.bf16.xpose.msra.mxu0 0
      %3518 = vmatprep.subr.bf16.mxu0 0
      %3519 = vmatpush1.bf16.xpose.msra.mxu0 0
      %3520 = vmatprep.subr.bf16.mxu0 0
      %3521 = vmatpush1.bf16.xpose.msra.mxu0 0
      %3522 = vmatprep.subr.bf16.mxu0 0
      %3523 = vmatpush1.bf16.xpose.msra.mxu0 0
      %3524 = vmatprep.subr.bf16.mxu0 0
      %3525 = vmatpush1.bf16.xpose.msra.mxu0 0
      %3526 = vmatprep.subr.bf16.mxu0 0
      %3527 = vmatpush1.bf16.xpose.msra.mxu0 0
      %3528 = vmatprep.subr.bf16.mxu0 0
      %3529 = vmatpush1.bf16.xpose.msra.mxu0 0
      %3530 = vmatprep.subr.bf16.mxu0 0
      %3531 = vmatpush1.bf16.xpose.msra.mxu0 0
      %3532 = vmatprep.subr.bf16.mxu0 0
      %3533 = vmatpush1.bf16.xpose.msra.mxu0 0
      %3534 = vmatprep.mubr.bf16.mxu0 0
      %3535 = vmatmul.mubr.bf16.gmra.mrb[0].mxu0 %v3479
      %v3536 = vpop.f32.mrb[0].mxu0
      %v3537 = vadd.f32 0.0, %v3536
      %v3538 = vpop.f32.mrb[0].mxu0
      %v3539 = vpop.f32.mrb[0].mxu0
      %v3540 = vadd.f32 0.0, %v3539
      %v3541 = vpop.f32.mrb[0].mxu0
      %3542 = vmatprep.mubr.bf16.mxu0 0
      %3543 = vmatmul.mubr.bf16.gmra.mrb[0].mxu0 %v3482
      %v3544 = vpop.f32.mrb[0].mxu0
      %v3545 = vadd.f32 0.0, %v3544
      %v3546 = vpop.f32.mrb[0].mxu0
      %v3547 = vpop.f32.mrb[0].mxu0
      %v3548 = vadd.f32 0.0, %v3547
      %v3549 = vpop.f32.mrb[0].mxu0
      %3550 = vmatprep.mubr.bf16.mxu0 0
      %3551 = vmatmul.mubr.bf16.gmra.mrb[0].mxu0 %v3485
      %v3552 = vpop.f32.mrb[0].mxu0
      %v3553 = vadd.f32 0.0, %v3552
      %v3554 = vpop.f32.mrb[0].mxu0
      %v3555 = vpop.f32.mrb[0].mxu0
      %v3556 = vadd.f32 0.0, %v3555
      %v3557 = vpop.f32.mrb[0].mxu0
      %3558 = vmatprep.mubr.bf16.mxu0 0
      %3559 = vmatmul.mubr.bf16.gmra.mrb[0].mxu0 %v3488
      %v3560 = vpop.f32.mrb[0].mxu0
      %v3561 = vadd.f32 0.0, %v3560
      %v3562 = vpop.f32.mrb[0].mxu0
      %v3563 = vpop.f32.mrb[0].mxu0
      %v3564 = vadd.f32 0.0, %v3563
      %v3565 = vpop.f32.mrb[0].mxu0
      %3566 = vdwg.mxu0
      %v3567 = vmul.f32 %v3222, 0.35355338
      %v3568 = vmul.f32 %v3225, 0.35355338
      %v3569 = vmul.f32 %v3230, 0.35355338
      %v3570 = vmul.f32 %v3233, 0.35355338
      %v3571 = vmul.f32 %v3238, 0.35355338
      %v3572 = vmul.f32 %v3241, 0.35355338
      %v3573 = vmul.f32 %v3246, 0.35355338
      %v3574 = vmul.f32 %v3249, 0.35355338
      %v3575 = vmul.f32 %v3327, 0.35355338
      %v3576 = vmul.f32 %v3330, 0.35355338
      %v3577 = vmul.f32 %v3335, 0.35355338
      %v3578 = vmul.f32 %v3338, 0.35355338
      %v3579 = vmul.f32 %v3343, 0.35355338
      %v3580 = vmul.f32 %v3346, 0.35355338
      %v3581 = vmul.f32 %v3351, 0.35355338
      %v3582 = vmul.f32 %v3354, 0.35355338
      %v3583 = vmul.f32 %v3432, 0.35355338
      %v3584 = vmul.f32 %v3435, 0.35355338
      %v3585 = vmul.f32 %v3440, 0.35355338
      %v3586 = vmul.f32 %v3443, 0.35355338
      %v3587 = vmul.f32 %v3448, 0.35355338
      %v3588 = vmul.f32 %v3451, 0.35355338
      %v3589 = vmul.f32 %v3456, 0.35355338
      %v3590 = vmul.f32 %v3459, 0.35355338
      %v3591 = vmul.f32 %v3537, 0.35355338
      %v3592 = vmul.f32 %v3540, 0.35355338
      %v3593 = vmul.f32 %v3545, 0.35355338
      %v3594 = vmul.f32 %v3548, 0.35355338
      %v3595 = vmul.f32 %v3553, 0.35355338
      %v3596 = vmul.f32 %v3556, 0.35355338
      %v3597 = vmul.f32 %v3561, 0.35355338
      %v3598 = vmul.f32 %v3564, 0.35355338
      %v3599 = vadd.f32 %v3567, %v633
      %v3600 = vadd.f32 %v3568, %v634
      %v3601 = vadd.f32 %v3569, %v635
      %v3602 = vadd.f32 %v3570, %v636
      %v3603 = vadd.f32 %v3571, %v637
      %v3604 = vadd.f32 %v3572, %v638
      %v3605 = vadd.f32 %v3573, %v639
      %v3606 = vadd.f32 %v3574, %v640
      %v3607 = vadd.f32 %v3575, %v633
      %v3608 = vadd.f32 %v3576, %v634
      %v3609 = vadd.f32 %v3577, %v635
      %v3610 = vadd.f32 %v3578, %v636
      %v3611 = vadd.f32 %v3579, %v637
      %v3612 = vadd.f32 %v3580, %v638
      %v3613 = vadd.f32 %v3581, %v639
      %v3614 = vadd.f32 %v3582, %v640
      %v3615 = vadd.f32 %v3583, %v633
      %v3616 = vadd.f32 %v3584, %v634
      %v3617 = vadd.f32 %v3585, %v635
      %v3618 = vadd.f32 %v3586, %v636
      %v3619 = vadd.f32 %v3587, %v637
      %v3620 = vadd.f32 %v3588, %v638
      %v3621 = vadd.f32 %v3589, %v639
      %v3622 = vadd.f32 %v3590, %v640
      %v3623 = vadd.f32 %v3591, %v633
      %v3624 = vadd.f32 %v3592, %v634
      %v3625 = vadd.f32 %v3593, %v635
      %v3626 = vadd.f32 %v3594, %v636
      %v3627 = vadd.f32 %v3595, %v637
      %v3628 = vadd.f32 %v3596, %v638
      %v3629 = vadd.f32 %v3597, %v639
      %v3630 = vadd.f32 %v3598, %v640
      %v3631 = vadd.f32 %v3599, %v649
      %v3632 = vadd.f32 %v3600, %v650
      %v3633 = vadd.f32 %v3601, %v651
      %v3634 = vadd.f32 %v3602, %v652
      %v3635 = vadd.f32 %v3603, %v653
      %v3636 = vadd.f32 %v3604, %v654
      %v3637 = vadd.f32 %v3605, %v655
      %v3638 = vadd.f32 %v3606, %v656
      %v3639 = vadd.f32 %v3607, %v657
      %v3640 = vadd.f32 %v3608, %v658
      %v3641 = vadd.f32 %v3609, %v659
      %v3642 = vadd.f32 %v3610, %v660
      %v3643 = vadd.f32 %v3611, %v661
      %v3644 = vadd.f32 %v3612, %v662
      %v3645 = vadd.f32 %v3613, %v663
      %v3646 = vadd.f32 %v3614, %v664
      %v3647 = vadd.f32 %v3615, %v665
      %v3648 = vadd.f32 %v3616, %v666
      %v3649 = vadd.f32 %v3617, %v667
      %v3650 = vadd.f32 %v3618, %v668
      %v3651 = vadd.f32 %v3619, %v669
      %v3652 = vadd.f32 %v3620, %v670
      %v3653 = vadd.f32 %v3621, %v671
      %v3654 = vadd.f32 %v3622, %v672
      %v3655 = vadd.f32 %v3623, %v673
      %v3656 = vadd.f32 %v3624, %v674
      %v3657 = vadd.f32 %v3625, %v675
      %v3658 = vadd.f32 %v3626, %v676
      %v3659 = vadd.f32 %v3627, %v677
      %v3660 = vadd.f32 %v3628, %v678
      %v3661 = vadd.f32 %v3629, %v679
      %v3662 = vadd.f32 %v3630, %v680
      %v3663 = vsel %vm1182, %v3631, -inf
      %3664 = vmax.xlane.f32.xlu0 %v3663
      %v3665 = vpop.xlane.xlu0 %3664
      %v3666 = vsel %vm1182, %v3632, -inf
      %3667 = vmax.xlane.f32.xlu0 %v3666
      %v3668 = vpop.xlane.xlu0 %3667
      %v3669 = vsel %vm1182, %v3633, -inf
      %3670 = vmax.xlane.f32.xlu0 %v3669
      %v3671 = vpop.xlane.xlu0 %3670
      %v3672 = vsel %vm1182, %v3634, -inf
      %3673 = vmax.xlane.f32.xlu0 %v3672
      %v3674 = vpop.xlane.xlu0 %3673
      %v3675 = vsel %vm1182, %v3635, -inf
      %3676 = vmax.xlane.f32.xlu0 %v3675
      %v3677 = vpop.xlane.xlu0 %3676
      %v3678 = vsel %vm1182, %v3636, -inf
      %3679 = vmax.xlane.f32.xlu0 %v3678
      %v3680 = vpop.xlane.xlu0 %3679
      %v3681 = vsel %vm1182, %v3637, -inf
      %3682 = vmax.xlane.f32.xlu0 %v3681
      %v3683 = vpop.xlane.xlu0 %3682
      %v3684 = vsel %vm1182, %v3638, -inf
      %3685 = vmax.xlane.f32.xlu0 %v3684
      %v3686 = vpop.xlane.xlu0 %3685
      %v3687 = vsel %vm1182, %v3639, -inf
      %3688 = vmax.xlane.f32.xlu0 %v3687
      %v3689 = vpop.xlane.xlu0 %3688
      %v3690 = vsel %vm1182, %v3640, -inf
      %3691 = vmax.xlane.f32.xlu0 %v3690
      %v3692 = vpop.xlane.xlu0 %3691
      %v3693 = vsel %vm1182, %v3641, -inf
      %3694 = vmax.xlane.f32.xlu0 %v3693
      %v3695 = vpop.xlane.xlu0 %3694
      %v3696 = vsel %vm1182, %v3642, -inf
      %3697 = vmax.xlane.f32.xlu0 %v3696
      %v3698 = vpop.xlane.xlu0 %3697
      %v3699 = vsel %vm1182, %v3643, -inf
      %3700 = vmax.xlane.f32.xlu0 %v3699
      %v3701 = vpop.xlane.xlu0 %3700
      %v3702 = vsel %vm1182, %v3644, -inf
      %3703 = vmax.xlane.f32.xlu0 %v3702
      %v3704 = vpop.xlane.xlu0 %3703
      %v3705 = vsel %vm1182, %v3645, -inf
      %3706 = vmax.xlane.f32.xlu0 %v3705
      %v3707 = vpop.xlane.xlu0 %3706
      %v3708 = vsel %vm1182, %v3646, -inf
      %3709 = vmax.xlane.f32.xlu0 %v3708
      %v3710 = vpop.xlane.xlu0 %3709
      %v3711 = vsel %vm1182, %v3647, -inf
      %3712 = vmax.xlane.f32.xlu0 %v3711
      %v3713 = vpop.xlane.xlu0 %3712
      %v3714 = vsel %vm1182, %v3648, -inf
      %3715 = vmax.xlane.f32.xlu0 %v3714
      %v3716 = vpop.xlane.xlu0 %3715
      %v3717 = vsel %vm1182, %v3649, -inf
      %3718 = vmax.xlane.f32.xlu0 %v3717
      %v3719 = vpop.xlane.xlu0 %3718
      %v3720 = vsel %vm1182, %v3650, -inf
      %3721 = vmax.xlane.f32.xlu0 %v3720
      %v3722 = vpop.xlane.xlu0 %3721
      %v3723 = vsel %vm1182, %v3651, -inf
      %3724 = vmax.xlane.f32.xlu0 %v3723
      %v3725 = vpop.xlane.xlu0 %3724
      %v3726 = vsel %vm1182, %v3652, -inf
      %3727 = vmax.xlane.f32.xlu0 %v3726
      %v3728 = vpop.xlane.xlu0 %3727
      %v3729 = vsel %vm1182, %v3653, -inf
      %3730 = vmax.xlane.f32.xlu0 %v3729
      %v3731 = vpop.xlane.xlu0 %3730
      %v3732 = vsel %vm1182, %v3654, -inf
      %3733 = vmax.xlane.f32.xlu0 %v3732
      %v3734 = vpop.xlane.xlu0 %3733
      %v3735 = vsel %vm1182, %v3655, -inf
      %3736 = vmax.xlane.f32.xlu0 %v3735
      %v3737 = vpop.xlane.xlu0 %3736
      %v3738 = vsel %vm1182, %v3656, -inf
      %3739 = vmax.xlane.f32.xlu0 %v3738
      %v3740 = vpop.xlane.xlu0 %3739
      %v3741 = vsel %vm1182, %v3657, -inf
      %3742 = vmax.xlane.f32.xlu0 %v3741
      %v3743 = vpop.xlane.xlu0 %3742
      %v3744 = vsel %vm1182, %v3658, -inf
      %3745 = vmax.xlane.f32.xlu0 %v3744
      %v3746 = vpop.xlane.xlu0 %3745
      %v3747 = vsel %vm1182, %v3659, -inf
      %3748 = vmax.xlane.f32.xlu0 %v3747
      %v3749 = vpop.xlane.xlu0 %3748
      %v3750 = vsel %vm1182, %v3660, -inf
      %3751 = vmax.xlane.f32.xlu0 %v3750
      %v3752 = vpop.xlane.xlu0 %3751
      %v3753 = vsel %vm1182, %v3661, -inf
      %3754 = vmax.xlane.f32.xlu0 %v3753
      %v3755 = vpop.xlane.xlu0 %3754
      %v3756 = vsel %vm1182, %v3662, -inf
      %3757 = vmax.xlane.f32.xlu0 %v3756
      %v3758 = vpop.xlane.xlu0 %3757
      %v3759 = vsub.f32 %v3631, %v3665
      %v3760 = vsub.f32 %v3632, %v3668
      %v3761 = vsub.f32 %v3633, %v3671
      %v3762 = vsub.f32 %v3634, %v3674
      %v3763 = vsub.f32 %v3635, %v3677
      %v3764 = vsub.f32 %v3636, %v3680
      %v3765 = vsub.f32 %v3637, %v3683
      %v3766 = vsub.f32 %v3638, %v3686
      %v3767 = vsub.f32 %v3639, %v3689
      %v3768 = vsub.f32 %v3640, %v3692
      %v3769 = vsub.f32 %v3641, %v3695
      %v3770 = vsub.f32 %v3642, %v3698
      %v3771 = vsub.f32 %v3643, %v3701
      %v3772 = vsub.f32 %v3644, %v3704
      %v3773 = vsub.f32 %v3645, %v3707
      %v3774 = vsub.f32 %v3646, %v3710
      %v3775 = vsub.f32 %v3647, %v3713
      %v3776 = vsub.f32 %v3648, %v3716
      %v3777 = vsub.f32 %v3649, %v3719
      %v3778 = vsub.f32 %v3650, %v3722
      %v3779 = vsub.f32 %v3651, %v3725
      %v3780 = vsub.f32 %v3652, %v3728
      %v3781 = vsub.f32 %v3653, %v3731
      %v3782 = vsub.f32 %v3654, %v3734
      %v3783 = vsub.f32 %v3655, %v3737
      %v3784 = vsub.f32 %v3656, %v3740
      %v3785 = vsub.f32 %v3657, %v3743
      %v3786 = vsub.f32 %v3658, %v3746
      %v3787 = vsub.f32 %v3659, %v3749
      %v3788 = vsub.f32 %v3660, %v3752
      %v3789 = vsub.f32 %v3661, %v3755
      %v3790 = vsub.f32 %v3662, %v3758
      %v3791 = vmul.f32 %v3759, 1.442695
      %v3792 = vpow.pop %v3791
      %v3793 = vmul.f32 %v3760, 1.442695
      %v3794 = vpow.pop %v3793
      %v3795 = vmul.f32 %v3761, 1.442695
      %v3796 = vpow.pop %v3795
      %v3797 = vmul.f32 %v3762, 1.442695
      %v3798 = vpow.pop %v3797
      %v3799 = vmul.f32 %v3763, 1.442695
      %v3800 = vpow.pop %v3799
      %v3801 = vmul.f32 %v3764, 1.442695
      %v3802 = vpow.pop %v3801
      %v3803 = vmul.f32 %v3765, 1.442695
      %v3804 = vpow.pop %v3803
      %v3805 = vmul.f32 %v3766, 1.442695
      %v3806 = vpow.pop %v3805
      %v3807 = vmul.f32 %v3767, 1.442695
      %v3808 = vpow.pop %v3807
      %v3809 = vmul.f32 %v3768, 1.442695
      %v3810 = vpow.pop %v3809
      %v3811 = vmul.f32 %v3769, 1.442695
      %v3812 = vpow.pop %v3811
      %v3813 = vmul.f32 %v3770, 1.442695
      %v3814 = vpow.pop %v3813
      %v3815 = vmul.f32 %v3771, 1.442695
      %v3816 = vpow.pop %v3815
      %v3817 = vmul.f32 %v3772, 1.442695
      %v3818 = vpow.pop %v3817
      %v3819 = vmul.f32 %v3773, 1.442695
      %v3820 = vpow.pop %v3819
      %v3821 = vmul.f32 %v3774, 1.442695
      %v3822 = vpow.pop %v3821
      %v3823 = vmul.f32 %v3775, 1.442695
      %v3824 = vpow.pop %v3823
      %v3825 = vmul.f32 %v3776, 1.442695
      %v3826 = vpow.pop %v3825
      %v3827 = vmul.f32 %v3777, 1.442695
      %v3828 = vpow.pop %v3827
      %v3829 = vmul.f32 %v3778, 1.442695
      %v3830 = vpow.pop %v3829
      %v3831 = vmul.f32 %v3779, 1.442695
      %v3832 = vpow.pop %v3831
      %v3833 = vmul.f32 %v3780, 1.442695
      %v3834 = vpow.pop %v3833
      %v3835 = vmul.f32 %v3781, 1.442695
      %v3836 = vpow.pop %v3835
      %v3837 = vmul.f32 %v3782, 1.442695
      %v3838 = vpow.pop %v3837
      %v3839 = vmul.f32 %v3783, 1.442695
      %v3840 = vpow.pop %v3839
      %v3841 = vmul.f32 %v3784, 1.442695
      %v3842 = vpow.pop %v3841
      %v3843 = vmul.f32 %v3785, 1.442695
      %v3844 = vpow.pop %v3843
      %v3845 = vmul.f32 %v3786, 1.442695
      %v3846 = vpow.pop %v3845
      %v3847 = vmul.f32 %v3787, 1.442695
      %v3848 = vpow.pop %v3847
      %v3849 = vmul.f32 %v3788, 1.442695
      %v3850 = vpow.pop %v3849
      %v3851 = vmul.f32 %v3789, 1.442695
      %v3852 = vpow.pop %v3851
      %v3853 = vmul.f32 %v3790, 1.442695
      %v3854 = vpow.pop %v3853
      %v3855 = vsel %vm1182, %v3792, 0.0
      %3856 = vadd.xlane.f32.xlu0 %v3855
      %v3857 = vpop.xlane.xlu0 %3856
      %v3858 = vsel %vm1182, %v3794, 0.0
      %3859 = vadd.xlane.f32.xlu0 %v3858
      %v3860 = vpop.xlane.xlu0 %3859
      %v3861 = vsel %vm1182, %v3796, 0.0
      %3862 = vadd.xlane.f32.xlu0 %v3861
      %v3863 = vpop.xlane.xlu0 %3862
      %v3864 = vsel %vm1182, %v3798, 0.0
      %3865 = vadd.xlane.f32.xlu0 %v3864
      %v3866 = vpop.xlane.xlu0 %3865
      %v3867 = vsel %vm1182, %v3800, 0.0
      %3868 = vadd.xlane.f32.xlu0 %v3867
      %v3869 = vpop.xlane.xlu0 %3868
      %v3870 = vsel %vm1182, %v3802, 0.0
      %3871 = vadd.xlane.f32.xlu0 %v3870
      %v3872 = vpop.xlane.xlu0 %3871
      %v3873 = vsel %vm1182, %v3804, 0.0
      %3874 = vadd.xlane.f32.xlu0 %v3873
      %v3875 = vpop.xlane.xlu0 %3874
      %v3876 = vsel %vm1182, %v3806, 0.0
      %3877 = vadd.xlane.f32.xlu0 %v3876
      %v3878 = vpop.xlane.xlu0 %3877
      %v3879 = vsel %vm1182, %v3808, 0.0
      %3880 = vadd.xlane.f32.xlu0 %v3879
      %v3881 = vpop.xlane.xlu0 %3880
      %v3882 = vsel %vm1182, %v3810, 0.0
      %3883 = vadd.xlane.f32.xlu0 %v3882
      %v3884 = vpop.xlane.xlu0 %3883
      %v3885 = vsel %vm1182, %v3812, 0.0
      %3886 = vadd.xlane.f32.xlu0 %v3885
      %v3887 = vpop.xlane.xlu0 %3886
      %v3888 = vsel %vm1182, %v3814, 0.0
      %3889 = vadd.xlane.f32.xlu0 %v3888
      %v3890 = vpop.xlane.xlu0 %3889
      %v3891 = vsel %vm1182, %v3816, 0.0
      %3892 = vadd.xlane.f32.xlu0 %v3891
      %v3893 = vpop.xlane.xlu0 %3892
      %v3894 = vsel %vm1182, %v3818, 0.0
      %3895 = vadd.xlane.f32.xlu0 %v3894
      %v3896 = vpop.xlane.xlu0 %3895
      %v3897 = vsel %vm1182, %v3820, 0.0
      %3898 = vadd.xlane.f32.xlu0 %v3897
      %v3899 = vpop.xlane.xlu0 %3898
      %v3900 = vsel %vm1182, %v3822, 0.0
      %3901 = vadd.xlane.f32.xlu0 %v3900
      %v3902 = vpop.xlane.xlu0 %3901
      %v3903 = vsel %vm1182, %v3824, 0.0
      %3904 = vadd.xlane.f32.xlu0 %v3903
      %v3905 = vpop.xlane.xlu0 %3904
      %v3906 = vsel %vm1182, %v3826, 0.0
      %3907 = vadd.xlane.f32.xlu0 %v3906
      %v3908 = vpop.xlane.xlu0 %3907
      %v3909 = vsel %vm1182, %v3828, 0.0
      %3910 = vadd.xlane.f32.xlu0 %v3909
      %v3911 = vpop.xlane.xlu0 %3910
      %v3912 = vsel %vm1182, %v3830, 0.0
      %3913 = vadd.xlane.f32.xlu0 %v3912
      %v3914 = vpop.xlane.xlu0 %3913
      %v3915 = vsel %vm1182, %v3832, 0.0
      %3916 = vadd.xlane.f32.xlu0 %v3915
      %v3917 = vpop.xlane.xlu0 %3916
      %v3918 = vsel %vm1182, %v3834, 0.0
      %3919 = vadd.xlane.f32.xlu0 %v3918
      %v3920 = vpop.xlane.xlu0 %3919
      %v3921 = vsel %vm1182, %v3836, 0.0
      %3922 = vadd.xlane.f32.xlu0 %v3921
      %v3923 = vpop.xlane.xlu0 %3922
      %v3924 = vsel %vm1182, %v3838, 0.0
      %3925 = vadd.xlane.f32.xlu0 %v3924
      %v3926 = vpop.xlane.xlu0 %3925
      %v3927 = vsel %vm1182, %v3840, 0.0
      %3928 = vadd.xlane.f32.xlu0 %v3927
      %v3929 = vpop.xlane.xlu0 %3928
      %v3930 = vsel %vm1182, %v3842, 0.0
      %3931 = vadd.xlane.f32.xlu0 %v3930
      %v3932 = vpop.xlane.xlu0 %3931
      %v3933 = vsel %vm1182, %v3844, 0.0
      %3934 = vadd.xlane.f32.xlu0 %v3933
      %v3935 = vpop.xlane.xlu0 %3934
      %v3936 = vsel %vm1182, %v3846, 0.0
      %3937 = vadd.xlane.f32.xlu0 %v3936
      %v3938 = vpop.xlane.xlu0 %3937
      %v3939 = vsel %vm1182, %v3848, 0.0
      %3940 = vadd.xlane.f32.xlu0 %v3939
      %v3941 = vpop.xlane.xlu0 %3940
      %v3942 = vsel %vm1182, %v3850, 0.0
      %3943 = vadd.xlane.f32.xlu0 %v3942
      %v3944 = vpop.xlane.xlu0 %3943
      %v3945 = vsel %vm1182, %v3852, 0.0
      %3946 = vadd.xlane.f32.xlu0 %v3945
      %v3947 = vpop.xlane.xlu0 %3946
      %v3948 = vsel %vm1182, %v3854, 0.0
      %3949 = vadd.xlane.f32.xlu0 %v3948
      %v3950 = vpop.xlane.xlu0 %3949
      %v3951 = vrcp.pop %v3857
      %v3952 = vrcp.pop %v3860
      %v3953 = vrcp.pop %v3863
      %v3954 = vrcp.pop %v3866
      %v3955 = vrcp.pop %v3869
      %v3956 = vrcp.pop %v3872
      %v3957 = vrcp.pop %v3875
      %v3958 = vrcp.pop %v3878
      %v3959 = vrcp.pop %v3881
      %v3960 = vrcp.pop %v3884
      %v3961 = vrcp.pop %v3887
      %v3962 = vrcp.pop %v3890
      %v3963 = vrcp.pop %v3893
      %v3964 = vrcp.pop %v3896
      %v3965 = vrcp.pop %v3899
      %v3966 = vrcp.pop %v3902
      %v3967 = vrcp.pop %v3905
      %v3968 = vrcp.pop %v3908
      %v3969 = vrcp.pop %v3911
      %v3970 = vrcp.pop %v3914
      %v3971 = vrcp.pop %v3917
      %v3972 = vrcp.pop %v3920
      %v3973 = vrcp.pop %v3923
      %v3974 = vrcp.pop %v3926
      %v3975 = vrcp.pop %v3929
      %v3976 = vrcp.pop %v3932
      %v3977 = vrcp.pop %v3935
      %v3978 = vrcp.pop %v3938
      %v3979 = vrcp.pop %v3941
      %v3980 = vrcp.pop %v3944
      %v3981 = vrcp.pop %v3947
      %v3982 = vrcp.pop %v3950
      %v3983 = vmul.f32 %v3792, %v3951
      %v3984 = vmul.f32 %v3794, %v3952
      %v3985 = vmul.f32 %v3796, %v3953
      %v3986 = vmul.f32 %v3798, %v3954
      %v3987 = vmul.f32 %v3800, %v3955
      %v3988 = vmul.f32 %v3802, %v3956
      %v3989 = vmul.f32 %v3804, %v3957
      %v3990 = vmul.f32 %v3806, %v3958
      %v3991 = vmul.f32 %v3808, %v3959
      %v3992 = vmul.f32 %v3810, %v3960
      %v3993 = vmul.f32 %v3812, %v3961
      %v3994 = vmul.f32 %v3814, %v3962
      %v3995 = vmul.f32 %v3816, %v3963
      %v3996 = vmul.f32 %v3818, %v3964
      %v3997 = vmul.f32 %v3820, %v3965
      %v3998 = vmul.f32 %v3822, %v3966
      %v3999 = vmul.f32 %v3824, %v3967
      %v4000 = vmul.f32 %v3826, %v3968
      %v4001 = vmul.f32 %v3828, %v3969
      %v4002 = vmul.f32 %v3830, %v3970
      %v4003 = vmul.f32 %v3832, %v3971
      %v4004 = vmul.f32 %v3834, %v3972
      %v4005 = vmul.f32 %v3836, %v3973
      %v4006 = vmul.f32 %v3838, %v3974
      %v4007 = vmul.f32 %v3840, %v3975
      %v4008 = vmul.f32 %v3842, %v3976
      %v4009 = vmul.f32 %v3844, %v3977
      %v4010 = vmul.f32 %v3846, %v3978
      %v4011 = vmul.f32 %v3848, %v3979
      %v4012 = vmul.f32 %v3850, %v3980
      %v4013 = vmul.f32 %v3852, %v3981
      %v4014 = vmul.f32 %v3854, %v3982
      %v4015 = vpack.c.bf16 %v3984, %v3983
      %v4016 = vpack.c.bf16 %v3986, %v3985
      %v4017 = vpack.c.bf16 %v3988, %v3987
      %v4018 = vpack.c.bf16 %v3990, %v3989
      %v4019 = vpack.c.bf16 %v3992, %v3991
      %v4020 = vpack.c.bf16 %v3994, %v3993
      %v4021 = vpack.c.bf16 %v3996, %v3995
      %v4022 = vpack.c.bf16 %v3998, %v3997
      %v4023 = vpack.c.bf16 %v4000, %v3999
      %v4024 = vpack.c.bf16 %v4002, %v4001
      %v4025 = vpack.c.bf16 %v4004, %v4003
      %v4026 = vpack.c.bf16 %v4006, %v4005
      %v4027 = vpack.c.bf16 %v4008, %v4007
      %v4028 = vpack.c.bf16 %v4010, %v4009
      %v4029 = vpack.c.bf16 %v4012, %v4011
      %v4030 = vpack.c.bf16 %v4014, %v4013
      %4031 = vrot.lane.b32.xlu0 %v601, 48
      %v4032 = vpop.permute.xlu0 %4031
      %4033 = vrot.lane.b32.xlu0 %v602, 48
      %v4034 = vpop.permute.xlu0 %4033
      %4035 = vrot.lane.b32.xlu0 %v603, 48
      %v4036 = vpop.permute.xlu0 %4035
      %4037 = vrot.lane.b32.xlu0 %v604, 48
      %v4038 = vpop.permute.xlu0 %4037
      %v4044 = vsel %vm1182, %v4015, 0
      %v4047 = vsel %vm1182, %v4016, 0
      %v4050 = vsel %vm1182, %v4017, 0
      %v4053 = vsel %vm1182, %v4018, 0
      %4055 = vmatprep.subr.bf16.mxu0 0
      %4056 = vmatpush1.bf16.msra.mxu0 %v4032
      %4057 = vmatprep.subr.bf16.mxu0 0
      %4058 = vmatpush1.bf16.msra.mxu0 %v4034
      %4059 = vmatprep.subr.bf16.mxu0 0
      %4060 = vmatpush1.bf16.msra.mxu0 %v4036
      %4061 = vmatprep.subr.bf16.mxu0 0
      %4062 = vmatpush1.bf16.msra.mxu0 %v4038
      %4063 = vmatprep.subr.bf16.mxu0 0
      %4064 = vmatpush1.bf16.msra.mxu0 0
      %4065 = vmatprep.subr.bf16.mxu0 0
      %4066 = vmatpush1.bf16.msra.mxu0 0
      %4067 = vmatprep.subr.bf16.mxu0 0
      %4068 = vmatpush1.bf16.msra.mxu0 0
      %4069 = vmatprep.subr.bf16.mxu0 0
      %4070 = vmatpush1.bf16.msra.mxu0 0
      %4071 = vmatprep.subr.bf16.mxu0 0
      %4072 = vmatpush1.bf16.msra.mxu0 0
      %4073 = vmatprep.subr.bf16.mxu0 0
      %4074 = vmatpush1.bf16.msra.mxu0 0
      %4075 = vmatprep.subr.bf16.mxu0 0
      %4076 = vmatpush1.bf16.msra.mxu0 0
      %4077 = vmatprep.subr.bf16.mxu0 0
      %4078 = vmatpush1.bf16.msra.mxu0 0
      %4079 = vmatprep.subr.bf16.mxu0 0
      %4080 = vmatpush1.bf16.msra.mxu0 0
      %4081 = vmatprep.subr.bf16.mxu0 0
      %4082 = vmatpush1.bf16.msra.mxu0 0
      %4083 = vmatprep.subr.bf16.mxu0 0
      %4084 = vmatpush1.bf16.msra.mxu0 0
      %4085 = vmatprep.subr.bf16.mxu0 0
      %4086 = vmatpush1.bf16.msra.mxu0 0
      %4087 = vmatprep.mubr.bf16.mxu0 0
      %4088 = vmatmul.mubr.bf16.gmra.mrb[0].mxu0 %v4044
      %v4089 = vpop.f32.mrb[0].mxu0
      %v4090 = vadd.f32 0.0, %v4089
      %v4091 = vpop.f32.mrb[0].mxu0
      %v4092 = vpop.f32.mrb[0].mxu0
      %v4093 = vadd.f32 0.0, %v4092
      %v4094 = vpop.f32.mrb[0].mxu0
      %4095 = vmatprep.mubr.bf16.mxu0 0
      %4096 = vmatmul.mubr.bf16.gmra.mrb[0].mxu0 %v4047
      %v4097 = vpop.f32.mrb[0].mxu0
      %v4098 = vadd.f32 0.0, %v4097
      %v4099 = vpop.f32.mrb[0].mxu0
      %v4100 = vpop.f32.mrb[0].mxu0
      %v4101 = vadd.f32 0.0, %v4100
      %v4102 = vpop.f32.mrb[0].mxu0
      %4103 = vmatprep.mubr.bf16.mxu0 0
      %4104 = vmatmul.mubr.bf16.gmra.mrb[0].mxu0 %v4050
      %v4105 = vpop.f32.mrb[0].mxu0
      %v4106 = vadd.f32 0.0, %v4105
      %v4107 = vpop.f32.mrb[0].mxu0
      %v4108 = vpop.f32.mrb[0].mxu0
      %v4109 = vadd.f32 0.0, %v4108
      %v4110 = vpop.f32.mrb[0].mxu0
      %4111 = vmatprep.mubr.bf16.mxu0 0
      %4112 = vmatmul.mubr.bf16.gmra.mrb[0].mxu0 %v4053
      %v4113 = vpop.f32.mrb[0].mxu0
      %v4114 = vadd.f32 0.0, %v4113
      %v4115 = vpop.f32.mrb[0].mxu0
      %v4116 = vpop.f32.mrb[0].mxu0
      %v4117 = vadd.f32 0.0, %v4116
      %v4118 = vpop.f32.mrb[0].mxu0
      %4119 = vdwg.mxu0
      %4120 = vrot.lane.b32.xlu0 %v605, 48
      %v4121 = vpop.permute.xlu0 %4120
      %4122 = vrot.lane.b32.xlu0 %v606, 48
      %v4123 = vpop.permute.xlu0 %4122
      %4124 = vrot.lane.b32.xlu0 %v607, 48
      %v4125 = vpop.permute.xlu0 %4124
      %4126 = vrot.lane.b32.xlu0 %v608, 48
      %v4127 = vpop.permute.xlu0 %4126
      %v4133 = vsel %vm1182, %v4019, 0
      %v4136 = vsel %vm1182, %v4020, 0
      %v4139 = vsel %vm1182, %v4021, 0
      %v4142 = vsel %vm1182, %v4022, 0
      %4144 = vmatprep.subr.bf16.mxu0 0
      %4145 = vmatpush1.bf16.msra.mxu0 %v4121
      %4146 = vmatprep.subr.bf16.mxu0 0
      %4147 = vmatpush1.bf16.msra.mxu0 %v4123
      %4148 = vmatprep.subr.bf16.mxu0 0
      %4149 = vmatpush1.bf16.msra.mxu0 %v4125
      %4150 = vmatprep.subr.bf16.mxu0 0
      %4151 = vmatpush1.bf16.msra.mxu0 %v4127
      %4152 = vmatprep.subr.bf16.mxu0 0
      %4153 = vmatpush1.bf16.msra.mxu0 0
      %4154 = vmatprep.subr.bf16.mxu0 0
      %4155 = vmatpush1.bf16.msra.mxu0 0
      %4156 = vmatprep.subr.bf16.mxu0 0
      %4157 = vmatpush1.bf16.msra.mxu0 0
      %4158 = vmatprep.subr.bf16.mxu0 0
      %4159 = vmatpush1.bf16.msra.mxu0 0
      %4160 = vmatprep.subr.bf16.mxu0 0
      %4161 = vmatpush1.bf16.msra.mxu0 0
      %4162 = vmatprep.subr.bf16.mxu0 0
      %4163 = vmatpush1.bf16.msra.mxu0 0
      %4164 = vmatprep.subr.bf16.mxu0 0
      %4165 = vmatpush1.bf16.msra.mxu0 0
      %4166 = vmatprep.subr.bf16.mxu0 0
      %4167 = vmatpush1.bf16.msra.mxu0 0
      %4168 = vmatprep.subr.bf16.mxu0 0
      %4169 = vmatpush1.bf16.msra.mxu0 0
      %4170 = vmatprep.subr.bf16.mxu0 0
      %4171 = vmatpush1.bf16.msra.mxu0 0
      %4172 = vmatprep.subr.bf16.mxu0 0
      %4173 = vmatpush1.bf16.msra.mxu0 0
      %4174 = vmatprep.subr.bf16.mxu0 0
      %4175 = vmatpush1.bf16.msra.mxu0 0
      %4176 = vmatprep.mubr.bf16.mxu0 0
      %4177 = vmatmul.mubr.bf16.gmra.mrb[0].mxu0 %v4133
      %v4178 = vpop.f32.mrb[0].mxu0
      %v4179 = vadd.f32 0.0, %v4178
      %v4180 = vpop.f32.mrb[0].mxu0
      %v4181 = vpop.f32.mrb[0].mxu0
      %v4182 = vadd.f32 0.0, %v4181
      %v4183 = vpop.f32.mrb[0].mxu0
      %4184 = vmatprep.mubr.bf16.mxu0 0
      %4185 = vmatmul.mubr.bf16.gmra.mrb[0].mxu0 %v4136
      %v4186 = vpop.f32.mrb[0].mxu0
      %v4187 = vadd.f32 0.0, %v4186
      %v4188 = vpop.f32.mrb[0].mxu0
      %v4189 = vpop.f32.mrb[0].mxu0
      %v4190 = vadd.f32 0.0, %v4189
      %v4191 = vpop.f32.mrb[0].mxu0
      %4192 = vmatprep.mubr.bf16.mxu0 0
      %4193 = vmatmul.mubr.bf16.gmra.mrb[0].mxu0 %v4139
      %v4194 = vpop.f32.mrb[0].mxu0
      %v4195 = vadd.f32 0.0, %v4194
      %v4196 = vpop.f32.mrb[0].mxu0
      %v4197 = vpop.f32.mrb[0].mxu0
      %v4198 = vadd.f32 0.0, %v4197
      %v4199 = vpop.f32.mrb[0].mxu0
      %4200 = vmatprep.mubr.bf16.mxu0 0
      %4201 = vmatmul.mubr.bf16.gmra.mrb[0].mxu0 %v4142
      %v4202 = vpop.f32.mrb[0].mxu0
      %v4203 = vadd.f32 0.0, %v4202
      %v4204 = vpop.f32.mrb[0].mxu0
      %v4205 = vpop.f32.mrb[0].mxu0
      %v4206 = vadd.f32 0.0, %v4205
      %v4207 = vpop.f32.mrb[0].mxu0
      %4208 = vdwg.mxu0
      %4209 = vrot.lane.b32.xlu0 %v609, 48
      %v4210 = vpop.permute.xlu0 %4209
      %4211 = vrot.lane.b32.xlu0 %v610, 48
      %v4212 = vpop.permute.xlu0 %4211
      %4213 = vrot.lane.b32.xlu0 %v611, 48
      %v4214 = vpop.permute.xlu0 %4213
      %4215 = vrot.lane.b32.xlu0 %v612, 48
      %v4216 = vpop.permute.xlu0 %4215
      %v4222 = vsel %vm1182, %v4023, 0
      %v4225 = vsel %vm1182, %v4024, 0
      %v4228 = vsel %vm1182, %v4025, 0
      %v4231 = vsel %vm1182, %v4026, 0
      %4233 = vmatprep.subr.bf16.mxu0 0
      %4234 = vmatpush1.bf16.msra.mxu0 %v4210
      %4235 = vmatprep.subr.bf16.mxu0 0
      %4236 = vmatpush1.bf16.msra.mxu0 %v4212
      %4237 = vmatprep.subr.bf16.mxu0 0
      %4238 = vmatpush1.bf16.msra.mxu0 %v4214
      %4239 = vmatprep.subr.bf16.mxu0 0
      %4240 = vmatpush1.bf16.msra.mxu0 %v4216
      %4241 = vmatprep.subr.bf16.mxu0 0
      %4242 = vmatpush1.bf16.msra.mxu0 0
      %4243 = vmatprep.subr.bf16.mxu0 0
      %4244 = vmatpush1.bf16.msra.mxu0 0
      %4245 = vmatprep.subr.bf16.mxu0 0
      %4246 = vmatpush1.bf16.msra.mxu0 0
      %4247 = vmatprep.subr.bf16.mxu0 0
      %4248 = vmatpush1.bf16.msra.mxu0 0
      %4249 = vmatprep.subr.bf16.mxu0 0
      %4250 = vmatpush1.bf16.msra.mxu0 0
      %4251 = vmatprep.subr.bf16.mxu0 0
      %4252 = vmatpush1.bf16.msra.mxu0 0
      %4253 = vmatprep.subr.bf16.mxu0 0
      %4254 = vmatpush1.bf16.msra.mxu0 0
      %4255 = vmatprep.subr.bf16.mxu0 0
      %4256 = vmatpush1.bf16.msra.mxu0 0
      %4257 = vmatprep.subr.bf16.mxu0 0
      %4258 = vmatpush1.bf16.msra.mxu0 0
      %4259 = vmatprep.subr.bf16.mxu0 0
      %4260 = vmatpush1.bf16.msra.mxu0 0
      %4261 = vmatprep.subr.bf16.mxu0 0
      %4262 = vmatpush1.bf16.msra.mxu0 0
      %4263 = vmatprep.subr.bf16.mxu0 0
      %4264 = vmatpush1.bf16.msra.mxu0 0
      %4265 = vmatprep.mubr.bf16.mxu0 0
      %4266 = vmatmul.mubr.bf16.gmra.mrb[0].mxu0 %v4222
      %v4267 = vpop.f32.mrb[0].mxu0
      %v4268 = vadd.f32 0.0, %v4267
      %v4269 = vpop.f32.mrb[0].mxu0
      %v4270 = vpop.f32.mrb[0].mxu0
      %v4271 = vadd.f32 0.0, %v4270
      %v4272 = vpop.f32.mrb[0].mxu0
      %4273 = vmatprep.mubr.bf16.mxu0 0
      %4274 = vmatmul.mubr.bf16.gmra.mrb[0].mxu0 %v4225
      %v4275 = vpop.f32.mrb[0].mxu0
      %v4276 = vadd.f32 0.0, %v4275
      %v4277 = vpop.f32.mrb[0].mxu0
      %v4278 = vpop.f32.mrb[0].mxu0
      %v4279 = vadd.f32 0.0, %v4278
      %v4280 = vpop.f32.mrb[0].mxu0
      %4281 = vmatprep.mubr.bf16.mxu0 0
      %4282 = vmatmul.mubr.bf16.gmra.mrb[0].mxu0 %v4228
      %v4283 = vpop.f32.mrb[0].mxu0
      %v4284 = vadd.f32 0.0, %v4283
      %v4285 = vpop.f32.mrb[0].mxu0
      %v4286 = vpop.f32.mrb[0].mxu0
      %v4287 = vadd.f32 0.0, %v4286
      %v4288 = vpop.f32.mrb[0].mxu0
      %4289 = vmatprep.mubr.bf16.mxu0 0
      %4290 = vmatmul.mubr.bf16.gmra.mrb[0].mxu0 %v4231
      %v4291 = vpop.f32.mrb[0].mxu0
      %v4292 = vadd.f32 0.0, %v4291
      %v4293 = vpop.f32.mrb[0].mxu0
      %v4294 = vpop.f32.mrb[0].mxu0
      %v4295 = vadd.f32 0.0, %v4294
      %v4296 = vpop.f32.mrb[0].mxu0
      %4297 = vdwg.mxu0
      %4298 = vrot.lane.b32.xlu0 %v613, 48
      %v4299 = vpop.permute.xlu0 %4298
      %4300 = vrot.lane.b32.xlu0 %v614, 48
      %v4301 = vpop.permute.xlu0 %4300
      %4302 = vrot.lane.b32.xlu0 %v615, 48
      %v4303 = vpop.permute.xlu0 %4302
      %4304 = vrot.lane.b32.xlu0 %v616, 48
      %v4305 = vpop.permute.xlu0 %4304
      %v4311 = vsel %vm1182, %v4027, 0
      %v4314 = vsel %vm1182, %v4028, 0
      %v4317 = vsel %vm1182, %v4029, 0
      %v4320 = vsel %vm1182, %v4030, 0
      %4322 = vmatprep.subr.bf16.mxu0 0
      %4323 = vmatpush1.bf16.msra.mxu0 %v4299
      %4324 = vmatprep.subr.bf16.mxu0 0
      %4325 = vmatpush1.bf16.msra.mxu0 %v4301
      %4326 = vmatprep.subr.bf16.mxu0 0
      %4327 = vmatpush1.bf16.msra.mxu0 %v4303
      %4328 = vmatprep.subr.bf16.mxu0 0
      %4329 = vmatpush1.bf16.msra.mxu0 %v4305
      %4330 = vmatprep.subr.bf16.mxu0 0
      %4331 = vmatpush1.bf16.msra.mxu0 0
      %4332 = vmatprep.subr.bf16.mxu0 0
      %4333 = vmatpush1.bf16.msra.mxu0 0
      %4334 = vmatprep.subr.bf16.mxu0 0
      %4335 = vmatpush1.bf16.msra.mxu0 0
      %4336 = vmatprep.subr.bf16.mxu0 0
      %4337 = vmatpush1.bf16.msra.mxu0 0
      %4338 = vmatprep.subr.bf16.mxu0 0
      %4339 = vmatpush1.bf16.msra.mxu0 0
      %4340 = vmatprep.subr.bf16.mxu0 0
      %4341 = vmatpush1.bf16.msra.mxu0 0
      %4342 = vmatprep.subr.bf16.mxu0 0
      %4343 = vmatpush1.bf16.msra.mxu0 0
      %4344 = vmatprep.subr.bf16.mxu0 0
      %4345 = vmatpush1.bf16.msra.mxu0 0
      %4346 = vmatprep.subr.bf16.mxu0 0
      %4347 = vmatpush1.bf16.msra.mxu0 0
      %4348 = vmatprep.subr.bf16.mxu0 0
      %4349 = vmatpush1.bf16.msra.mxu0 0
      %4350 = vmatprep.subr.bf16.mxu0 0
      %4351 = vmatpush1.bf16.msra.mxu0 0
      %4352 = vmatprep.subr.bf16.mxu0 0
      %4353 = vmatpush1.bf16.msra.mxu0 0
      %4354 = vmatprep.mubr.bf16.mxu0 0
      %4355 = vmatmul.mubr.bf16.gmra.mrb[0].mxu0 %v4311
      %v4356 = vpop.f32.mrb[0].mxu0
      %v4357 = vadd.f32 0.0, %v4356
      %v4358 = vpop.f32.mrb[0].mxu0
      %v4359 = vpop.f32.mrb[0].mxu0
      %v4360 = vadd.f32 0.0, %v4359
      %v4361 = vpop.f32.mrb[0].mxu0
      %4362 = vmatprep.mubr.bf16.mxu0 0
      %4363 = vmatmul.mubr.bf16.gmra.mrb[0].mxu0 %v4314
      %v4364 = vpop.f32.mrb[0].mxu0
      %v4365 = vadd.f32 0.0, %v4364
      %v4366 = vpop.f32.mrb[0].mxu0
      %v4367 = vpop.f32.mrb[0].mxu0
      %v4368 = vadd.f32 0.0, %v4367
      %v4369 = vpop.f32.mrb[0].mxu0
      %4370 = vmatprep.mubr.bf16.mxu0 0
      %4371 = vmatmul.mubr.bf16.gmra.mrb[0].mxu0 %v4317
      %v4372 = vpop.f32.mrb[0].mxu0
      %v4373 = vadd.f32 0.0, %v4372
      %v4374 = vpop.f32.mrb[0].mxu0
      %v4375 = vpop.f32.mrb[0].mxu0
      %v4376 = vadd.f32 0.0, %v4375
      %v4377 = vpop.f32.mrb[0].mxu0
      %4378 = vmatprep.mubr.bf16.mxu0 0
      %4379 = vmatmul.mubr.bf16.gmra.mrb[0].mxu0 %v4320
      %v4380 = vpop.f32.mrb[0].mxu0
      %v4381 = vadd.f32 0.0, %v4380
      %v4382 = vpop.f32.mrb[0].mxu0
      %v4383 = vpop.f32.mrb[0].mxu0
      %v4384 = vadd.f32 0.0, %v4383
      %v4385 = vpop.f32.mrb[0].mxu0
      %4386 = vdwg.mxu0
      %4387 = vrot.lane.b32.xlu0 %v601, 104
      %v4388 = vpop.permute.xlu0 %4387
      %4389 = vrot.lane.b32.xlu0 %v602, 104
      %v4390 = vpop.permute.xlu0 %4389
      %4391 = vrot.lane.b32.xlu0 %v603, 104
      %v4392 = vpop.permute.xlu0 %4391
      %4393 = vrot.lane.b32.xlu0 %v604, 104
      %v4394 = vpop.permute.xlu0 %4393
      %4395 = vrot.lane.b32.xlu0 %v601, 72
      %v4396 = vpop.permute.xlu0 %4395
      %4397 = vrot.lane.b32.xlu0 %v602, 72
      %v4398 = vpop.permute.xlu0 %4397
      %4399 = vrot.lane.b32.xlu0 %v603, 72
      %v4400 = vpop.permute.xlu0 %4399
      %4401 = vrot.lane.b32.xlu0 %v604, 72
      %v4402 = vpop.permute.xlu0 %4401
      %v4404 = vsel %vm693, %v4388, 0
      %v4407 = vsel %vm693, %v4390, 0
      %v4410 = vsel %vm693, %v4392, 0
      %v4413 = vsel %vm693, %v4394, 0
      %v4416 = vsel %vm693, %v4396, 0
      %v4419 = vsel %vm693, %v4398, 0
      %v4422 = vsel %vm693, %v4400, 0
      %v4425 = vsel %vm693, %v4402, 0
      %4427 = vmatprep.subr.bf16.mxu0 0
      %4428 = vmatpush1.bf16.xpose.msra.mxu0 %v4416
      %4429 = vmatprep.subr.bf16.mxu0 0
      %4430 = vmatpush1.bf16.xpose.msra.mxu0 %v4419
      %4431 = vmatprep.subr.bf16.mxu0 0
      %4432 = vmatpush1.bf16.xpose.msra.mxu0 %v4422
      %4433 = vmatprep.subr.bf16.mxu0 0
      %4434 = vmatpush1.bf16.xpose.msra.mxu0 %v4425
      %4435 = vmatprep.subr.bf16.mxu0 0
      %4436 = vmatpush1.bf16.xpose.msra.mxu0 0
      %4437 = vmatprep.subr.bf16.mxu0 0
      %4438 = vmatpush1.bf16.xpose.msra.mxu0 0
      %4439 = vmatprep.subr.bf16.mxu0 0
      %4440 = vmatpush1.bf16.xpose.msra.mxu0 0
      %4441 = vmatprep.subr.bf16.mxu0 0
      %4442 = vmatpush1.bf16.xpose.msra.mxu0 0
      %4443 = vmatprep.subr.bf16.mxu0 0
      %4444 = vmatpush1.bf16.xpose.msra.mxu0 0
      %4445 = vmatprep.subr.bf16.mxu0 0
      %4446 = vmatpush1.bf16.xpose.msra.mxu0 0
      %4447 = vmatprep.subr.bf16.mxu0 0
      %4448 = vmatpush1.bf16.xpose.msra.mxu0 0
      %4449 = vmatprep.subr.bf16.mxu0 0
      %4450 = vmatpush1.bf16.xpose.msra.mxu0 0
      %4451 = vmatprep.subr.bf16.mxu0 0
      %4452 = vmatpush1.bf16.xpose.msra.mxu0 0
      %4453 = vmatprep.subr.bf16.mxu0 0
      %4454 = vmatpush1.bf16.xpose.msra.mxu0 0
      %4455 = vmatprep.subr.bf16.mxu0 0
      %4456 = vmatpush1.bf16.xpose.msra.mxu0 0
      %4457 = vmatprep.subr.bf16.mxu0 0
      %4458 = vmatpush1.bf16.xpose.msra.mxu0 0
      %4459 = vmatprep.mubr.bf16.mxu0 0
      %4460 = vmatmul.mubr.bf16.gmra.mrb[0].mxu0 %v4404
      %v4461 = vpop.f32.mrb[0].mxu0
      %v4462 = vadd.f32 0.0, %v4461
      %v4463 = vpop.f32.mrb[0].mxu0
      %v4464 = vpop.f32.mrb[0].mxu0
      %v4465 = vadd.f32 0.0, %v4464
      %v4466 = vpop.f32.mrb[0].mxu0
      %4467 = vmatprep.mubr.bf16.mxu0 0
      %4468 = vmatmul.mubr.bf16.gmra.mrb[0].mxu0 %v4407
      %v4469 = vpop.f32.mrb[0].mxu0
      %v4470 = vadd.f32 0.0, %v4469
      %v4471 = vpop.f32.mrb[0].mxu0
      %v4472 = vpop.f32.mrb[0].mxu0
      %v4473 = vadd.f32 0.0, %v4472
      %v4474 = vpop.f32.mrb[0].mxu0
      %4475 = vmatprep.mubr.bf16.mxu0 0
      %4476 = vmatmul.mubr.bf16.gmra.mrb[0].mxu0 %v4410
      %v4477 = vpop.f32.mrb[0].mxu0
      %v4478 = vadd.f32 0.0, %v4477
      %v4479 = vpop.f32.mrb[0].mxu0
      %v4480 = vpop.f32.mrb[0].mxu0
      %v4481 = vadd.f32 0.0, %v4480
      %v4482 = vpop.f32.mrb[0].mxu0
      %4483 = vmatprep.mubr.bf16.mxu0 0
      %4484 = vmatmul.mubr.bf16.gmra.mrb[0].mxu0 %v4413
      %v4485 = vpop.f32.mrb[0].mxu0
      %v4486 = vadd.f32 0.0, %v4485
      %v4487 = vpop.f32.mrb[0].mxu0
      %v4488 = vpop.f32.mrb[0].mxu0
      %v4489 = vadd.f32 0.0, %v4488
      %v4490 = vpop.f32.mrb[0].mxu0
      %4491 = vdwg.mxu0
      %4492 = vrot.lane.b32.xlu0 %v605, 104
      %v4493 = vpop.permute.xlu0 %4492
      %4494 = vrot.lane.b32.xlu0 %v606, 104
      %v4495 = vpop.permute.xlu0 %4494
      %4496 = vrot.lane.b32.xlu0 %v607, 104
      %v4497 = vpop.permute.xlu0 %4496
      %4498 = vrot.lane.b32.xlu0 %v608, 104
      %v4499 = vpop.permute.xlu0 %4498
      %4500 = vrot.lane.b32.xlu0 %v605, 72
      %v4501 = vpop.permute.xlu0 %4500
      %4502 = vrot.lane.b32.xlu0 %v606, 72
      %v4503 = vpop.permute.xlu0 %4502
      %4504 = vrot.lane.b32.xlu0 %v607, 72
      %v4505 = vpop.permute.xlu0 %4504
      %4506 = vrot.lane.b32.xlu0 %v608, 72
      %v4507 = vpop.permute.xlu0 %4506
      %v4509 = vsel %vm693, %v4493, 0
      %v4512 = vsel %vm693, %v4495, 0
      %v4515 = vsel %vm693, %v4497, 0
      %v4518 = vsel %vm693, %v4499, 0
      %v4521 = vsel %vm693, %v4501, 0
      %v4524 = vsel %vm693, %v4503, 0
      %v4527 = vsel %vm693, %v4505, 0
      %v4530 = vsel %vm693, %v4507, 0
      %4532 = vmatprep.subr.bf16.mxu0 0
      %4533 = vmatpush1.bf16.xpose.msra.mxu0 %v4521
      %4534 = vmatprep.subr.bf16.mxu0 0
      %4535 = vmatpush1.bf16.xpose.msra.mxu0 %v4524
      %4536 = vmatprep.subr.bf16.mxu0 0
      %4537 = vmatpush1.bf16.xpose.msra.mxu0 %v4527
      %4538 = vmatprep.subr.bf16.mxu0 0
      %4539 = vmatpush1.bf16.xpose.msra.mxu0 %v4530
      %4540 = vmatprep.subr.bf16.mxu0 0
      %4541 = vmatpush1.bf16.xpose.msra.mxu0 0
      %4542 = vmatprep.subr.bf16.mxu0 0
      %4543 = vmatpush1.bf16.xpose.msra.mxu0 0
      %4544 = vmatprep.subr.bf16.mxu0 0
      %4545 = vmatpush1.bf16.xpose.msra.mxu0 0
      %4546 = vmatprep.subr.bf16.mxu0 0
      %4547 = vmatpush1.bf16.xpose.msra.mxu0 0
      %4548 = vmatprep.subr.bf16.mxu0 0
      %4549 = vmatpush1.bf16.xpose.msra.mxu0 0
      %4550 = vmatprep.subr.bf16.mxu0 0
      %4551 = vmatpush1.bf16.xpose.msra.mxu0 0
      %4552 = vmatprep.subr.bf16.mxu0 0
      %4553 = vmatpush1.bf16.xpose.msra.mxu0 0
      %4554 = vmatprep.subr.bf16.mxu0 0
      %4555 = vmatpush1.bf16.xpose.msra.mxu0 0
      %4556 = vmatprep.subr.bf16.mxu0 0
      %4557 = vmatpush1.bf16.xpose.msra.mxu0 0
      %4558 = vmatprep.subr.bf16.mxu0 0
      %4559 = vmatpush1.bf16.xpose.msra.mxu0 0
      %4560 = vmatprep.subr.bf16.mxu0 0
      %4561 = vmatpush1.bf16.xpose.msra.mxu0 0
      %4562 = vmatprep.subr.bf16.mxu0 0
      %4563 = vmatpush1.bf16.xpose.msra.mxu0 0
      %4564 = vmatprep.mubr.bf16.mxu0 0
      %4565 = vmatmul.mubr.bf16.gmra.mrb[0].mxu0 %v4509
      %v4566 = vpop.f32.mrb[0].mxu0
      %v4567 = vadd.f32 0.0, %v4566
      %v4568 = vpop.f32.mrb[0].mxu0
      %v4569 = vpop.f32.mrb[0].mxu0
      %v4570 = vadd.f32 0.0, %v4569
      %v4571 = vpop.f32.mrb[0].mxu0
      %4572 = vmatprep.mubr.bf16.mxu0 0
      %4573 = vmatmul.mubr.bf16.gmra.mrb[0].mxu0 %v4512
      %v4574 = vpop.f32.mrb[0].mxu0
      %v4575 = vadd.f32 0.0, %v4574
      %v4576 = vpop.f32.mrb[0].mxu0
      %v4577 = vpop.f32.mrb[0].mxu0
      %v4578 = vadd.f32 0.0, %v4577
      %v4579 = vpop.f32.mrb[0].mxu0
      %4580 = vmatprep.mubr.bf16.mxu0 0
      %4581 = vmatmul.mubr.bf16.gmra.mrb[0].mxu0 %v4515
      %v4582 = vpop.f32.mrb[0].mxu0
      %v4583 = vadd.f32 0.0, %v4582
      %v4584 = vpop.f32.mrb[0].mxu0
      %v4585 = vpop.f32.mrb[0].mxu0
      %v4586 = vadd.f32 0.0, %v4585
      %v4587 = vpop.f32.mrb[0].mxu0
      %4588 = vmatprep.mubr.bf16.mxu0 0
      %4589 = vmatmul.mubr.bf16.gmra.mrb[0].mxu0 %v4518
      %v4590 = vpop.f32.mrb[0].mxu0
      %v4591 = vadd.f32 0.0, %v4590
      %v4592 = vpop.f32.mrb[0].mxu0
      %v4593 = vpop.f32.mrb[0].mxu0
      %v4594 = vadd.f32 0.0, %v4593
      %v4595 = vpop.f32.mrb[0].mxu0
      %4596 = vdwg.mxu0
      %4597 = vrot.lane.b32.xlu0 %v609, 104
      %v4598 = vpop.permute.xlu0 %4597
      %4599 = vrot.lane.b32.xlu0 %v610, 104
      %v4600 = vpop.permute.xlu0 %4599
      %4601 = vrot.lane.b32.xlu0 %v611, 104
      %v4602 = vpop.permute.xlu0 %4601
      %4603 = vrot.lane.b32.xlu0 %v612, 104
      %v4604 = vpop.permute.xlu0 %4603
      %4605 = vrot.lane.b32.xlu0 %v609, 72
      %v4606 = vpop.permute.xlu0 %4605
      %4607 = vrot.lane.b32.xlu0 %v610, 72
      %v4608 = vpop.permute.xlu0 %4607
      %4609 = vrot.lane.b32.xlu0 %v611, 72
      %v4610 = vpop.permute.xlu0 %4609
      %4611 = vrot.lane.b32.xlu0 %v612, 72
      %v4612 = vpop.permute.xlu0 %4611
      %v4614 = vsel %vm693, %v4598, 0
      %v4617 = vsel %vm693, %v4600, 0
      %v4620 = vsel %vm693, %v4602, 0
      %v4623 = vsel %vm693, %v4604, 0
      %v4626 = vsel %vm693, %v4606, 0
      %v4629 = vsel %vm693, %v4608, 0
      %v4632 = vsel %vm693, %v4610, 0
      %v4635 = vsel %vm693, %v4612, 0
      %4637 = vmatprep.subr.bf16.mxu0 0
      %4638 = vmatpush1.bf16.xpose.msra.mxu0 %v4626
      %4639 = vmatprep.subr.bf16.mxu0 0
      %4640 = vmatpush1.bf16.xpose.msra.mxu0 %v4629
      %4641 = vmatprep.subr.bf16.mxu0 0
      %4642 = vmatpush1.bf16.xpose.msra.mxu0 %v4632
      %4643 = vmatprep.subr.bf16.mxu0 0
      %4644 = vmatpush1.bf16.xpose.msra.mxu0 %v4635
      %4645 = vmatprep.subr.bf16.mxu0 0
      %4646 = vmatpush1.bf16.xpose.msra.mxu0 0
      %4647 = vmatprep.subr.bf16.mxu0 0
      %4648 = vmatpush1.bf16.xpose.msra.mxu0 0
      %4649 = vmatprep.subr.bf16.mxu0 0
      %4650 = vmatpush1.bf16.xpose.msra.mxu0 0
      %4651 = vmatprep.subr.bf16.mxu0 0
      %4652 = vmatpush1.bf16.xpose.msra.mxu0 0
      %4653 = vmatprep.subr.bf16.mxu0 0
      %4654 = vmatpush1.bf16.xpose.msra.mxu0 0
      %4655 = vmatprep.subr.bf16.mxu0 0
      %4656 = vmatpush1.bf16.xpose.msra.mxu0 0
      %4657 = vmatprep.subr.bf16.mxu0 0
      %4658 = vmatpush1.bf16.xpose.msra.mxu0 0
      %4659 = vmatprep.subr.bf16.mxu0 0
      %4660 = vmatpush1.bf16.xpose.msra.mxu0 0
      %4661 = vmatprep.subr.bf16.mxu0 0
      %4662 = vmatpush1.bf16.xpose.msra.mxu0 0
      %4663 = vmatprep.subr.bf16.mxu0 0
      %4664 = vmatpush1.bf16.xpose.msra.mxu0 0
      %4665 = vmatprep.subr.bf16.mxu0 0
      %4666 = vmatpush1.bf16.xpose.msra.mxu0 0
      %4667 = vmatprep.subr.bf16.mxu0 0
      %4668 = vmatpush1.bf16.xpose.msra.mxu0 0
      %4669 = vmatprep.mubr.bf16.mxu0 0
      %4670 = vmatmul.mubr.bf16.gmra.mrb[0].mxu0 %v4614
      %v4671 = vpop.f32.mrb[0].mxu0
      %v4672 = vadd.f32 0.0, %v4671
      %v4673 = vpop.f32.mrb[0].mxu0
      %v4674 = vpop.f32.mrb[0].mxu0
      %v4675 = vadd.f32 0.0, %v4674
      %v4676 = vpop.f32.mrb[0].mxu0
      %4677 = vmatprep.mubr.bf16.mxu0 0
      %4678 = vmatmul.mubr.bf16.gmra.mrb[0].mxu0 %v4617
      %v4679 = vpop.f32.mrb[0].mxu0
      %v4680 = vadd.f32 0.0, %v4679
      %v4681 = vpop.f32.mrb[0].mxu0
      %v4682 = vpop.f32.mrb[0].mxu0
      %v4683 = vadd.f32 0.0, %v4682
      %v4684 = vpop.f32.mrb[0].mxu0
      %4685 = vmatprep.mubr.bf16.mxu0 0
      %4686 = vmatmul.mubr.bf16.gmra.mrb[0].mxu0 %v4620
      %v4687 = vpop.f32.mrb[0].mxu0
      %v4688 = vadd.f32 0.0, %v4687
      %v4689 = vpop.f32.mrb[0].mxu0
      %v4690 = vpop.f32.mrb[0].mxu0
      %v4691 = vadd.f32 0.0, %v4690
      %v4692 = vpop.f32.mrb[0].mxu0
      %4693 = vmatprep.mubr.bf16.mxu0 0
      %4694 = vmatmul.mubr.bf16.gmra.mrb[0].mxu0 %v4623
      %v4695 = vpop.f32.mrb[0].mxu0
      %v4696 = vadd.f32 0.0, %v4695
      %v4697 = vpop.f32.mrb[0].mxu0
      %v4698 = vpop.f32.mrb[0].mxu0
      %v4699 = vadd.f32 0.0, %v4698
      %v4700 = vpop.f32.mrb[0].mxu0
      %4701 = vdwg.mxu0
      %4702 = vrot.lane.b32.xlu0 %v613, 104
      %v4703 = vpop.permute.xlu0 %4702
      %4704 = vrot.lane.b32.xlu0 %v614, 104
      %v4705 = vpop.permute.xlu0 %4704
      %4706 = vrot.lane.b32.xlu0 %v615, 104
      %v4707 = vpop.permute.xlu0 %4706
      %4708 = vrot.lane.b32.xlu0 %v616, 104
      %v4709 = vpop.permute.xlu0 %4708
      %4710 = vrot.lane.b32.xlu0 %v613, 72
      %v4711 = vpop.permute.xlu0 %4710
      %4712 = vrot.lane.b32.xlu0 %v614, 72
      %v4713 = vpop.permute.xlu0 %4712
      %4714 = vrot.lane.b32.xlu0 %v615, 72
      %v4715 = vpop.permute.xlu0 %4714
      %4716 = vrot.lane.b32.xlu0 %v616, 72
      %v4717 = vpop.permute.xlu0 %4716
      %v4719 = vsel %vm693, %v4703, 0
      %v4722 = vsel %vm693, %v4705, 0
      %v4725 = vsel %vm693, %v4707, 0
      %v4728 = vsel %vm693, %v4709, 0
      %v4731 = vsel %vm693, %v4711, 0
      %v4734 = vsel %vm693, %v4713, 0
      %v4737 = vsel %vm693, %v4715, 0
      %v4740 = vsel %vm693, %v4717, 0
      %4742 = vmatprep.subr.bf16.mxu0 0
      %4743 = vmatpush1.bf16.xpose.msra.mxu0 %v4731
      %4744 = vmatprep.subr.bf16.mxu0 0
      %4745 = vmatpush1.bf16.xpose.msra.mxu0 %v4734
      %4746 = vmatprep.subr.bf16.mxu0 0
      %4747 = vmatpush1.bf16.xpose.msra.mxu0 %v4737
      %4748 = vmatprep.subr.bf16.mxu0 0
      %4749 = vmatpush1.bf16.xpose.msra.mxu0 %v4740
      %4750 = vmatprep.subr.bf16.mxu0 0
      %4751 = vmatpush1.bf16.xpose.msra.mxu0 0
      %4752 = vmatprep.subr.bf16.mxu0 0
      %4753 = vmatpush1.bf16.xpose.msra.mxu0 0
      %4754 = vmatprep.subr.bf16.mxu0 0
      %4755 = vmatpush1.bf16.xpose.msra.mxu0 0
      %4756 = vmatprep.subr.bf16.mxu0 0
      %4757 = vmatpush1.bf16.xpose.msra.mxu0 0
      %4758 = vmatprep.subr.bf16.mxu0 0
      %4759 = vmatpush1.bf16.xpose.msra.mxu0 0
      %4760 = vmatprep.subr.bf16.mxu0 0
      %4761 = vmatpush1.bf16.xpose.msra.mxu0 0
      %4762 = vmatprep.subr.bf16.mxu0 0
      %4763 = vmatpush1.bf16.xpose.msra.mxu0 0
      %4764 = vmatprep.subr.bf16.mxu0 0
      %4765 = vmatpush1.bf16.xpose.msra.mxu0 0
      %4766 = vmatprep.subr.bf16.mxu0 0
      %4767 = vmatpush1.bf16.xpose.msra.mxu0 0
      %4768 = vmatprep.subr.bf16.mxu0 0
      %4769 = vmatpush1.bf16.xpose.msra.mxu0 0
      %4770 = vmatprep.subr.bf16.mxu0 0
      %4771 = vmatpush1.bf16.xpose.msra.mxu0 0
      %4772 = vmatprep.subr.bf16.mxu0 0
      %4773 = vmatpush1.bf16.xpose.msra.mxu0 0
      %4774 = vmatprep.mubr.bf16.mxu0 0
      %4775 = vmatmul.mubr.bf16.gmra.mrb[0].mxu0 %v4719
      %v4776 = vpop.f32.mrb[0].mxu0
      %v4777 = vadd.f32 0.0, %v4776
      %v4778 = vpop.f32.mrb[0].mxu0
      %v4779 = vpop.f32.mrb[0].mxu0
      %v4780 = vadd.f32 0.0, %v4779
      %v4781 = vpop.f32.mrb[0].mxu0
      %4782 = vmatprep.mubr.bf16.mxu0 0
      %4783 = vmatmul.mubr.bf16.gmra.mrb[0].mxu0 %v4722
      %v4784 = vpop.f32.mrb[0].mxu0
      %v4785 = vadd.f32 0.0, %v4784
      %v4786 = vpop.f32.mrb[0].mxu0
      %v4787 = vpop.f32.mrb[0].mxu0
      %v4788 = vadd.f32 0.0, %v4787
      %v4789 = vpop.f32.mrb[0].mxu0
      %4790 = vmatprep.mubr.bf16.mxu0 0
      %4791 = vmatmul.mubr.bf16.gmra.mrb[0].mxu0 %v4725
      %v4792 = vpop.f32.mrb[0].mxu0
      %v4793 = vadd.f32 0.0, %v4792
      %v4794 = vpop.f32.mrb[0].mxu0
      %v4795 = vpop.f32.mrb[0].mxu0
      %v4796 = vadd.f32 0.0, %v4795
      %v4797 = vpop.f32.mrb[0].mxu0
      %4798 = vmatprep.mubr.bf16.mxu0 0
      %4799 = vmatmul.mubr.bf16.gmra.mrb[0].mxu0 %v4728
      %v4800 = vpop.f32.mrb[0].mxu0
      %v4801 = vadd.f32 0.0, %v4800
      %v4802 = vpop.f32.mrb[0].mxu0
      %v4803 = vpop.f32.mrb[0].mxu0
      %v4804 = vadd.f32 0.0, %v4803
      %v4805 = vpop.f32.mrb[0].mxu0
      %4806 = vdwg.mxu0
      %v4807 = vmul.f32 %v4462, 0.35355338
      %v4808 = vmul.f32 %v4465, 0.35355338
      %v4809 = vmul.f32 %v4470, 0.35355338
      %v4810 = vmul.f32 %v4473, 0.35355338
      %v4811 = vmul.f32 %v4478, 0.35355338
      %v4812 = vmul.f32 %v4481, 0.35355338
      %v4813 = vmul.f32 %v4486, 0.35355338
      %v4814 = vmul.f32 %v4489, 0.35355338
      %v4815 = vmul.f32 %v4567, 0.35355338
      %v4816 = vmul.f32 %v4570, 0.35355338
      %v4817 = vmul.f32 %v4575, 0.35355338
      %v4818 = vmul.f32 %v4578, 0.35355338
      %v4819 = vmul.f32 %v4583, 0.35355338
      %v4820 = vmul.f32 %v4586, 0.35355338
      %v4821 = vmul.f32 %v4591, 0.35355338
      %v4822 = vmul.f32 %v4594, 0.35355338
      %v4823 = vmul.f32 %v4672, 0.35355338
      %v4824 = vmul.f32 %v4675, 0.35355338
      %v4825 = vmul.f32 %v4680, 0.35355338
      %v4826 = vmul.f32 %v4683, 0.35355338
      %v4827 = vmul.f32 %v4688, 0.35355338
      %v4828 = vmul.f32 %v4691, 0.35355338
      %v4829 = vmul.f32 %v4696, 0.35355338
      %v4830 = vmul.f32 %v4699, 0.35355338
      %v4831 = vmul.f32 %v4777, 0.35355338
      %v4832 = vmul.f32 %v4780, 0.35355338
      %v4833 = vmul.f32 %v4785, 0.35355338
      %v4834 = vmul.f32 %v4788, 0.35355338
      %v4835 = vmul.f32 %v4793, 0.35355338
      %v4836 = vmul.f32 %v4796, 0.35355338
      %v4837 = vmul.f32 %v4801, 0.35355338
      %v4838 = vmul.f32 %v4804, 0.35355338
      %v4839 = vadd.f32 %v4807, %v641
      %v4840 = vadd.f32 %v4808, %v642
      %v4841 = vadd.f32 %v4809, %v643
      %v4842 = vadd.f32 %v4810, %v644
      %v4843 = vadd.f32 %v4811, %v645
      %v4844 = vadd.f32 %v4812, %v646
      %v4845 = vadd.f32 %v4813, %v647
      %v4846 = vadd.f32 %v4814, %v648
      %v4847 = vadd.f32 %v4815, %v641
      %v4848 = vadd.f32 %v4816, %v642
      %v4849 = vadd.f32 %v4817, %v643
      %v4850 = vadd.f32 %v4818, %v644
      %v4851 = vadd.f32 %v4819, %v645
      %v4852 = vadd.f32 %v4820, %v646
      %v4853 = vadd.f32 %v4821, %v647
      %v4854 = vadd.f32 %v4822, %v648
      %v4855 = vadd.f32 %v4823, %v641
      %v4856 = vadd.f32 %v4824, %v642
      %v4857 = vadd.f32 %v4825, %v643
      %v4858 = vadd.f32 %v4826, %v644
      %v4859 = vadd.f32 %v4827, %v645
      %v4860 = vadd.f32 %v4828, %v646
      %v4861 = vadd.f32 %v4829, %v647
      %v4862 = vadd.f32 %v4830, %v648
      %v4863 = vadd.f32 %v4831, %v641
      %v4864 = vadd.f32 %v4832, %v642
      %v4865 = vadd.f32 %v4833, %v643
      %v4866 = vadd.f32 %v4834, %v644
      %v4867 = vadd.f32 %v4835, %v645
      %v4868 = vadd.f32 %v4836, %v646
      %v4869 = vadd.f32 %v4837, %v647
      %v4870 = vadd.f32 %v4838, %v648
      %v4871 = vadd.f32 %v4839, %v649
      %v4872 = vadd.f32 %v4840, %v650
      %v4873 = vadd.f32 %v4841, %v651
      %v4874 = vadd.f32 %v4842, %v652
      %v4875 = vadd.f32 %v4843, %v653
      %v4876 = vadd.f32 %v4844, %v654
      %v4877 = vadd.f32 %v4845, %v655
      %v4878 = vadd.f32 %v4846, %v656
      %v4879 = vadd.f32 %v4847, %v657
      %v4880 = vadd.f32 %v4848, %v658
      %v4881 = vadd.f32 %v4849, %v659
      %v4882 = vadd.f32 %v4850, %v660
      %v4883 = vadd.f32 %v4851, %v661
      %v4884 = vadd.f32 %v4852, %v662
      %v4885 = vadd.f32 %v4853, %v663
      %v4886 = vadd.f32 %v4854, %v664
      %v4887 = vadd.f32 %v4855, %v665
      %v4888 = vadd.f32 %v4856, %v666
      %v4889 = vadd.f32 %v4857, %v667
      %v4890 = vadd.f32 %v4858, %v668
      %v4891 = vadd.f32 %v4859, %v669
      %v4892 = vadd.f32 %v4860, %v670
      %v4893 = vadd.f32 %v4861, %v671
      %v4894 = vadd.f32 %v4862, %v672
      %v4895 = vadd.f32 %v4863, %v673
      %v4896 = vadd.f32 %v4864, %v674
      %v4897 = vadd.f32 %v4865, %v675
      %v4898 = vadd.f32 %v4866, %v676
      %v4899 = vadd.f32 %v4867, %v677
      %v4900 = vadd.f32 %v4868, %v678
      %v4901 = vadd.f32 %v4869, %v679
      %v4902 = vadd.f32 %v4870, %v680
      %v4903 = vsel %vm1182, %v4871, -inf
      %4904 = vmax.xlane.f32.xlu0 %v4903
      %v4905 = vpop.xlane.xlu0 %4904
      %v4906 = vsel %vm1182, %v4872, -inf
      %4907 = vmax.xlane.f32.xlu0 %v4906
      %v4908 = vpop.xlane.xlu0 %4907
      %v4909 = vsel %vm1182, %v4873, -inf
      %4910 = vmax.xlane.f32.xlu0 %v4909
      %v4911 = vpop.xlane.xlu0 %4910
      %v4912 = vsel %vm1182, %v4874, -inf
      %4913 = vmax.xlane.f32.xlu0 %v4912
      %v4914 = vpop.xlane.xlu0 %4913
      %v4915 = vsel %vm1182, %v4875, -inf
      %4916 = vmax.xlane.f32.xlu0 %v4915
      %v4917 = vpop.xlane.xlu0 %4916
      %v4918 = vsel %vm1182, %v4876, -inf
      %4919 = vmax.xlane.f32.xlu0 %v4918
      %v4920 = vpop.xlane.xlu0 %4919
      %v4921 = vsel %vm1182, %v4877, -inf
      %4922 = vmax.xlane.f32.xlu0 %v4921
      %v4923 = vpop.xlane.xlu0 %4922
      %v4924 = vsel %vm1182, %v4878, -inf
      %4925 = vmax.xlane.f32.xlu0 %v4924
      %v4926 = vpop.xlane.xlu0 %4925
      %v4927 = vsel %vm1182, %v4879, -inf
      %4928 = vmax.xlane.f32.xlu0 %v4927
      %v4929 = vpop.xlane.xlu0 %4928
      %v4930 = vsel %vm1182, %v4880, -inf
      %4931 = vmax.xlane.f32.xlu0 %v4930
      %v4932 = vpop.xlane.xlu0 %4931
      %v4933 = vsel %vm1182, %v4881, -inf
      %4934 = vmax.xlane.f32.xlu0 %v4933
      %v4935 = vpop.xlane.xlu0 %4934
      %v4936 = vsel %vm1182, %v4882, -inf
      %4937 = vmax.xlane.f32.xlu0 %v4936
      %v4938 = vpop.xlane.xlu0 %4937
      %v4939 = vsel %vm1182, %v4883, -inf
      %4940 = vmax.xlane.f32.xlu0 %v4939
      %v4941 = vpop.xlane.xlu0 %4940
      %v4942 = vsel %vm1182, %v4884, -inf
      %4943 = vmax.xlane.f32.xlu0 %v4942
      %v4944 = vpop.xlane.xlu0 %4943
      %v4945 = vsel %vm1182, %v4885, -inf
      %4946 = vmax.xlane.f32.xlu0 %v4945
      %v4947 = vpop.xlane.xlu0 %4946
      %v4948 = vsel %vm1182, %v4886, -inf
      %4949 = vmax.xlane.f32.xlu0 %v4948
      %v4950 = vpop.xlane.xlu0 %4949
      %v4951 = vsel %vm1182, %v4887, -inf
      %4952 = vmax.xlane.f32.xlu0 %v4951
      %v4953 = vpop.xlane.xlu0 %4952
      %v4954 = vsel %vm1182, %v4888, -inf
      %4955 = vmax.xlane.f32.xlu0 %v4954
      %v4956 = vpop.xlane.xlu0 %4955
      %v4957 = vsel %vm1182, %v4889, -inf
      %4958 = vmax.xlane.f32.xlu0 %v4957
      %v4959 = vpop.xlane.xlu0 %4958
      %v4960 = vsel %vm1182, %v4890, -inf
      %4961 = vmax.xlane.f32.xlu0 %v4960
      %v4962 = vpop.xlane.xlu0 %4961
      %v4963 = vsel %vm1182, %v4891, -inf
      %4964 = vmax.xlane.f32.xlu0 %v4963
      %v4965 = vpop.xlane.xlu0 %4964
      %v4966 = vsel %vm1182, %v4892, -inf
      %4967 = vmax.xlane.f32.xlu0 %v4966
      %v4968 = vpop.xlane.xlu0 %4967
      %v4969 = vsel %vm1182, %v4893, -inf
      %4970 = vmax.xlane.f32.xlu0 %v4969
      %v4971 = vpop.xlane.xlu0 %4970
      %v4972 = vsel %vm1182, %v4894, -inf
      %4973 = vmax.xlane.f32.xlu0 %v4972
      %v4974 = vpop.xlane.xlu0 %4973
      %v4975 = vsel %vm1182, %v4895, -inf
      %4976 = vmax.xlane.f32.xlu0 %v4975
      %v4977 = vpop.xlane.xlu0 %4976
      %v4978 = vsel %vm1182, %v4896, -inf
      %4979 = vmax.xlane.f32.xlu0 %v4978
      %v4980 = vpop.xlane.xlu0 %4979
      %v4981 = vsel %vm1182, %v4897, -inf
      %4982 = vmax.xlane.f32.xlu0 %v4981
      %v4983 = vpop.xlane.xlu0 %4982
      %v4984 = vsel %vm1182, %v4898, -inf
      %4985 = vmax.xlane.f32.xlu0 %v4984
      %v4986 = vpop.xlane.xlu0 %4985
      %v4987 = vsel %vm1182, %v4899, -inf
      %4988 = vmax.xlane.f32.xlu0 %v4987
      %v4989 = vpop.xlane.xlu0 %4988
      %v4990 = vsel %vm1182, %v4900, -inf
      %4991 = vmax.xlane.f32.xlu0 %v4990
      %v4992 = vpop.xlane.xlu0 %4991
      %v4993 = vsel %vm1182, %v4901, -inf
      %4994 = vmax.xlane.f32.xlu0 %v4993
      %v4995 = vpop.xlane.xlu0 %4994
      %v4996 = vsel %vm1182, %v4902, -inf
      %4997 = vmax.xlane.f32.xlu0 %v4996
      %v4998 = vpop.xlane.xlu0 %4997
      %v4999 = vsub.f32 %v4871, %v4905
      %v5000 = vsub.f32 %v4872, %v4908
      %v5001 = vsub.f32 %v4873, %v4911
      %v5002 = vsub.f32 %v4874, %v4914
      %v5003 = vsub.f32 %v4875, %v4917
      %v5004 = vsub.f32 %v4876, %v4920
      %v5005 = vsub.f32 %v4877, %v4923
      %v5006 = vsub.f32 %v4878, %v4926
      %v5007 = vsub.f32 %v4879, %v4929
      %v5008 = vsub.f32 %v4880, %v4932
      %v5009 = vsub.f32 %v4881, %v4935
      %v5010 = vsub.f32 %v4882, %v4938
      %v5011 = vsub.f32 %v4883, %v4941
      %v5012 = vsub.f32 %v4884, %v4944
      %v5013 = vsub.f32 %v4885, %v4947
      %v5014 = vsub.f32 %v4886, %v4950
      %v5015 = vsub.f32 %v4887, %v4953
      %v5016 = vsub.f32 %v4888, %v4956
      %v5017 = vsub.f32 %v4889, %v4959
      %v5018 = vsub.f32 %v4890, %v4962
      %v5019 = vsub.f32 %v4891, %v4965
      %v5020 = vsub.f32 %v4892, %v4968
      %v5021 = vsub.f32 %v4893, %v4971
      %v5022 = vsub.f32 %v4894, %v4974
      %v5023 = vsub.f32 %v4895, %v4977
      %v5024 = vsub.f32 %v4896, %v4980
      %v5025 = vsub.f32 %v4897, %v4983
      %v5026 = vsub.f32 %v4898, %v4986
      %v5027 = vsub.f32 %v4899, %v4989
      %v5028 = vsub.f32 %v4900, %v4992
      %v5029 = vsub.f32 %v4901, %v4995
      %v5030 = vsub.f32 %v4902, %v4998
      %v5031 = vmul.f32 %v4999, 1.442695
      %v5032 = vpow.pop %v5031
      %v5033 = vmul.f32 %v5000, 1.442695
      %v5034 = vpow.pop %v5033
      %v5035 = vmul.f32 %v5001, 1.442695
      %v5036 = vpow.pop %v5035
      %v5037 = vmul.f32 %v5002, 1.442695
      %v5038 = vpow.pop %v5037
      %v5039 = vmul.f32 %v5003, 1.442695
      %v5040 = vpow.pop %v5039
      %v5041 = vmul.f32 %v5004, 1.442695
      %v5042 = vpow.pop %v5041
      %v5043 = vmul.f32 %v5005, 1.442695
      %v5044 = vpow.pop %v5043
      %v5045 = vmul.f32 %v5006, 1.442695
      %v5046 = vpow.pop %v5045
      %v5047 = vmul.f32 %v5007, 1.442695
      %v5048 = vpow.pop %v5047
      %v5049 = vmul.f32 %v5008, 1.442695
      %v5050 = vpow.pop %v5049
      %v5051 = vmul.f32 %v5009, 1.442695
      %v5052 = vpow.pop %v5051
      %v5053 = vmul.f32 %v5010, 1.442695
      %v5054 = vpow.pop %v5053
      %v5055 = vmul.f32 %v5011, 1.442695
      %v5056 = vpow.pop %v5055
      %v5057 = vmul.f32 %v5012, 1.442695
      %v5058 = vpow.pop %v5057
      %v5059 = vmul.f32 %v5013, 1.442695
      %v5060 = vpow.pop %v5059
      %v5061 = vmul.f32 %v5014, 1.442695
      %v5062 = vpow.pop %v5061
      %v5063 = vmul.f32 %v5015, 1.442695
      %v5064 = vpow.pop %v5063
      %v5065 = vmul.f32 %v5016, 1.442695
      %v5066 = vpow.pop %v5065
      %v5067 = vmul.f32 %v5017, 1.442695
      %v5068 = vpow.pop %v5067
      %v5069 = vmul.f32 %v5018, 1.442695
      %v5070 = vpow.pop %v5069
      %v5071 = vmul.f32 %v5019, 1.442695
      %v5072 = vpow.pop %v5071
      %v5073 = vmul.f32 %v5020, 1.442695
      %v5074 = vpow.pop %v5073
      %v5075 = vmul.f32 %v5021, 1.442695
      %v5076 = vpow.pop %v5075
      %v5077 = vmul.f32 %v5022, 1.442695
      %v5078 = vpow.pop %v5077
      %v5079 = vmul.f32 %v5023, 1.442695
      %v5080 = vpow.pop %v5079
      %v5081 = vmul.f32 %v5024, 1.442695
      %v5082 = vpow.pop %v5081
      %v5083 = vmul.f32 %v5025, 1.442695
      %v5084 = vpow.pop %v5083
      %v5085 = vmul.f32 %v5026, 1.442695
      %v5086 = vpow.pop %v5085
      %v5087 = vmul.f32 %v5027, 1.442695
      %v5088 = vpow.pop %v5087
      %v5089 = vmul.f32 %v5028, 1.442695
      %v5090 = vpow.pop %v5089
      %v5091 = vmul.f32 %v5029, 1.442695
      %v5092 = vpow.pop %v5091
      %v5093 = vmul.f32 %v5030, 1.442695
      %v5094 = vpow.pop %v5093
      %v5095 = vsel %vm1182, %v5032, 0.0
      %5096 = vadd.xlane.f32.xlu0 %v5095
      %v5097 = vpop.xlane.xlu0 %5096
      %v5098 = vsel %vm1182, %v5034, 0.0
      %5099 = vadd.xlane.f32.xlu0 %v5098
      %v5100 = vpop.xlane.xlu0 %5099
      %v5101 = vsel %vm1182, %v5036, 0.0
      %5102 = vadd.xlane.f32.xlu0 %v5101
      %v5103 = vpop.xlane.xlu0 %5102
      %v5104 = vsel %vm1182, %v5038, 0.0
      %5105 = vadd.xlane.f32.xlu0 %v5104
      %v5106 = vpop.xlane.xlu0 %5105
      %v5107 = vsel %vm1182, %v5040, 0.0
      %5108 = vadd.xlane.f32.xlu0 %v5107
      %v5109 = vpop.xlane.xlu0 %5108
      %v5110 = vsel %vm1182, %v5042, 0.0
      %5111 = vadd.xlane.f32.xlu0 %v5110
      %v5112 = vpop.xlane.xlu0 %5111
      %v5113 = vsel %vm1182, %v5044, 0.0
      %5114 = vadd.xlane.f32.xlu0 %v5113
      %v5115 = vpop.xlane.xlu0 %5114
      %v5116 = vsel %vm1182, %v5046, 0.0
      %5117 = vadd.xlane.f32.xlu0 %v5116
      %v5118 = vpop.xlane.xlu0 %5117
      %v5119 = vsel %vm1182, %v5048, 0.0
      %5120 = vadd.xlane.f32.xlu0 %v5119
      %v5121 = vpop.xlane.xlu0 %5120
      %v5122 = vsel %vm1182, %v5050, 0.0
      %5123 = vadd.xlane.f32.xlu0 %v5122
      %v5124 = vpop.xlane.xlu0 %5123
      %v5125 = vsel %vm1182, %v5052, 0.0
      %5126 = vadd.xlane.f32.xlu0 %v5125
      %v5127 = vpop.xlane.xlu0 %5126
      %v5128 = vsel %vm1182, %v5054, 0.0
      %5129 = vadd.xlane.f32.xlu0 %v5128
      %v5130 = vpop.xlane.xlu0 %5129
      %v5131 = vsel %vm1182, %v5056, 0.0
      %5132 = vadd.xlane.f32.xlu0 %v5131
      %v5133 = vpop.xlane.xlu0 %5132
      %v5134 = vsel %vm1182, %v5058, 0.0
      %5135 = vadd.xlane.f32.xlu0 %v5134
      %v5136 = vpop.xlane.xlu0 %5135
      %v5137 = vsel %vm1182, %v5060, 0.0
      %5138 = vadd.xlane.f32.xlu0 %v5137
      %v5139 = vpop.xlane.xlu0 %5138
      %v5140 = vsel %vm1182, %v5062, 0.0
      %5141 = vadd.xlane.f32.xlu0 %v5140
      %v5142 = vpop.xlane.xlu0 %5141
      %v5143 = vsel %vm1182, %v5064, 0.0
      %5144 = vadd.xlane.f32.xlu0 %v5143
      %v5145 = vpop.xlane.xlu0 %5144
      %v5146 = vsel %vm1182, %v5066, 0.0
      %5147 = vadd.xlane.f32.xlu0 %v5146
      %v5148 = vpop.xlane.xlu0 %5147
      %v5149 = vsel %vm1182, %v5068, 0.0
      %5150 = vadd.xlane.f32.xlu0 %v5149
      %v5151 = vpop.xlane.xlu0 %5150
      %v5152 = vsel %vm1182, %v5070, 0.0
      %5153 = vadd.xlane.f32.xlu0 %v5152
      %v5154 = vpop.xlane.xlu0 %5153
      %v5155 = vsel %vm1182, %v5072, 0.0
      %5156 = vadd.xlane.f32.xlu0 %v5155
      %v5157 = vpop.xlane.xlu0 %5156
      %v5158 = vsel %vm1182, %v5074, 0.0
      %5159 = vadd.xlane.f32.xlu0 %v5158
      %v5160 = vpop.xlane.xlu0 %5159
      %v5161 = vsel %vm1182, %v5076, 0.0
      %5162 = vadd.xlane.f32.xlu0 %v5161
      %v5163 = vpop.xlane.xlu0 %5162
      %v5164 = vsel %vm1182, %v5078, 0.0
      %5165 = vadd.xlane.f32.xlu0 %v5164
      %v5166 = vpop.xlane.xlu0 %5165
      %v5167 = vsel %vm1182, %v5080, 0.0
      %5168 = vadd.xlane.f32.xlu0 %v5167
      %v5169 = vpop.xlane.xlu0 %5168
      %v5170 = vsel %vm1182, %v5082, 0.0
      %5171 = vadd.xlane.f32.xlu0 %v5170
      %v5172 = vpop.xlane.xlu0 %5171
      %v5173 = vsel %vm1182, %v5084, 0.0
      %5174 = vadd.xlane.f32.xlu0 %v5173
      %v5175 = vpop.xlane.xlu0 %5174
      %v5176 = vsel %vm1182, %v5086, 0.0
      %5177 = vadd.xlane.f32.xlu0 %v5176
      %v5178 = vpop.xlane.xlu0 %5177
      %v5179 = vsel %vm1182, %v5088, 0.0
      %5180 = vadd.xlane.f32.xlu0 %v5179
      %v5181 = vpop.xlane.xlu0 %5180
      %v5182 = vsel %vm1182, %v5090, 0.0
      %5183 = vadd.xlane.f32.xlu0 %v5182
      %v5184 = vpop.xlane.xlu0 %5183
      %v5185 = vsel %vm1182, %v5092, 0.0
      %5186 = vadd.xlane.f32.xlu0 %v5185
      %v5187 = vpop.xlane.xlu0 %5186
      %v5188 = vsel %vm1182, %v5094, 0.0
      %5189 = vadd.xlane.f32.xlu0 %v5188
      %v5190 = vpop.xlane.xlu0 %5189
      %v5191 = vrcp.pop %v5097
      %v5192 = vrcp.pop %v5100
      %v5193 = vrcp.pop %v5103
      %v5194 = vrcp.pop %v5106
      %v5195 = vrcp.pop %v5109
      %v5196 = vrcp.pop %v5112
      %v5197 = vrcp.pop %v5115
      %v5198 = vrcp.pop %v5118
      %v5199 = vrcp.pop %v5121
      %v5200 = vrcp.pop %v5124
      %v5201 = vrcp.pop %v5127
      %v5202 = vrcp.pop %v5130
      %v5203 = vrcp.pop %v5133
      %v5204 = vrcp.pop %v5136
      %v5205 = vrcp.pop %v5139
      %v5206 = vrcp.pop %v5142
      %v5207 = vrcp.pop %v5145
      %v5208 = vrcp.pop %v5148
      %v5209 = vrcp.pop %v5151
      %v5210 = vrcp.pop %v5154
      %v5211 = vrcp.pop %v5157
      %v5212 = vrcp.pop %v5160
      %v5213 = vrcp.pop %v5163
      %v5214 = vrcp.pop %v5166
      %v5215 = vrcp.pop %v5169
      %v5216 = vrcp.pop %v5172
      %v5217 = vrcp.pop %v5175
      %v5218 = vrcp.pop %v5178
      %v5219 = vrcp.pop %v5181
      %v5220 = vrcp.pop %v5184
      %v5221 = vrcp.pop %v5187
      %v5222 = vrcp.pop %v5190
      %v5223 = vmul.f32 %v5032, %v5191
      %v5224 = vmul.f32 %v5034, %v5192
      %v5225 = vmul.f32 %v5036, %v5193
      %v5226 = vmul.f32 %v5038, %v5194
      %v5227 = vmul.f32 %v5040, %v5195
      %v5228 = vmul.f32 %v5042, %v5196
      %v5229 = vmul.f32 %v5044, %v5197
      %v5230 = vmul.f32 %v5046, %v5198
      %v5231 = vmul.f32 %v5048, %v5199
      %v5232 = vmul.f32 %v5050, %v5200
      %v5233 = vmul.f32 %v5052, %v5201
      %v5234 = vmul.f32 %v5054, %v5202
      %v5235 = vmul.f32 %v5056, %v5203
      %v5236 = vmul.f32 %v5058, %v5204
      %v5237 = vmul.f32 %v5060, %v5205
      %v5238 = vmul.f32 %v5062, %v5206
      %v5239 = vmul.f32 %v5064, %v5207
      %v5240 = vmul.f32 %v5066, %v5208
      %v5241 = vmul.f32 %v5068, %v5209
      %v5242 = vmul.f32 %v5070, %v5210
      %v5243 = vmul.f32 %v5072, %v5211
      %v5244 = vmul.f32 %v5074, %v5212
      %v5245 = vmul.f32 %v5076, %v5213
      %v5246 = vmul.f32 %v5078, %v5214
      %v5247 = vmul.f32 %v5080, %v5215
      %v5248 = vmul.f32 %v5082, %v5216
      %v5249 = vmul.f32 %v5084, %v5217
      %v5250 = vmul.f32 %v5086, %v5218
      %v5251 = vmul.f32 %v5088, %v5219
      %v5252 = vmul.f32 %v5090, %v5220
      %v5253 = vmul.f32 %v5092, %v5221
      %v5254 = vmul.f32 %v5094, %v5222
      %v5255 = vpack.c.bf16 %v5224, %v5223
      %v5256 = vpack.c.bf16 %v5226, %v5225
      %v5257 = vpack.c.bf16 %v5228, %v5227
      %v5258 = vpack.c.bf16 %v5230, %v5229
      %v5259 = vpack.c.bf16 %v5232, %v5231
      %v5260 = vpack.c.bf16 %v5234, %v5233
      %v5261 = vpack.c.bf16 %v5236, %v5235
      %v5262 = vpack.c.bf16 %v5238, %v5237
      %v5263 = vpack.c.bf16 %v5240, %v5239
      %v5264 = vpack.c.bf16 %v5242, %v5241
      %v5265 = vpack.c.bf16 %v5244, %v5243
      %v5266 = vpack.c.bf16 %v5246, %v5245
      %v5267 = vpack.c.bf16 %v5248, %v5247
      %v5268 = vpack.c.bf16 %v5250, %v5249
      %v5269 = vpack.c.bf16 %v5252, %v5251
      %v5270 = vpack.c.bf16 %v5254, %v5253
      %5271 = vrot.lane.b32.xlu0 %v601, 40
      %v5272 = vpop.permute.xlu0 %5271
      %5273 = vrot.lane.b32.xlu0 %v602, 40
      %v5274 = vpop.permute.xlu0 %5273
      %5275 = vrot.lane.b32.xlu0 %v603, 40
      %v5276 = vpop.permute.xlu0 %5275
      %5277 = vrot.lane.b32.xlu0 %v604, 40
      %v5278 = vpop.permute.xlu0 %5277
      %v5284 = vsel %vm1182, %v5255, 0
      %v5287 = vsel %vm1182, %v5256, 0
      %v5290 = vsel %vm1182, %v5257, 0
      %v5293 = vsel %vm1182, %v5258, 0
      %5295 = vmatprep.subr.bf16.mxu0 0
      %5296 = vmatpush1.bf16.msra.mxu0 %v5272
      %5297 = vmatprep.subr.bf16.mxu0 0
      %5298 = vmatpush1.bf16.msra.mxu0 %v5274
      %5299 = vmatprep.subr.bf16.mxu0 0
      %5300 = vmatpush1.bf16.msra.mxu0 %v5276
      %5301 = vmatprep.subr.bf16.mxu0 0
      %5302 = vmatpush1.bf16.msra.mxu0 %v5278
      %5303 = vmatprep.subr.bf16.mxu0 0
      %5304 = vmatpush1.bf16.msra.mxu0 0
      %5305 = vmatprep.subr.bf16.mxu0 0
      %5306 = vmatpush1.bf16.msra.mxu0 0
      %5307 = vmatprep.subr.bf16.mxu0 0
      %5308 = vmatpush1.bf16.msra.mxu0 0
      %5309 = vmatprep.subr.bf16.mxu0 0
      %5310 = vmatpush1.bf16.msra.mxu0 0
      %5311 = vmatprep.subr.bf16.mxu0 0
      %5312 = vmatpush1.bf16.msra.mxu0 0
      %5313 = vmatprep.subr.bf16.mxu0 0
      %5314 = vmatpush1.bf16.msra.mxu0 0
      %5315 = vmatprep.subr.bf16.mxu0 0
      %5316 = vmatpush1.bf16.msra.mxu0 0
      %5317 = vmatprep.subr.bf16.mxu0 0
      %5318 = vmatpush1.bf16.msra.mxu0 0
      %5319 = vmatprep.subr.bf16.mxu0 0
      %5320 = vmatpush1.bf16.msra.mxu0 0
      %5321 = vmatprep.subr.bf16.mxu0 0
      %5322 = vmatpush1.bf16.msra.mxu0 0
      %5323 = vmatprep.subr.bf16.mxu0 0
      %5324 = vmatpush1.bf16.msra.mxu0 0
      %5325 = vmatprep.subr.bf16.mxu0 0
      %5326 = vmatpush1.bf16.msra.mxu0 0
      %5327 = vmatprep.mubr.bf16.mxu0 0
      %5328 = vmatmul.mubr.bf16.gmra.mrb[0].mxu0 %v5284
      %v5329 = vpop.f32.mrb[0].mxu0
      %v5330 = vadd.f32 0.0, %v5329
      %v5331 = vpop.f32.mrb[0].mxu0
      %v5332 = vpop.f32.mrb[0].mxu0
      %v5333 = vadd.f32 0.0, %v5332
      %v5334 = vpop.f32.mrb[0].mxu0
      %5335 = vmatprep.mubr.bf16.mxu0 0
      %5336 = vmatmul.mubr.bf16.gmra.mrb[0].mxu0 %v5287
      %v5337 = vpop.f32.mrb[0].mxu0
      %v5338 = vadd.f32 0.0, %v5337
      %v5339 = vpop.f32.mrb[0].mxu0
      %v5340 = vpop.f32.mrb[0].mxu0
      %v5341 = vadd.f32 0.0, %v5340
      %v5342 = vpop.f32.mrb[0].mxu0
      %5343 = vmatprep.mubr.bf16.mxu0 0
      %5344 = vmatmul.mubr.bf16.gmra.mrb[0].mxu0 %v5290
      %v5345 = vpop.f32.mrb[0].mxu0
      %v5346 = vadd.f32 0.0, %v5345
      %v5347 = vpop.f32.mrb[0].mxu0
      %v5348 = vpop.f32.mrb[0].mxu0
      %v5349 = vadd.f32 0.0, %v5348
      %v5350 = vpop.f32.mrb[0].mxu0
      %5351 = vmatprep.mubr.bf16.mxu0 0
      %5352 = vmatmul.mubr.bf16.gmra.mrb[0].mxu0 %v5293
      %v5353 = vpop.f32.mrb[0].mxu0
      %v5354 = vadd.f32 0.0, %v5353
      %v5355 = vpop.f32.mrb[0].mxu0
      %v5356 = vpop.f32.mrb[0].mxu0
      %v5357 = vadd.f32 0.0, %v5356
      %v5358 = vpop.f32.mrb[0].mxu0
      %5359 = vdwg.mxu0
      %5360 = vrot.lane.b32.xlu0 %v605, 40
      %v5361 = vpop.permute.xlu0 %5360
      %5362 = vrot.lane.b32.xlu0 %v606, 40
      %v5363 = vpop.permute.xlu0 %5362
      %5364 = vrot.lane.b32.xlu0 %v607, 40
      %v5365 = vpop.permute.xlu0 %5364
      %5366 = vrot.lane.b32.xlu0 %v608, 40
      %v5367 = vpop.permute.xlu0 %5366
      %v5373 = vsel %vm1182, %v5259, 0
      %v5376 = vsel %vm1182, %v5260, 0
      %v5379 = vsel %vm1182, %v5261, 0
      %v5382 = vsel %vm1182, %v5262, 0
      %5384 = vmatprep.subr.bf16.mxu0 0
      %5385 = vmatpush1.bf16.msra.mxu0 %v5361
      %5386 = vmatprep.subr.bf16.mxu0 0
      %5387 = vmatpush1.bf16.msra.mxu0 %v5363
      %5388 = vmatprep.subr.bf16.mxu0 0
      %5389 = vmatpush1.bf16.msra.mxu0 %v5365
      %5390 = vmatprep.subr.bf16.mxu0 0
      %5391 = vmatpush1.bf16.msra.mxu0 %v5367
      %5392 = vmatprep.subr.bf16.mxu0 0
      %5393 = vmatpush1.bf16.msra.mxu0 0
      %5394 = vmatprep.subr.bf16.mxu0 0
      %5395 = vmatpush1.bf16.msra.mxu0 0
      %5396 = vmatprep.subr.bf16.mxu0 0
      %5397 = vmatpush1.bf16.msra.mxu0 0
      %5398 = vmatprep.subr.bf16.mxu0 0
      %5399 = vmatpush1.bf16.msra.mxu0 0
      %5400 = vmatprep.subr.bf16.mxu0 0
      %5401 = vmatpush1.bf16.msra.mxu0 0
      %5402 = vmatprep.subr.bf16.mxu0 0
      %5403 = vmatpush1.bf16.msra.mxu0 0
      %5404 = vmatprep.subr.bf16.mxu0 0
      %5405 = vmatpush1.bf16.msra.mxu0 0
      %5406 = vmatprep.subr.bf16.mxu0 0
      %5407 = vmatpush1.bf16.msra.mxu0 0
      %5408 = vmatprep.subr.bf16.mxu0 0
      %5409 = vmatpush1.bf16.msra.mxu0 0
      %5410 = vmatprep.subr.bf16.mxu0 0
      %5411 = vmatpush1.bf16.msra.mxu0 0
      %5412 = vmatprep.subr.bf16.mxu0 0
      %5413 = vmatpush1.bf16.msra.mxu0 0
      %5414 = vmatprep.subr.bf16.mxu0 0
      %5415 = vmatpush1.bf16.msra.mxu0 0
      %5416 = vmatprep.mubr.bf16.mxu0 0
      %5417 = vmatmul.mubr.bf16.gmra.mrb[0].mxu0 %v5373
      %v5418 = vpop.f32.mrb[0].mxu0
      %v5419 = vadd.f32 0.0, %v5418
      %v5420 = vpop.f32.mrb[0].mxu0
      %v5421 = vpop.f32.mrb[0].mxu0
      %v5422 = vadd.f32 0.0, %v5421
      %v5423 = vpop.f32.mrb[0].mxu0
      %5424 = vmatprep.mubr.bf16.mxu0 0
      %5425 = vmatmul.mubr.bf16.gmra.mrb[0].mxu0 %v5376
      %v5426 = vpop.f32.mrb[0].mxu0
      %v5427 = vadd.f32 0.0, %v5426
      %v5428 = vpop.f32.mrb[0].mxu0
      %v5429 = vpop.f32.mrb[0].mxu0
      %v5430 = vadd.f32 0.0, %v5429
      %v5431 = vpop.f32.mrb[0].mxu0
      %5432 = vmatprep.mubr.bf16.mxu0 0
      %5433 = vmatmul.mubr.bf16.gmra.mrb[0].mxu0 %v5379
      %v5434 = vpop.f32.mrb[0].mxu0
      %v5435 = vadd.f32 0.0, %v5434
      %v5436 = vpop.f32.mrb[0].mxu0
      %v5437 = vpop.f32.mrb[0].mxu0
      %v5438 = vadd.f32 0.0, %v5437
      %v5439 = vpop.f32.mrb[0].mxu0
      %5440 = vmatprep.mubr.bf16.mxu0 0
      %5441 = vmatmul.mubr.bf16.gmra.mrb[0].mxu0 %v5382
      %v5442 = vpop.f32.mrb[0].mxu0
      %v5443 = vadd.f32 0.0, %v5442
      %v5444 = vpop.f32.mrb[0].mxu0
      %v5445 = vpop.f32.mrb[0].mxu0
      %v5446 = vadd.f32 0.0, %v5445
      %v5447 = vpop.f32.mrb[0].mxu0
      %5448 = vdwg.mxu0
      %5449 = vrot.lane.b32.xlu0 %v609, 40
      %v5450 = vpop.permute.xlu0 %5449
      %5451 = vrot.lane.b32.xlu0 %v610, 40
      %v5452 = vpop.permute.xlu0 %5451
      %5453 = vrot.lane.b32.xlu0 %v611, 40
      %v5454 = vpop.permute.xlu0 %5453
      %5455 = vrot.lane.b32.xlu0 %v612, 40
      %v5456 = vpop.permute.xlu0 %5455
      %v5462 = vsel %vm1182, %v5263, 0
      %v5465 = vsel %vm1182, %v5264, 0
      %v5468 = vsel %vm1182, %v5265, 0
      %v5471 = vsel %vm1182, %v5266, 0
      %5473 = vmatprep.subr.bf16.mxu0 0
      %5474 = vmatpush1.bf16.msra.mxu0 %v5450
      %5475 = vmatprep.subr.bf16.mxu0 0
      %5476 = vmatpush1.bf16.msra.mxu0 %v5452
      %5477 = vmatprep.subr.bf16.mxu0 0
      %5478 = vmatpush1.bf16.msra.mxu0 %v5454
      %5479 = vmatprep.subr.bf16.mxu0 0
      %5480 = vmatpush1.bf16.msra.mxu0 %v5456
      %5481 = vmatprep.subr.bf16.mxu0 0
      %5482 = vmatpush1.bf16.msra.mxu0 0
      %5483 = vmatprep.subr.bf16.mxu0 0
      %5484 = vmatpush1.bf16.msra.mxu0 0
      %5485 = vmatprep.subr.bf16.mxu0 0
      %5486 = vmatpush1.bf16.msra.mxu0 0
      %5487 = vmatprep.subr.bf16.mxu0 0
      %5488 = vmatpush1.bf16.msra.mxu0 0
      %5489 = vmatprep.subr.bf16.mxu0 0
      %5490 = vmatpush1.bf16.msra.mxu0 0
      %5491 = vmatprep.subr.bf16.mxu0 0
      %5492 = vmatpush1.bf16.msra.mxu0 0
      %5493 = vmatprep.subr.bf16.mxu0 0
      %5494 = vmatpush1.bf16.msra.mxu0 0
      %5495 = vmatprep.subr.bf16.mxu0 0
      %5496 = vmatpush1.bf16.msra.mxu0 0
      %5497 = vmatprep.subr.bf16.mxu0 0
      %5498 = vmatpush1.bf16.msra.mxu0 0
      %5499 = vmatprep.subr.bf16.mxu0 0
      %5500 = vmatpush1.bf16.msra.mxu0 0
      %5501 = vmatprep.subr.bf16.mxu0 0
      %5502 = vmatpush1.bf16.msra.mxu0 0
      %5503 = vmatprep.subr.bf16.mxu0 0
      %5504 = vmatpush1.bf16.msra.mxu0 0
      %5505 = vmatprep.mubr.bf16.mxu0 0
      %5506 = vmatmul.mubr.bf16.gmra.mrb[0].mxu0 %v5462
      %v5507 = vpop.f32.mrb[0].mxu0
      %v5508 = vadd.f32 0.0, %v5507
      %v5509 = vpop.f32.mrb[0].mxu0
      %v5510 = vpop.f32.mrb[0].mxu0
      %v5511 = vadd.f32 0.0, %v5510
      %v5512 = vpop.f32.mrb[0].mxu0
      %5513 = vmatprep.mubr.bf16.mxu0 0
      %5514 = vmatmul.mubr.bf16.gmra.mrb[0].mxu0 %v5465
      %v5515 = vpop.f32.mrb[0].mxu0
      %v5516 = vadd.f32 0.0, %v5515
      %v5517 = vpop.f32.mrb[0].mxu0
      %v5518 = vpop.f32.mrb[0].mxu0
      %v5519 = vadd.f32 0.0, %v5518
      %v5520 = vpop.f32.mrb[0].mxu0
      %5521 = vmatprep.mubr.bf16.mxu0 0
      %5522 = vmatmul.mubr.bf16.gmra.mrb[0].mxu0 %v5468
      %v5523 = vpop.f32.mrb[0].mxu0
      %v5524 = vadd.f32 0.0, %v5523
      %v5525 = vpop.f32.mrb[0].mxu0
      %v5526 = vpop.f32.mrb[0].mxu0
      %v5527 = vadd.f32 0.0, %v5526
      %v5528 = vpop.f32.mrb[0].mxu0
      %5529 = vmatprep.mubr.bf16.mxu0 0
      %5530 = vmatmul.mubr.bf16.gmra.mrb[0].mxu0 %v5471
      %v5531 = vpop.f32.mrb[0].mxu0
      %v5532 = vadd.f32 0.0, %v5531
      %v5533 = vpop.f32.mrb[0].mxu0
      %v5534 = vpop.f32.mrb[0].mxu0
      %v5535 = vadd.f32 0.0, %v5534
      %v5536 = vpop.f32.mrb[0].mxu0
      %5537 = vdwg.mxu0
      %5538 = vrot.lane.b32.xlu0 %v613, 40
      %v5539 = vpop.permute.xlu0 %5538
      %5540 = vrot.lane.b32.xlu0 %v614, 40
      %v5541 = vpop.permute.xlu0 %5540
      %5542 = vrot.lane.b32.xlu0 %v615, 40
      %v5543 = vpop.permute.xlu0 %5542
      %5544 = vrot.lane.b32.xlu0 %v616, 40
      %v5545 = vpop.permute.xlu0 %5544
      %v5551 = vsel %vm1182, %v5267, 0
      %v5554 = vsel %vm1182, %v5268, 0
      %v5557 = vsel %vm1182, %v5269, 0
      %v5560 = vsel %vm1182, %v5270, 0
      %5562 = vmatprep.subr.bf16.mxu0 0
      %5563 = vmatpush1.bf16.msra.mxu0 %v5539
      %5564 = vmatprep.subr.bf16.mxu0 0
      %5565 = vmatpush1.bf16.msra.mxu0 %v5541
      %5566 = vmatprep.subr.bf16.mxu0 0
      %5567 = vmatpush1.bf16.msra.mxu0 %v5543
      %5568 = vmatprep.subr.bf16.mxu0 0
      %5569 = vmatpush1.bf16.msra.mxu0 %v5545
      %5570 = vmatprep.subr.bf16.mxu0 0
      %5571 = vmatpush1.bf16.msra.mxu0 0
      %5572 = vmatprep.subr.bf16.mxu0 0
      %5573 = vmatpush1.bf16.msra.mxu0 0
      %5574 = vmatprep.subr.bf16.mxu0 0
      %5575 = vmatpush1.bf16.msra.mxu0 0
      %5576 = vmatprep.subr.bf16.mxu0 0
      %5577 = vmatpush1.bf16.msra.mxu0 0
      %5578 = vmatprep.subr.bf16.mxu0 0
      %5579 = vmatpush1.bf16.msra.mxu0 0
      %5580 = vmatprep.subr.bf16.mxu0 0
      %5581 = vmatpush1.bf16.msra.mxu0 0
      %5582 = vmatprep.subr.bf16.mxu0 0
      %5583 = vmatpush1.bf16.msra.mxu0 0
      %5584 = vmatprep.subr.bf16.mxu0 0
      %5585 = vmatpush1.bf16.msra.mxu0 0
      %5586 = vmatprep.subr.bf16.mxu0 0
      %5587 = vmatpush1.bf16.msra.mxu0 0
      %5588 = vmatprep.subr.bf16.mxu0 0
      %5589 = vmatpush1.bf16.msra.mxu0 0
      %5590 = vmatprep.subr.bf16.mxu0 0
      %5591 = vmatpush1.bf16.msra.mxu0 0
      %5592 = vmatprep.subr.bf16.mxu0 0
      %5593 = vmatpush1.bf16.msra.mxu0 0
      %5594 = vmatprep.mubr.bf16.mxu0 0
      %5595 = vmatmul.mubr.bf16.gmra.mrb[0].mxu0 %v5551
      %v5596 = vpop.f32.mrb[0].mxu0
      %v5597 = vadd.f32 0.0, %v5596
      %v5598 = vpop.f32.mrb[0].mxu0
      %v5599 = vpop.f32.mrb[0].mxu0
      %v5600 = vadd.f32 0.0, %v5599
      %v5601 = vpop.f32.mrb[0].mxu0
      %5602 = vmatprep.mubr.bf16.mxu0 0
      %5603 = vmatmul.mubr.bf16.gmra.mrb[0].mxu0 %v5554
      %v5604 = vpop.f32.mrb[0].mxu0
      %v5605 = vadd.f32 0.0, %v5604
      %v5606 = vpop.f32.mrb[0].mxu0
      %v5607 = vpop.f32.mrb[0].mxu0
      %v5608 = vadd.f32 0.0, %v5607
      %v5609 = vpop.f32.mrb[0].mxu0
      %5610 = vmatprep.mubr.bf16.mxu0 0
      %5611 = vmatmul.mubr.bf16.gmra.mrb[0].mxu0 %v5557
      %v5612 = vpop.f32.mrb[0].mxu0
      %v5613 = vadd.f32 0.0, %v5612
      %v5614 = vpop.f32.mrb[0].mxu0
      %v5615 = vpop.f32.mrb[0].mxu0
      %v5616 = vadd.f32 0.0, %v5615
      %v5617 = vpop.f32.mrb[0].mxu0
      %5618 = vmatprep.mubr.bf16.mxu0 0
      %5619 = vmatmul.mubr.bf16.gmra.mrb[0].mxu0 %v5560
      %v5620 = vpop.f32.mrb[0].mxu0
      %v5621 = vadd.f32 0.0, %v5620
      %v5622 = vpop.f32.mrb[0].mxu0
      %v5623 = vpop.f32.mrb[0].mxu0
      %v5624 = vadd.f32 0.0, %v5623
      %v5625 = vpop.f32.mrb[0].mxu0
      %5626 = vdwg.mxu0
      %5659 = vrot.lane.b32.xlu0 %v2850, 8
      %v5660 = vpop.permute.xlu0 %5659
      %5661 = vrot.lane.b32.xlu0 %v2853, 8
      %v5662 = vpop.permute.xlu0 %5661
      %5663 = vrot.lane.b32.xlu0 %v2858, 8
      %v5664 = vpop.permute.xlu0 %5663
      %5665 = vrot.lane.b32.xlu0 %v2861, 8
      %v5666 = vpop.permute.xlu0 %5665
      %5667 = vrot.lane.b32.xlu0 %v2866, 8
      %v5668 = vpop.permute.xlu0 %5667
      %5669 = vrot.lane.b32.xlu0 %v2869, 8
      %v5670 = vpop.permute.xlu0 %5669
      %5671 = vrot.lane.b32.xlu0 %v2874, 8
      %v5672 = vpop.permute.xlu0 %5671
      %5673 = vrot.lane.b32.xlu0 %v2877, 8
      %v5674 = vpop.permute.xlu0 %5673
      %5675 = vrot.lane.b32.xlu0 %v2939, 8
      %v5676 = vpop.permute.xlu0 %5675
      %5677 = vrot.lane.b32.xlu0 %v2942, 8
      %v5678 = vpop.permute.xlu0 %5677
      %5679 = vrot.lane.b32.xlu0 %v2947, 8
      %v5680 = vpop.permute.xlu0 %5679
      %5681 = vrot.lane.b32.xlu0 %v2950, 8
      %v5682 = vpop.permute.xlu0 %5681
      %5683 = vrot.lane.b32.xlu0 %v2955, 8
      %v5684 = vpop.permute.xlu0 %5683
      %5685 = vrot.lane.b32.xlu0 %v2958, 8
      %v5686 = vpop.permute.xlu0 %5685
      %5687 = vrot.lane.b32.xlu0 %v2963, 8
      %v5688 = vpop.permute.xlu0 %5687
      %5689 = vrot.lane.b32.xlu0 %v2966, 8
      %v5690 = vpop.permute.xlu0 %5689
      %5691 = vrot.lane.b32.xlu0 %v3028, 8
      %v5692 = vpop.permute.xlu0 %5691
      %5693 = vrot.lane.b32.xlu0 %v3031, 8
      %v5694 = vpop.permute.xlu0 %5693
      %5695 = vrot.lane.b32.xlu0 %v3036, 8
      %v5696 = vpop.permute.xlu0 %5695
      %5697 = vrot.lane.b32.xlu0 %v3039, 8
      %v5698 = vpop.permute.xlu0 %5697
      %5699 = vrot.lane.b32.xlu0 %v3044, 8
      %v5700 = vpop.permute.xlu0 %5699
      %5701 = vrot.lane.b32.xlu0 %v3047, 8
      %v5702 = vpop.permute.xlu0 %5701
      %5703 = vrot.lane.b32.xlu0 %v3052, 8
      %v5704 = vpop.permute.xlu0 %5703
      %5705 = vrot.lane.b32.xlu0 %v3055, 8
      %v5706 = vpop.permute.xlu0 %5705
      %5707 = vrot.lane.b32.xlu0 %v3117, 8
      %v5708 = vpop.permute.xlu0 %5707
      %5709 = vrot.lane.b32.xlu0 %v3120, 8
      %v5710 = vpop.permute.xlu0 %5709
      %5711 = vrot.lane.b32.xlu0 %v3125, 8
      %v5712 = vpop.permute.xlu0 %5711
      %5713 = vrot.lane.b32.xlu0 %v3128, 8
      %v5714 = vpop.permute.xlu0 %5713
      %5715 = vrot.lane.b32.xlu0 %v3133, 8
      %v5716 = vpop.permute.xlu0 %5715
      %5717 = vrot.lane.b32.xlu0 %v3136, 8
      %v5718 = vpop.permute.xlu0 %5717
      %5719 = vrot.lane.b32.xlu0 %v3141, 8
      %v5720 = vpop.permute.xlu0 %5719
      %5721 = vrot.lane.b32.xlu0 %v3144, 8
      %v5722 = vpop.permute.xlu0 %5721
      %5787 = vrot.lane.b32.xlu0 %v4090, 16
      %v5788 = vpop.permute.xlu0 %5787
      %5789 = vrot.lane.b32.xlu0 %v4093, 16
      %v5790 = vpop.permute.xlu0 %5789
      %5791 = vrot.lane.b32.xlu0 %v4098, 16
      %v5792 = vpop.permute.xlu0 %5791
      %5793 = vrot.lane.b32.xlu0 %v4101, 16
      %v5794 = vpop.permute.xlu0 %5793
      %5795 = vrot.lane.b32.xlu0 %v4106, 16
      %v5796 = vpop.permute.xlu0 %5795
      %5797 = vrot.lane.b32.xlu0 %v4109, 16
      %v5798 = vpop.permute.xlu0 %5797
      %5799 = vrot.lane.b32.xlu0 %v4114, 16
      %v5800 = vpop.permute.xlu0 %5799
      %5801 = vrot.lane.b32.xlu0 %v4117, 16
      %v5802 = vpop.permute.xlu0 %5801
      %5803 = vrot.lane.b32.xlu0 %v4179, 16
      %v5804 = vpop.permute.xlu0 %5803
      %5805 = vrot.lane.b32.xlu0 %v4182, 16
      %v5806 = vpop.permute.xlu0 %5805
      %5807 = vrot.lane.b32.xlu0 %v4187, 16
      %v5808 = vpop.permute.xlu0 %5807
      %5809 = vrot.lane.b32.xlu0 %v4190, 16
      %v5810 = vpop.permute.xlu0 %5809
      %5811 = vrot.lane.b32.xlu0 %v4195, 16
      %v5812 = vpop.permute.xlu0 %5811
      %5813 = vrot.lane.b32.xlu0 %v4198, 16
      %v5814 = vpop.permute.xlu0 %5813
      %5815 = vrot.lane.b32.xlu0 %v4203, 16
      %v5816 = vpop.permute.xlu0 %5815
      %5817 = vrot.lane.b32.xlu0 %v4206, 16
      %v5818 = vpop.permute.xlu0 %5817
      %5819 = vrot.lane.b32.xlu0 %v4268, 16
      %v5820 = vpop.permute.xlu0 %5819
      %5821 = vrot.lane.b32.xlu0 %v4271, 16
      %v5822 = vpop.permute.xlu0 %5821
      %5823 = vrot.lane.b32.xlu0 %v4276, 16
      %v5824 = vpop.permute.xlu0 %5823
      %5825 = vrot.lane.b32.xlu0 %v4279, 16
      %v5826 = vpop.permute.xlu0 %5825
      %5827 = vrot.lane.b32.xlu0 %v4284, 16
      %v5828 = vpop.permute.xlu0 %5827
      %5829 = vrot.lane.b32.xlu0 %v4287, 16
      %v5830 = vpop.permute.xlu0 %5829
      %5831 = vrot.lane.b32.xlu0 %v4292, 16
      %v5832 = vpop.permute.xlu0 %5831
      %5833 = vrot.lane.b32.xlu0 %v4295, 16
      %v5834 = vpop.permute.xlu0 %5833
      %5835 = vrot.lane.b32.xlu0 %v4357, 16
      %v5836 = vpop.permute.xlu0 %5835
      %5837 = vrot.lane.b32.xlu0 %v4360, 16
      %v5838 = vpop.permute.xlu0 %5837
      %5839 = vrot.lane.b32.xlu0 %v4365, 16
      %v5840 = vpop.permute.xlu0 %5839
      %5841 = vrot.lane.b32.xlu0 %v4368, 16
      %v5842 = vpop.permute.xlu0 %5841
      %5843 = vrot.lane.b32.xlu0 %v4373, 16
      %v5844 = vpop.permute.xlu0 %5843
      %5845 = vrot.lane.b32.xlu0 %v4376, 16
      %v5846 = vpop.permute.xlu0 %5845
      %5847 = vrot.lane.b32.xlu0 %v4381, 16
      %v5848 = vpop.permute.xlu0 %5847
      %5849 = vrot.lane.b32.xlu0 %v4384, 16
      %v5850 = vpop.permute.xlu0 %5849
      %5915 = vrot.lane.b32.xlu0 %v5330, 24
      %v5916 = vpop.permute.xlu0 %5915
      %5917 = vrot.lane.b32.xlu0 %v5333, 24
      %v5918 = vpop.permute.xlu0 %5917
      %5919 = vrot.lane.b32.xlu0 %v5338, 24
      %v5920 = vpop.permute.xlu0 %5919
      %5921 = vrot.lane.b32.xlu0 %v5341, 24
      %v5922 = vpop.permute.xlu0 %5921
      %5923 = vrot.lane.b32.xlu0 %v5346, 24
      %v5924 = vpop.permute.xlu0 %5923
      %5925 = vrot.lane.b32.xlu0 %v5349, 24
      %v5926 = vpop.permute.xlu0 %5925
      %5927 = vrot.lane.b32.xlu0 %v5354, 24
      %v5928 = vpop.permute.xlu0 %5927
      %5929 = vrot.lane.b32.xlu0 %v5357, 24
      %v5930 = vpop.permute.xlu0 %5929
      %5931 = vrot.lane.b32.xlu0 %v5419, 24
      %v5932 = vpop.permute.xlu0 %5931
      %5933 = vrot.lane.b32.xlu0 %v5422, 24
      %v5934 = vpop.permute.xlu0 %5933
      %5935 = vrot.lane.b32.xlu0 %v5427, 24
      %v5936 = vpop.permute.xlu0 %5935
      %5937 = vrot.lane.b32.xlu0 %v5430, 24
      %v5938 = vpop.permute.xlu0 %5937
      %5939 = vrot.lane.b32.xlu0 %v5435, 24
      %v5940 = vpop.permute.xlu0 %5939
      %5941 = vrot.lane.b32.xlu0 %v5438, 24
      %v5942 = vpop.permute.xlu0 %5941
      %5943 = vrot.lane.b32.xlu0 %v5443, 24
      %v5944 = vpop.permute.xlu0 %5943
      %5945 = vrot.lane.b32.xlu0 %v5446, 24
      %v5946 = vpop.permute.xlu0 %5945
      %5947 = vrot.lane.b32.xlu0 %v5508, 24
      %v5948 = vpop.permute.xlu0 %5947
      %5949 = vrot.lane.b32.xlu0 %v5511, 24
      %v5950 = vpop.permute.xlu0 %5949
      %5951 = vrot.lane.b32.xlu0 %v5516, 24
      %v5952 = vpop.permute.xlu0 %5951
      %5953 = vrot.lane.b32.xlu0 %v5519, 24
      %v5954 = vpop.permute.xlu0 %5953
      %5955 = vrot.lane.b32.xlu0 %v5524, 24
      %v5956 = vpop.permute.xlu0 %5955
      %5957 = vrot.lane.b32.xlu0 %v5527, 24
      %v5958 = vpop.permute.xlu0 %5957
      %5959 = vrot.lane.b32.xlu0 %v5532, 24
      %v5960 = vpop.permute.xlu0 %5959
      %5961 = vrot.lane.b32.xlu0 %v5535, 24
      %v5962 = vpop.permute.xlu0 %5961
      %5963 = vrot.lane.b32.xlu0 %v5597, 24
      %v5964 = vpop.permute.xlu0 %5963
      %5965 = vrot.lane.b32.xlu0 %v5600, 24
      %v5966 = vpop.permute.xlu0 %5965
      %5967 = vrot.lane.b32.xlu0 %v5605, 24
      %v5968 = vpop.permute.xlu0 %5967
      %5969 = vrot.lane.b32.xlu0 %v5608, 24
      %v5970 = vpop.permute.xlu0 %5969
      %5971 = vrot.lane.b32.xlu0 %v5613, 24
      %v5972 = vpop.permute.xlu0 %5971
      %5973 = vrot.lane.b32.xlu0 %v5616, 24
      %v5974 = vpop.permute.xlu0 %5973
      %5975 = vrot.lane.b32.xlu0 %v5621, 24
      %v5976 = vpop.permute.xlu0 %5975
      %5977 = vrot.lane.b32.xlu0 %v5624, 24
      %v5978 = vpop.permute.xlu0 %5977
      %v6011 = vsel %vm693, %v1610, %v5660
      %v6012 = vsel %vm693, %v1613, %v5662
      %v6013 = vsel %vm693, %v1618, %v5664
      %v6014 = vsel %vm693, %v1621, %v5666
      %v6015 = vsel %vm693, %v1626, %v5668
      %v6016 = vsel %vm693, %v1629, %v5670
      %v6017 = vsel %vm693, %v1634, %v5672
      %v6018 = vsel %vm693, %v1637, %v5674
      %v6019 = vsel %vm693, %v1699, %v5676
      %v6020 = vsel %vm693, %v1702, %v5678
      %v6021 = vsel %vm693, %v1707, %v5680
      %v6022 = vsel %vm693, %v1710, %v5682
      %v6023 = vsel %vm693, %v1715, %v5684
      %v6024 = vsel %vm693, %v1718, %v5686
      %v6025 = vsel %vm693, %v1723, %v5688
      %v6026 = vsel %vm693, %v1726, %v5690
      %v6027 = vsel %vm693, %v1788, %v5692
      %v6028 = vsel %vm693, %v1791, %v5694
      %v6029 = vsel %vm693, %v1796, %v5696
      %v6030 = vsel %vm693, %v1799, %v5698
      %v6031 = vsel %vm693, %v1804, %v5700
      %v6032 = vsel %vm693, %v1807, %v5702
      %v6033 = vsel %vm693, %v1812, %v5704
      %v6034 = vsel %vm693, %v1815, %v5706
      %v6035 = vsel %vm693, %v1877, %v5708
      %v6036 = vsel %vm693, %v1880, %v5710
      %v6037 = vsel %vm693, %v1885, %v5712
      %v6038 = vsel %vm693, %v1888, %v5714
      %v6039 = vsel %vm693, %v1893, %v5716
      %v6040 = vsel %vm693, %v1896, %v5718
      %v6041 = vsel %vm693, %v1901, %v5720
      %v6042 = vsel %vm693, %v1904, %v5722
      %vm6043 = vcmask 130048
      %v6044 = vsel %vm6043, %v6011, %v5788
      %v6045 = vsel %vm6043, %v6012, %v5790
      %v6046 = vsel %vm6043, %v6013, %v5792
      %v6047 = vsel %vm6043, %v6014, %v5794
      %v6048 = vsel %vm6043, %v6015, %v5796
      %v6049 = vsel %vm6043, %v6016, %v5798
      %v6050 = vsel %vm6043, %v6017, %v5800
      %v6051 = vsel %vm6043, %v6018, %v5802
      %v6052 = vsel %vm6043, %v6019, %v5804
      %v6053 = vsel %vm6043, %v6020, %v5806
      %v6054 = vsel %vm6043, %v6021, %v5808
      %v6055 = vsel %vm6043, %v6022, %v5810
      %v6056 = vsel %vm6043, %v6023, %v5812
      %v6057 = vsel %vm6043, %v6024, %v5814
      %v6058 = vsel %vm6043, %v6025, %v5816
      %v6059 = vsel %vm6043, %v6026, %v5818
      %v6060 = vsel %vm6043, %v6027, %v5820
      %v6061 = vsel %vm6043, %v6028, %v5822
      %v6062 = vsel %vm6043, %v6029, %v5824
      %v6063 = vsel %vm6043, %v6030, %v5826
      %v6064 = vsel %vm6043, %v6031, %v5828
      %v6065 = vsel %vm6043, %v6032, %v5830
      %v6066 = vsel %vm6043, %v6033, %v5832
      %v6067 = vsel %vm6043, %v6034, %v5834
      %v6068 = vsel %vm6043, %v6035, %v5836
      %v6069 = vsel %vm6043, %v6036, %v5838
      %v6070 = vsel %vm6043, %v6037, %v5840
      %v6071 = vsel %vm6043, %v6038, %v5842
      %v6072 = vsel %vm6043, %v6039, %v5844
      %v6073 = vsel %vm6043, %v6040, %v5846
      %v6074 = vsel %vm6043, %v6041, %v5848
      %v6075 = vsel %vm6043, %v6042, %v5850
      %vm6076 = vcmask 195584
      %v6077 = vsel %vm6076, %v6044, %v5916
      %v6078 = vsel %vm6076, %v6045, %v5918
      %v6079 = vsel %vm6076, %v6046, %v5920
      %v6080 = vsel %vm6076, %v6047, %v5922
      %v6081 = vsel %vm6076, %v6048, %v5924
      %v6082 = vsel %vm6076, %v6049, %v5926
      %v6083 = vsel %vm6076, %v6050, %v5928
      %v6084 = vsel %vm6076, %v6051, %v5930
      %v6085 = vsel %vm6076, %v6052, %v5932
      %v6086 = vsel %vm6076, %v6053, %v5934
      %v6087 = vsel %vm6076, %v6054, %v5936
      %v6088 = vsel %vm6076, %v6055, %v5938
      %v6089 = vsel %vm6076, %v6056, %v5940
      %v6090 = vsel %vm6076, %v6057, %v5942
      %v6091 = vsel %vm6076, %v6058, %v5944
      %v6092 = vsel %vm6076, %v6059, %v5946
      %v6093 = vsel %vm6076, %v6060, %v5948
      %v6094 = vsel %vm6076, %v6061, %v5950
      %v6095 = vsel %vm6076, %v6062, %v5952
      %v6096 = vsel %vm6076, %v6063, %v5954
      %v6097 = vsel %vm6076, %v6064, %v5956
      %v6098 = vsel %vm6076, %v6065, %v5958
      %v6099 = vsel %vm6076, %v6066, %v5960
      %v6100 = vsel %vm6076, %v6067, %v5962
      %v6101 = vsel %vm6076, %v6068, %v5964
      %v6102 = vsel %vm6076, %v6069, %v5966
      %v6103 = vsel %vm6076, %v6070, %v5968
      %v6104 = vsel %vm6076, %v6071, %v5970
      %v6105 = vsel %vm6076, %v6072, %v5972
      %v6106 = vsel %vm6076, %v6073, %v5974
      %v6107 = vsel %vm6076, %v6074, %v5976
      %v6108 = vsel %vm6076, %v6075, %v5978
      %v6109 = vld [vmem:[%s3] sm:$0xf]
      %v6110 = vld [vmem:[%s3 + $0x4] sm:$0xf]
      %v6111 = vld [vmem:[%s3 + $0x8] sm:$0xf]
      %v6112 = vld [vmem:[%s3 + $0xc] sm:$0xf]
      %6113 = vxpose.xlu0.b32.start [1/16] %v6077, 128
      %6114 = vxpose.xlu0.b32.cont [2/16] %v6085, 128
      %6115 = vxpose.xlu0.b32.cont [3/16] %v6078, 128
      %6116 = vxpose.xlu0.b32.cont [4/16] %v6086, 128
      %6117 = vxpose.xlu0.b32.cont [5/16] %v6079, 128
      %6118 = vxpose.xlu0.b32.cont [6/16] %v6087, 128
      %6119 = vxpose.xlu0.b32.cont [7/16] %v6080, 128
      %6120 = vxpose.xlu0.b32.cont [8/16] %v6088, 128
      %6121 = vxpose.xlu0.b32.cont [9/16] %v6081, 128
      %6122 = vxpose.xlu0.b32.cont [10/16] %v6089, 128
      %6123 = vxpose.xlu0.b32.cont [11/16] %v6082, 128
      %6124 = vxpose.xlu0.b32.cont [12/16] %v6090, 128
      %6125 = vxpose.xlu0.b32.cont [13/16] %v6083, 128
      %6126 = vxpose.xlu0.b32.cont [14/16] %v6091, 128
      %6127 = vxpose.xlu0.b32.cont [15/16] %v6084, 128
      %6128 = vxpose.xlu0.b32.end [16/16] %v6092, 128
      %v6129 = vpop.trf.xlu0
      %v6130 = vpop.trf.xlu0
      %v6131 = vpop.trf.xlu0
      %v6132 = vpop.trf.xlu0
      %v6133 = vpop.trf.xlu0
      %v6134 = vpop.trf.xlu0
      %v6135 = vpop.trf.xlu0
      %v6136 = vpop.trf.xlu0
      %v6137 = vpop.trf.xlu0
      %v6138 = vpop.trf.xlu0
      %v6139 = vpop.trf.xlu0
      %v6140 = vpop.trf.xlu0
      %v6141 = vpop.trf.xlu0
      %v6142 = vpop.trf.xlu0
      %v6143 = vpop.trf.xlu0
      %v6144 = vpop.trf.xlu0
      %6145 = vxpose.xlu0.b32.start [1/16] %v6093, 128
      %6146 = vxpose.xlu0.b32.cont [2/16] %v6101, 128
      %6147 = vxpose.xlu0.b32.cont [3/16] %v6094, 128
      %6148 = vxpose.xlu0.b32.cont [4/16] %v6102, 128
      %6149 = vxpose.xlu0.b32.cont [5/16] %v6095, 128
      %6150 = vxpose.xlu0.b32.cont [6/16] %v6103, 128
      %6151 = vxpose.xlu0.b32.cont [7/16] %v6096, 128
      %6152 = vxpose.xlu0.b32.cont [8/16] %v6104, 128
      %6153 = vxpose.xlu0.b32.cont [9/16] %v6097, 128
      %6154 = vxpose.xlu0.b32.cont [10/16] %v6105, 128
      %6155 = vxpose.xlu0.b32.cont [11/16] %v6098, 128
      %6156 = vxpose.xlu0.b32.cont [12/16] %v6106, 128
      %6157 = vxpose.xlu0.b32.cont [13/16] %v6099, 128
      %6158 = vxpose.xlu0.b32.cont [14/16] %v6107, 128
      %6159 = vxpose.xlu0.b32.cont [15/16] %v6100, 128
      %6160 = vxpose.xlu0.b32.end [16/16] %v6108, 128
      %v6161 = vpop.trf.xlu0
      %v6162 = vpop.trf.xlu0
      %v6163 = vpop.trf.xlu0
      %v6164 = vpop.trf.xlu0
      %v6165 = vpop.trf.xlu0
      %v6166 = vpop.trf.xlu0
      %v6167 = vpop.trf.xlu0
      %v6168 = vpop.trf.xlu0
      %v6169 = vpop.trf.xlu0
      %v6170 = vpop.trf.xlu0
      %v6171 = vpop.trf.xlu0
      %v6172 = vpop.trf.xlu0
      %v6173 = vpop.trf.xlu0
      %v6174 = vpop.trf.xlu0
      %v6175 = vpop.trf.xlu0
      %v6176 = vpop.trf.xlu0
      %v6177 = vpack.c.bf16 %v6130, %v6129
      %v6178 = vpack.c.bf16 %v6162, %v6161
      %v6179 = vpack.c.bf16 %v6132, %v6131
      %v6180 = vpack.c.bf16 %v6164, %v6163
      %v6181 = vld [vmem:[%s4] sm:$0xff]
      %v6182 = vld [vmem:[%s4 + $0x8] sm:$0xff]
      %v6183 = vld [vmem:[%s4 + $0x10] sm:$0xff]
      %v6184 = vld [vmem:[%s4 + $0x18] sm:$0xff]
      %6186 = vset.pattern.permute.xlu0 0
      %6187 = vperm.xlu0 %6186, %v6181
      %v6188 = vpop.permute.xlu0 %6187
      %6191 = vset.pattern.permute.xlu0 0
      %6192 = vperm.xlu0 %6191, %v6182
      %v6193 = vpop.permute.xlu0 %6192
      %6196 = vset.pattern.permute.xlu0 0
      %6197 = vperm.xlu0 %6196, %v6183
      %v6198 = vpop.permute.xlu0 %6197
      %6201 = vset.pattern.permute.xlu0 0
      %6202 = vperm.xlu0 %6201, %v6184
      %v6203 = vpop.permute.xlu0 %6202
      %v6209 = vunpack.c.l.b16 %v6109
      %v6210 = vunpack.c.l.b16 %v6110
      %v6211 = vunpack.c.l.b16 %v6111
      %v6212 = vunpack.c.l.b16 %v6112
      %v6213 = vpack.c.b16 %v6210, %v6209
      %v6214 = vpack.c.b16 %v6212, %v6211
      %v6216 = vsel %vm391, %v6213, 0
      %v6219 = vsel %vm391, %v6214, 0
      %6221 = vmatprep.subr.bf16.mxu0 %v6178
      %6222 = vmatpush1.bf16.msra.mxu0 %v6177
      %6223 = vmatprep.subr.bf16.mxu0 %v6180
      %6224 = vmatpush1.bf16.msra.mxu0 %v6179
      %6225 = vmatprep.subr.bf16.mxu0 0
      %6226 = vmatpush1.bf16.msra.mxu0 0
      %6227 = vmatprep.subr.bf16.mxu0 0
      %6228 = vmatpush1.bf16.msra.mxu0 0
      %6229 = vmatprep.subr.bf16.mxu0 0
      %6230 = vmatpush1.bf16.msra.mxu0 0
      %6231 = vmatprep.subr.bf16.mxu0 0
      %6232 = vmatpush1.bf16.msra.mxu0 0
      %6233 = vmatprep.subr.bf16.mxu0 0
      %6234 = vmatpush1.bf16.msra.mxu0 0
      %6235 = vmatprep.subr.bf16.mxu0 0
      %6236 = vmatpush1.bf16.msra.mxu0 0
      %6237 = vmatprep.subr.bf16.mxu0 0
      %6238 = vmatpush1.bf16.msra.mxu0 0
      %6239 = vmatprep.subr.bf16.mxu0 0
      %6240 = vmatpush1.bf16.msra.mxu0 0
      %6241 = vmatprep.subr.bf16.mxu0 0
      %6242 = vmatpush1.bf16.msra.mxu0 0
      %6243 = vmatprep.subr.bf16.mxu0 0
      %6244 = vmatpush1.bf16.msra.mxu0 0
      %6245 = vmatprep.subr.bf16.mxu0 0
      %6246 = vmatpush1.bf16.msra.mxu0 0
      %6247 = vmatprep.subr.bf16.mxu0 0
      %6248 = vmatpush1.bf16.msra.mxu0 0
      %6249 = vmatprep.subr.bf16.mxu0 0
      %6250 = vmatpush1.bf16.msra.mxu0 0
      %6251 = vmatprep.subr.bf16.mxu0 0
      %6252 = vmatpush1.bf16.msra.mxu0 0
      %6253 = vmatprep.mubr.bf16.mxu0 0
      %6254 = vmatmul.mubr.bf16.gmra.mrb[0].mxu0 %v6216
      %v6255 = vpop.f32.mrb[0].mxu0
      %v6256 = vadd.f32 %v6188, %v6255
      %v6257 = vpop.f32.mrb[0].mxu0
      %v6258 = vadd.f32 %v6188, %v6257
      %v6259 = vpop.f32.mrb[0].mxu0
      %v6260 = vadd.f32 %v6193, %v6259
      %v6261 = vpop.f32.mrb[0].mxu0
      %v6262 = vadd.f32 %v6193, %v6261
      %6263 = vmatprep.mubr.bf16.mxu0 0
      %6264 = vmatmul.mubr.bf16.gmra.mrb[0].mxu0 %v6219
      %v6265 = vpop.f32.mrb[0].mxu0
      %v6266 = vadd.f32 %v6198, %v6265
      %v6267 = vpop.f32.mrb[0].mxu0
      %v6268 = vadd.f32 %v6198, %v6267
      %v6269 = vpop.f32.mrb[0].mxu0
      %v6270 = vadd.f32 %v6203, %v6269
      %v6271 = vpop.f32.mrb[0].mxu0
      %v6272 = vadd.f32 %v6203, %v6271
      %6273 = vdwg.mxu0
      %6274 = vst [vmem:[%s278] sm:$0xff] %v6256
      %6275 = vst [vmem:[%s278 + $0x8] sm:$0xff] %v6258
      %6276 = vst [vmem:[%s278 + $0x10] sm:$0xff] %v6260
      %6277 = vst [vmem:[%s278 + $0x18] sm:$0xff] %v6262
      %6278 = vst [vmem:[%s278 + $0x20] sm:$0xff] %v6266
      %6279 = vst [vmem:[%s278 + $0x28] sm:$0xff] %v6268
      %6280 = vst [vmem:[%s278 + $0x30] sm:$0xff] %v6270
      %6281 = vst [vmem:[%s278 + $0x38] sm:$0xff] %v6272
      %p6282 = scmp.lt.s32.totalorder %s18, 1
      %s6283 = scalar_select %p6282, %s18, 1
      %s6284 = smul.addr %s6283, 8
      %s6285 = smul.addr %s6284, 8
      %s6286 = scalar_lea.vmem %s7, %s6285
      // Predicated region
      $region49: #{attention_forward.1} parent=47 // pred_check
        %p6287 = pneg %p188
      $region50: #{attention_forward.1} parent=47 // pred_check_branch
        %6289 = sbr.rel (%p6287) target = $region52
      $region51: #{attention_forward.1} parent=47 // pred_region
        _
      $region52: #{attention_forward.1} parent=47 // pred_fallthru
        _
    $region48: #{attention_forward.1} parent=5 // pred_fallthru
      _
    %p6290 = scmp.le.s32.totalorder 2, %s13
    // Predicated region
    $region53: #{attention_forward.1} parent=5 // pred_check
      %p6291 = pneg %p6290
    $region54: #{attention_forward.1} parent=5 // pred_check_branch
      %6293 = sbr.rel (%p6291) target = $region56
    $region55: #{attention_forward.1} parent=5 // pred_region
      %s6294 = ssub.s32 %s13, 2
      // Predicated region
      $region57: #{attention_forward.1} parent=55 // pred_check
        %p6295 = pneg %p194
      $region58: #{attention_forward.1} parent=55 // pred_check_branch
        %6297 = sbr.rel (%p6295) target = $region60
      $region59: #{attention_forward.1} parent=55 // pred_region
        %p6298 = scmp.lt.s32.totalorder %s19, 1
        %s6299 = scalar_select %p6298, %s19, 1
        %s6300 = smul.addr %s6299, 8
        %s6301 = smul.addr %s6300, 8
        %s6302 = scalar_lea.vmem %s7, %s6301
      $region60: #{attention_forward.1} parent=55 // pred_fallthru
        _
    $region56: #{attention_forward.1} parent=5 // pred_fallthru
      _
  $region6: #{attention_forward.1} parent=0 // loop_footer
    %s17 = sadd.s32 1, %s13
  $region7: #{attention_forward.1} parent=0 // loop_footer_branch
    %12 = sbr.rel target = $region3
  $region8: #{attention_forward.1} parent=0 // loop_exit
    _

</llo_original>
